<compile_context>
chip_gen: v6e
topology: v6e:2x2x1
jax: 0.10.0
libtpu: 0.0.40
codegen_flags: <defaults>
</compile_context>

<pallas_src>
import functools

import numpy as np
import jax
import jax.numpy as jnp
from jax.experimental import pallas as pl
from jax.experimental.pallas import tpu as pltpu

# ---------------- configuration consistent with the module ----------------
OBS_LEN   = 8
PRED_LEN  = 8
EMB_DIM   = 16     # embedding_dim
ENC_H     = 32     # encoder_h_dim
DEC_H     = 32     # decoder_h_dim
MLP_DIM   = 64     # mlp_dim
BNECK     = 32     # bottleneck_dim
NOISE_DIM = 8      # noise_dim = (8,)
NCTX      = DEC_H - NOISE_DIM   # mlp_decoder_context output dim
POOL_MID  = 512    # hard-coded middle dim of PoolHiddenNet.mlp_pre_pool
NEG_SLOPE = 0.01   # nn.LeakyReLU default
BN_EPS    = 1e-5   # nn.BatchNorm1d default
NEG_BIG   = -1e30  # "-inf" stand-in for the masked max

# ---------------- packed-slab row offsets (shared by kernel & params) ------
# w128 slab, width 128 lanes
W128_ENC_WIH = 0                       # (EMB_DIM, 128)
W128_ENC_WHH = 16                      # (ENC_H,   128)
W128_DEC_WHH = 48                      # (DEC_H,   128)
W128_W_REC   = 80                      # (DEC_H,   128)  folded recurrence
W128_ENC_B   = 112                     # (1, 128)
W128_B_IN0   = 113                     # (1, 128)
W128_B_REC   = 114                     # (1, 128)
W128_W_IN0   = 115                     # (2, 128)  folded step-0 input map
W128_ROWS    = 120

# pool1 slab, width 512 lanes
P1_W   = 0                             # (EMB_DIM + ENC_H, 512)
P1_B   = 48                            # (1, 512)
P1_ROWS = 56

# pool2 slab, width 32 lanes
P2_W   = 0                             # (512, BNECK)
P2_B   = 512                           # (1, BNECK)
P2_ROWS = 520

# small slab, width 64 lanes
SM_CTX1_W   = 0                        # (64, 64)
SM_CTX1_B   = 64                       # (1, 64)
SM_CTX2_W   = 72                       # (64, NCTX)
SM_CTX2_B   = 136                      # (1, NCTX)
SM_ENC_SE_W = 144                      # (2, EMB_DIM)
SM_ENC_SE_B = 146                      # (1, EMB_DIM)
SM_PSE_W    = 152                      # (2, EMB_DIM)
SM_PSE_B    = 154                      # (1, EMB_DIM)
SM_H2P_W    = 160                      # (DEC_H, 2)
SM_H2P_B    = 192                      # (1, 2)
SM_ROWS     = 200


# ============================ fused Pallas kernel ============================

def _leaky(x):
    return jnp.where(x > 0, x, NEG_SLOPE * x)


def _lstm_cell(gates, c):
    """LSTM cell from pre-activations (gate order i, f, g, o).

    The g-gate pre-activation is pre-scaled by 2 in prepare_params so that a
    single sigmoid pass suffices: tanh(x) == 2*sigmoid(2x) - 1."""
    H = c.shape[-1]
    sig = jax.nn.sigmoid(gates)
    i = sig[:, 0 * H:1 * H]
    f = sig[:, 1 * H:2 * H]
    g = 2.0 * sig[:, 2 * H:3 * H] - 1.0
    o = sig[:, 3 * H:4 * H]
    c_new = f * c + i * g
    h_new = o * jnp.tanh(c_new)
    return h_new, c_new


def _sgan_fwd_kernel(data_ref, pair_ref, w128_ref, pool1_ref, pool2_ref,
                     small_ref, out_ref, *, obs_len, pred_len, bp, maxn_p):
    f32 = jnp.float32
    T = obs_len
    pp = bp * maxn_p

    # ----------------------- unpack data slab -------------------------------
    obs_rel = data_ref[0:T * bp, 0:2]                            # (T*BP, 2)
    end_pos = data_ref[T * bp:(T + 1) * bp, 0:2]                 # (BP, 2)
    noise = data_ref[(T + 1) * bp:(T + 2) * bp, 0:NOISE_DIM]     # (BP, 8)
    bvalid = data_ref[(T + 2) * bp:(T + 3) * bp, 0:1]            # (BP, 1)
    pvalid = data_ref[(T + 3) * bp:(T + 3) * bp + pp, 0:1]       # (PP, 1)

    dmat = pair_ref[0:pp, :]                                     # (PP, BP)
    gpeer = pair_ref[pp:2 * pp, :]                               # (PP, BP)

    # ---------------- Encoder: spatial_embedding + LSTM over obs_len --------
    se_w = small_ref[SM_ENC_SE_W:SM_ENC_SE_W + 2, 0:EMB_DIM]     # (2, 16)
    se_b = small_ref[SM_ENC_SE_B:SM_ENC_SE_B + 1, 0:EMB_DIM]     # (1, 16)
    # K=2 "matmul" as VPU broadcast-FMA (keeps the MXU slot free)
    emb = (obs_rel[:, 0:1] * se_w[0:1, :]
           + obs_rel[:, 1:2] * se_w[1:2, :] + se_b)              # (T*BP, 16)

    enc_wih_t = w128_ref[W128_ENC_WIH:W128_ENC_WIH + EMB_DIM, :]  # (16, 128)
    enc_whh_t = w128_ref[W128_ENC_WHH:W128_ENC_WHH + ENC_H, :]    # (32, 128)
    enc_b = w128_ref[W128_ENC_B:W128_ENC_B + 1, :]                # (1, 128)
    # hoisted input-gate matmul for all timesteps at once
    gates_x = (jnp.dot(emb, enc_wih_t, preferred_element_type=f32)
               + enc_b)                                           # (T*BP, 128)

    h = jnp.zeros((bp, ENC_H), f32)
    c = jnp.zeros((bp, ENC_H), f32)
    for t in range(T):                                            # unrolled
        g_in = gates_x[t * bp:(t + 1) * bp, :]
        if t > 0:                                                 # h == 0 at t=0
            g_in = g_in + jnp.dot(h, enc_whh_t, preferred_element_type=f32)
        h, c = _lstm_cell(g_in, c)
    final_h = h                                                   # (BP, ENC_H)

    # ---------------- PoolHiddenNet (owner-major padded pair slab) ----------
    rel_pos = jnp.dot(dmat, end_pos, preferred_element_type=f32)  # (PP, 2)
    hid_pairs = jnp.dot(gpeer, final_h, preferred_element_type=f32)  # (PP, 32)

    pse_w = small_ref[SM_PSE_W:SM_PSE_W + 2, 0:EMB_DIM]
    pse_b = small_ref[SM_PSE_B:SM_PSE_B + 1, 0:EMB_DIM]
    rel_emb = (rel_pos[:, 0:1] * pse_w[0:1, :]
               + rel_pos[:, 1:2] * pse_w[1:2, :] + pse_b)         # (PP, 16)

    pl1_we = pool1_ref[P1_W:P1_W + EMB_DIM, :]                    # (16, 512)
    pl1_wh = pool1_ref[P1_W + EMB_DIM:P1_W + EMB_DIM + ENC_H, :]  # (32, 512)
    pl1_b = pool1_ref[P1_B:P1_B + 1, :]                           # (1, 512)
    y = _leaky(jnp.dot(rel_emb, pl1_we, preferred_element_type=f32)
               + jnp.dot(hid_pairs, pl1_wh, preferred_element_type=f32)
               + pl1_b)                                           # (PP, 512)

    pl2_w = pool2_ref[P2_W:P2_W + POOL_MID, :]                    # (512, 32)
    pl2_b = pool2_ref[P2_B:P2_B + 1, :]                           # (1, 32)
    y = _leaky(jnp.dot(y, pl2_w, preferred_element_type=f32) + pl2_b)  # (PP,32)

    # per-pedestrian max over its (padded) peer block — no (BP,BNECK,PP) blowup
    y = jnp.where(pvalid > 0, y, NEG_BIG)                         # (PP, 32)
    pool_h = jnp.max(y.reshape(bp, maxn_p, BNECK), axis=1) * bvalid  # (BP, 32)

    # ---------------- mlp_decoder_context + add_noise ('ped') ---------------
    ctx1_wa = small_ref[SM_CTX1_W:SM_CTX1_W + ENC_H, 0:MLP_DIM]          # (32,64)
    ctx1_wb = small_ref[SM_CTX1_W + ENC_H:SM_CTX1_W + ENC_H + BNECK, 0:MLP_DIM]
    ctx1_b = small_ref[SM_CTX1_B:SM_CTX1_B + 1, 0:MLP_DIM]
    z = _leaky(jnp.dot(final_h, ctx1_wa, preferred_element_type=f32)
               + jnp.dot(pool_h, ctx1_wb, preferred_element_type=f32)
               + ctx1_b)                                          # (BP, 64)

    ctx2_w = small_ref[SM_CTX2_W:SM_CTX2_W + MLP_DIM, 0:NCTX]     # (64, 24)
    ctx2_b = small_ref[SM_CTX2_B:SM_CTX2_B + 1, 0:NCTX]
    noise_input = _leaky(jnp.dot(z, ctx2_w, preferred_element_type=f32)
                         + ctx2_b)                                # (BP, 24)

    dec_h = jnp.concatenate([noise_input, noise], axis=1)         # (BP, 32)
    dec_c = jnp.zeros((bp, DEC_H), f32)

    # ---------------- Decoder rollout (folded recurrence) -------------------
    dec_whh_t = w128_ref[W128_DEC_WHH:W128_DEC_WHH + DEC_H, :]    # (32, 128)
    w_rec = w128_ref[W128_W_REC:W128_W_REC + DEC_H, :]            # (32, 128)
    b_in0 = w128_ref[W128_B_IN0:W128_B_IN0 + 1, :]                # (1, 128)
    b_rec = w128_ref[W128_B_REC:W128_B_REC + 1, :]                # (1, 128)
    w_in0 = w128_ref[W128_W_IN0:W128_W_IN0 + 2, :]                # (2, 128)

    last_pos_rel = obs_rel[(T - 1) * bp:T * bp, :]                # (BP, 2)
    gx0 = (last_pos_rel[:, 0:1] * w_in0[0:1, :]
           + last_pos_rel[:, 1:2] * w_in0[1:2, :] + b_in0)        # (BP, 128)

    gates = gx0 + jnp.dot(dec_h, dec_whh_t, preferred_element_type=f32)
    dec_h, dec_c = _lstm_cell(gates, dec_c)
    hs = [dec_h]
    for _ in range(1, pred_len):                                  # unrolled
        gates = jnp.dot(dec_h, w_rec, preferred_element_type=f32) + b_rec
        dec_h, dec_c = _lstm_cell(gates, dec_c)
        hs.append(dec_h)

    # hidden2pos applied once to all decoder states, off the critical chain
    h2p_w = small_ref[SM_H2P_W:SM_H2P_W + DEC_H, 0:2]             # (32, 2)
    h2p_b = small_ref[SM_H2P_B:SM_H2P_B + 1, 0:2]                 # (1, 2)
    hs_all = jnp.concatenate(hs, axis=0)                          # (pred*BP, 32)
    rel_all = (jnp.dot(hs_all, h2p_w, preferred_element_type=f32)
               + h2p_b)                                           # (pred*BP, 2)
    out_ref[...] = jnp.concatenate(
        [rel_all[t * bp:(t + 1) * bp, :] for t in range(pred_len)], axis=1)


# ============================ wrapper (plain JAX) ============================

def _round_up(x, m):
    return ((x + m - 1) // m) * m


def _scene_matrices(seq_start_end, batch, bp):
    """Owner-major padded pair layout: pair row = owner*MAXN_P + peer_slot."""
    max_n = 1
    for (start, end) in seq_start_end:
        max_n = max(max_n, end - start)
    maxn_p = max(8, _round_up(max_n, 8))
    pp = bp * maxn_p
    dmat = np.zeros((pp, bp), np.float32)
    gpeer = np.zeros((pp, bp), np.float32)
    pvalid = np.zeros((pp, 1), np.float32)
    for (start, end) in seq_start_end:
        n = end - start
        for a in range(n):
            owner = start + a
            for j in range(n):
                peer = start + j
                k = owner * maxn_p + j
                dmat[k, peer] += 1.0          # end_pos[peer] - end_pos[owner]
                dmat[k, owner] -= 1.0
                gpeer[k, peer] = 1.0          # hidden[peer]
                pvalid[k, 0] = 1.0
    bvalid = np.zeros((bp, 1), np.float32)
    bvalid[:batch, 0] = 1.0
    return dmat, gpeer, pvalid, bvalid, maxn_p


@functools.partial(jax.jit, static_argnames=("seq_start_end",))
def trajectory_generator_forward(params, obs_traj, obs_traj_rel, seq_start_end,
                                 user_noise):
    obs_len, batch, _ = obs_traj_rel.shape
    bp = max(8, _round_up(batch, 8))          # pad sublane (row) dim to 8
    pad = bp - batch

    dmat, gpeer, pvalid, bvalid, maxn_p = _scene_matrices(
        seq_start_end, batch, bp)
    pp = bp * maxn_p

    obs_rel = jnp.pad(obs_traj_rel.astype(jnp.float32),
                      ((0, 0), (0, pad), (0, 0))).reshape(obs_len * bp, 2)
    end_pos = jnp.pad(obs_traj[-1].astype(jnp.float32), ((0, pad), (0, 0)))
    noise = jnp.pad(user_noise.astype(jnp.float32), ((0, pad), (0, 0)))

    def lane8(x):
        return jnp.pad(x, ((0, 0), (0, 8 - x.shape[1])))

    data = jnp.concatenate(
        [lane8(obs_rel), lane8(end_pos), lane8(noise),
         lane8(jnp.asarray(bvalid)), lane8(jnp.asarray(pvalid))], axis=0)
    pairs = jnp.asarray(np.concatenate([dmat, gpeer], axis=0))

    vm = pl.BlockSpec(memory_space=pltpu.MemorySpace.VMEM)
    out = pl.pallas_call(
        functools.partial(_sgan_fwd_kernel, obs_len=obs_len,
                          pred_len=PRED_LEN, bp=bp, maxn_p=maxn_p),
        out_shape=jax.ShapeDtypeStruct((bp, 2 * PRED_LEN), jnp.float32),
        in_specs=[vm] * 6,
        out_specs=vm,
    )(data, pairs, params["w128"], params["pool1"], params["pool2"],
      params["small"])
    # (BP, 2*pred_len) lane-dense slab -> (pred_len, batch, 2)
    return jnp.transpose(out[:batch].reshape(batch, PRED_LEN, 2), (1, 0, 2))


# ============================ parameters ============================

def init_params(key):
    """Raw parameters in PyTorch layouts (Linear: (out, in); LSTM: torch order)."""
    keys = iter(jax.random.split(key, 64))

    def lin_p(din, dout):
        w = jax.random.normal(next(keys), (dout, din), jnp.float32) / jnp.sqrt(float(din))
        b = 0.1 * jax.random.normal(next(keys), (dout,), jnp.float32)
        return w, b

    def bn_p(d):  # eval-mode BatchNorm1d folded into affine scale/shift
        gamma = 1.0 + 0.1 * jax.random.normal(next(keys), (d,), jnp.float32)
        beta = 0.1 * jax.random.normal(next(keys), (d,), jnp.float32)
        rmean = 0.1 * jax.random.normal(next(keys), (d,), jnp.float32)
        rvar = 0.5 + jnp.abs(jax.random.normal(next(keys), (d,), jnp.float32))
        scale = gamma / jnp.sqrt(rvar + BN_EPS)
        shift = beta - rmean * scale
        return scale, shift

    def lstm_p(din, H):
        s = 1.0 / jnp.sqrt(float(H))
        wih = s * jax.random.normal(next(keys), (4 * H, din), jnp.float32)
        whh = s * jax.random.normal(next(keys), (4 * H, H), jnp.float32)
        bih = s * jax.random.normal(next(keys), (4 * H,), jnp.float32)
        bhh = s * jax.random.normal(next(keys), (4 * H,), jnp.float32)
        return wih, whh, bih, bhh

    p = {}
    # Encoder
    p["enc_se_w"], p["enc_se_b"] = lin_p(2, EMB_DIM)
    p["enc_wih"], p["enc_whh"], p["enc_bih"], p["enc_bhh"] = lstm_p(EMB_DIM, ENC_H)
    # PoolHiddenNet (generator-level pool_net, h_dim = ENC_H)
    pool = {}
    pool["se_w"], pool["se_b"] = lin_p(2, EMB_DIM)
    pool["l1_w"], pool["l1_b"] = lin_p(EMB_DIM + ENC_H, POOL_MID)
    pool["bn1_s"], pool["bn1_t"] = bn_p(POOL_MID)
    pool["l2_w"], pool["l2_b"] = lin_p(POOL_MID, BNECK)
    pool["bn2_s"], pool["bn2_t"] = bn_p(BNECK)
    p["pool"] = pool
    # mlp_decoder_context: [ENC_H+BNECK, MLP_DIM, DEC_H - NOISE_DIM]
    p["ctx1_w"], p["ctx1_b"] = lin_p(ENC_H + BNECK, MLP_DIM)
    p["ctx_bn1_s"], p["ctx_bn1_t"] = bn_p(MLP_DIM)
    p["ctx2_w"], p["ctx2_b"] = lin_p(MLP_DIM, NCTX)
    p["ctx_bn2_s"], p["ctx_bn2_t"] = bn_p(NCTX)
    # Decoder
    p["dec_se_w"], p["dec_se_b"] = lin_p(2, EMB_DIM)
    p["dec_wih"], p["dec_whh"], p["dec_bih"], p["dec_bhh"] = lstm_p(EMB_DIM, DEC_H)
    p["h2p_w"], p["h2p_b"] = lin_p(DEC_H, 2)
    return p


def prepare_params(p):
    """One-time prep: transpose to (in, out), fold eval-mode BN, pre-scale the
    LSTM g-gate by 2 (single-sigmoid trick), fold the decoder hidden2pos ->
    spatial_embedding -> Wih chain into W_rec/b_rec, and pack into 4 slabs."""
    f32 = jnp.float32

    def lin(w, b):
        return w.T.astype(f32), b.reshape(1, -1).astype(f32)

    def lin_bn(w, b, scale, shift):
        wt = (w.T * scale[None, :]).astype(f32)
        bb = (b * scale + shift).reshape(1, -1).astype(f32)
        return wt, bb

    def lstm(wih, whh, bih, bhh, H):
        gscale = jnp.ones((4 * H,), f32).at[2 * H:3 * H].set(2.0)
        wih_t = wih.T.astype(f32) * gscale[None, :]
        whh_t = whh.T.astype(f32) * gscale[None, :]
        b = ((bih + bhh).astype(f32) * gscale).reshape(1, -1)
        return wih_t, whh_t, b

    enc_se_wt, enc_se_b = lin(p["enc_se_w"], p["enc_se_b"])
    enc_wih_t, enc_whh_t, enc_b = lstm(p["enc_wih"], p["enc_whh"],
                                       p["enc_bih"], p["enc_bhh"], ENC_H)
    pool = p["pool"]
    pse_wt, pse_b = lin(pool["se_w"], pool["se_b"])
    pl1_wt, pl1_b = lin_bn(pool["l1_w"], pool["l1_b"],
                           pool["bn1_s"], pool["bn1_t"])
    pl2_wt, pl2_b = lin_bn(pool["l2_w"], pool["l2_b"],
                           pool["bn2_s"], pool["bn2_t"])
    ctx1_wt, ctx1_b = lin_bn(p["ctx1_w"], p["ctx1_b"],
                             p["ctx_bn1_s"], p["ctx_bn1_t"])
    ctx2_wt, ctx2_b = lin_bn(p["ctx2_w"], p["ctx2_b"],
                             p["ctx_bn2_s"], p["ctx_bn2_t"])
    dse_wt, dse_b = lin(p["dec_se_w"], p["dec_se_b"])
    dec_wih_t, dec_whh_t, dec_b = lstm(p["dec_wih"], p["dec_whh"],
                                       p["dec_bih"], p["dec_bhh"], DEC_H)
    h2p_wt, h2p_b = lin(p["h2p_w"], p["h2p_b"])

    # ----- decoder algebraic fold (exact linear rewrite) -----
    w_in0 = dse_wt @ dec_wih_t                      # (2, 128)
    b_in0 = dse_b @ dec_wih_t + dec_b               # (1, 128)
    w_rec = dec_whh_t + h2p_wt @ w_in0              # (32, 128)
    b_rec = h2p_b @ w_in0 + b_in0                   # (1, 128)

    # ----- pack into slabs -----
    w128 = jnp.zeros((W128_ROWS, 128), f32)
    w128 = w128.at[W128_ENC_WIH:W128_ENC_WIH + EMB_DIM, :].set(enc_wih_t)
    w128 = w128.at[W128_ENC_WHH:W128_ENC_WHH + ENC_H, :].set(enc_whh_t)
    w128 = w128.at[W128_DEC_WHH:W128_DEC_WHH + DEC_H, :].set(dec_whh_t)
    w128 = w128.at[W128_W_REC:W128_W_REC + DEC_H, :].set(w_rec)
    w128 = w128.at[W128_ENC_B:W128_ENC_B + 1, :].set(enc_b)
    w128 = w128.at[W128_B_IN0:W128_B_IN0 + 1, :].set(b_in0)
    w128 = w128.at[W128_B_REC:W128_B_REC + 1, :].set(b_rec)
    w128 = w128.at[W128_W_IN0:W128_W_IN0 + 2, :].set(w_in0)

    pool1 = jnp.zeros((P1_ROWS, POOL_MID), f32)
    pool1 = pool1.at[P1_W:P1_W + EMB_DIM + ENC_H, :].set(pl1_wt)
    pool1 = pool1.at[P1_B:P1_B + 1, :].set(pl1_b)

    pool2 = jnp.zeros((P2_ROWS, BNECK), f32)
    pool2 = pool2.at[P2_W:P2_W + POOL_MID, :].set(pl2_wt)
    pool2 = pool2.at[P2_B:P2_B + 1, :].set(pl2_b)

    small = jnp.zeros((SM_ROWS, 64), f32)
    small = small.at[SM_CTX1_W:SM_CTX1_W + ENC_H + BNECK, 0:MLP_DIM].set(ctx1_wt)
    small = small.at[SM_CTX1_B:SM_CTX1_B + 1, 0:MLP_DIM].set(ctx1_b)
    small = small.at[SM_CTX2_W:SM_CTX2_W + MLP_DIM, 0:NCTX].set(ctx2_wt)
    small = small.at[SM_CTX2_B:SM_CTX2_B + 1, 0:NCTX].set(ctx2_b)
    small = small.at[SM_ENC_SE_W:SM_ENC_SE_W + 2, 0:EMB_DIM].set(enc_se_wt)
    small = small.at[SM_ENC_SE_B:SM_ENC_SE_B + 1, 0:EMB_DIM].set(enc_se_b)
    small = small.at[SM_PSE_W:SM_PSE_W + 2, 0:EMB_DIM].set(pse_wt)
    small = small.at[SM_PSE_B:SM_PSE_B + 1, 0:EMB_DIM].set(pse_b)
    small = small.at[SM_H2P_W:SM_H2P_W + DEC_H, 0:2].set(h2p_wt)
    small = small.at[SM_H2P_B:SM_H2P_B + 1, 0:2].set(h2p_b)

    return {"w128": w128, "pool1": pool1, "pool2": pool2, "small": small}


if __name__ == "__main__":
    key = jax.random.PRNGKey(0)
    kp, k1, k2, kn = jax.random.split(key, 4)
    params = prepare_params(init_params(kp))

    batch = 6
    seq_start_end = ((0, 3), (3, 6))          # two scenes of 3 pedestrians each
    obs_traj = jax.random.normal(k1, (OBS_LEN, batch, 2), jnp.float32)
    obs_traj_rel = jax.random.normal(k2, (OBS_LEN, batch, 2), jnp.float32)
    user_noise = jax.random.normal(kn, (batch, NOISE_DIM), jnp.float32)

    pred_traj_fake_rel = trajectory_generator_forward(
        params, obs_traj, obs_traj_rel, seq_start_end, user_noise)
    pred_traj_fake_rel = jax.block_until_ready(pred_traj_fake_rel)

    assert pred_traj_fake_rel.shape == (PRED_LEN, batch, 2)
    assert bool(jnp.all(jnp.isfinite(pred_traj_fake_rel)))
    print("KERNEL_OK")
</pallas_src>

<mosaic_0001>
module attributes {stable_mosaic.version = 11 : i64} {
  func.func @_sgan_fwd_kernel(%arg0: memref<152x8xf32, #tpu.memory_space<vmem>>, %arg1: memref<128x8xf32, #tpu.memory_space<vmem>>, %arg2: memref<120x128xf32, #tpu.memory_space<vmem>>, %arg3: memref<56x512xf32, #tpu.memory_space<vmem>>, %arg4: memref<520x32xf32, #tpu.memory_space<vmem>>, %arg5: memref<200x64xf32, #tpu.memory_space<vmem>>, %arg6: memref<8x16xf32, #tpu.memory_space<vmem>>) attributes {dimension_semantics = [], scalar_prefetch = 0 : i64, scratch_operands = 0 : i64, tpu.core_type = #tpu.core_type<tc>} {
    %c0 = arith.constant 0 : index
    %c0_0 = arith.constant 0 : index
    %0 = vector.load %arg0[%c0, %c0_0] : memref<152x8xf32, #tpu.memory_space<vmem>>, vector<64x2xf32>
    %c64 = arith.constant 64 : index
    %c0_1 = arith.constant 0 : index
    %1 = vector.load %arg0[%c64, %c0_1] : memref<152x8xf32, #tpu.memory_space<vmem>>, vector<8x2xf32>
    %c72 = arith.constant 72 : index
    %c0_2 = arith.constant 0 : index
    %2 = vector.load %arg0[%c72, %c0_2] : memref<152x8xf32, #tpu.memory_space<vmem>>, vector<8x8xf32>
    %c80 = arith.constant 80 : index
    %c0_3 = arith.constant 0 : index
    %3 = vector.load %arg0[%c80, %c0_3] : memref<152x8xf32, #tpu.memory_space<vmem>>, vector<8x1xf32>
    %c88 = arith.constant 88 : index
    %c0_4 = arith.constant 0 : index
    %4 = vector.load %arg0[%c88, %c0_4] : memref<152x8xf32, #tpu.memory_space<vmem>>, vector<64x1xf32>
    %c0_5 = arith.constant 0 : index
    %c0_6 = arith.constant 0 : index
    %5 = vector.load %arg1[%c0_5, %c0_6] : memref<128x8xf32, #tpu.memory_space<vmem>>, vector<64x8xf32>
    %c64_7 = arith.constant 64 : index
    %c0_8 = arith.constant 0 : index
    %6 = vector.load %arg1[%c64_7, %c0_8] : memref<128x8xf32, #tpu.memory_space<vmem>>, vector<64x8xf32>
    %c144 = arith.constant 144 : index
    %c0_9 = arith.constant 0 : index
    %7 = vector.load %arg5[%c144, %c0_9] : memref<200x64xf32, #tpu.memory_space<vmem>>, vector<2x16xf32>
    %c146 = arith.constant 146 : index
    %c0_10 = arith.constant 0 : index
    %8 = vector.load %arg5[%c146, %c0_10] : memref<200x64xf32, #tpu.memory_space<vmem>>, vector<1x16xf32>
    %9 = vector.extract_strided_slice %0 {offsets = [0, 0], sizes = [64, 1], strides = [1, 1]} : vector<64x2xf32> to vector<64x1xf32>
    %10 = vector.extract_strided_slice %7 {offsets = [0, 0], sizes = [1, 16], strides = [1, 1]} : vector<2x16xf32> to vector<1x16xf32>
    %11 = vector.broadcast %9 : vector<64x1xf32> to vector<64x16xf32>
    %12 = vector.broadcast %10 : vector<1x16xf32> to vector<64x16xf32>
    %13 = arith.mulf %11, %12 : vector<64x16xf32>
    %14 = vector.extract_strided_slice %0 {offsets = [0, 1], sizes = [64, 1], strides = [1, 1]} : vector<64x2xf32> to vector<64x1xf32>
    %15 = vector.extract_strided_slice %7 {offsets = [1, 0], sizes = [1, 16], strides = [1, 1]} : vector<2x16xf32> to vector<1x16xf32>
    %16 = vector.broadcast %14 : vector<64x1xf32> to vector<64x16xf32>
    %17 = vector.broadcast %15 : vector<1x16xf32> to vector<64x16xf32>
    %18 = arith.mulf %16, %17 : vector<64x16xf32>
    %19 = arith.addf %13, %18 : vector<64x16xf32>
    %20 = vector.broadcast %8 : vector<1x16xf32> to vector<64x16xf32>
    %21 = arith.addf %19, %20 : vector<64x16xf32>
    %c0_11 = arith.constant 0 : index
    %c0_12 = arith.constant 0 : index
    %22 = vector.load %arg2[%c0_11, %c0_12] : memref<120x128xf32, #tpu.memory_space<vmem>>, vector<16x128xf32>
    %c16 = arith.constant 16 : index
    %c0_13 = arith.constant 0 : index
    %23 = vector.load %arg2[%c16, %c0_13] : memref<120x128xf32, #tpu.memory_space<vmem>>, vector<32x128xf32>
    %c112 = arith.constant 112 : index
    %c0_14 = arith.constant 0 : index
    %24 = vector.load %arg2[%c112, %c0_14] : memref<120x128xf32, #tpu.memory_space<vmem>>, vector<1x128xf32>
    %cst = arith.constant dense<0.000000e+00> : vector<64x128xf32>
    %25 = tpu.matmul %21, %22, %cst {dimension_numbers = #tpu.dot_dimension_numbers<[1], [0], [0], [1], [0, 0, 1, 1], [], []>} : vector<64x16xf32>, vector<16x128xf32>, vector<64x128xf32> -> vector<64x128xf32>
    %26 = vector.broadcast %24 : vector<1x128xf32> to vector<64x128xf32>
    %27 = arith.addf %25, %26 : vector<64x128xf32>
    %cst_15 = arith.constant 0.000000e+00 : f32
    %28 = vector.broadcast %cst_15 : f32 to vector<8x32xf32>
    %29 = vector.extract_strided_slice %27 {offsets = [0, 0], sizes = [8, 128], strides = [1, 1]} : vector<64x128xf32> to vector<8x128xf32>
    %30 = arith.negf %29 : vector<8x128xf32>
    %31 = math.exp %30 : vector<8x128xf32>
    %cst_16 = arith.constant 1.000000e+00 : f32
    %32 = vector.broadcast %cst_16 : f32 to vector<8x128xf32>
    %33 = arith.addf %32, %31 : vector<8x128xf32>
    %34 = arith.divf %32, %33 : vector<8x128xf32>
    %35 = vector.extract_strided_slice %34 {offsets = [0, 0], sizes = [8, 32], strides = [1, 1]} : vector<8x128xf32> to vector<8x32xf32>
    %36 = vector.extract_strided_slice %34 {offsets = [0, 32], sizes = [8, 32], strides = [1, 1]} : vector<8x128xf32> to vector<8x32xf32>
    %37 = vector.extract_strided_slice %34 {offsets = [0, 64], sizes = [8, 32], strides = [1, 1]} : vector<8x128xf32> to vector<8x32xf32>
    %cst_17 = arith.constant 2.000000e+00 : f32
    %38 = vector.broadcast %cst_17 : f32 to vector<8x32xf32>
    %39 = arith.mulf %38, %37 : vector<8x32xf32>
    %cst_18 = arith.constant 1.000000e+00 : f32
    %40 = vector.broadcast %cst_18 : f32 to vector<8x32xf32>
    %41 = arith.subf %39, %40 : vector<8x32xf32>
    %42 = vector.extract_strided_slice %34 {offsets = [0, 96], sizes = [8, 32], strides = [1, 1]} : vector<8x128xf32> to vector<8x32xf32>
    %43 = arith.mulf %36, %28 : vector<8x32xf32>
    %44 = arith.mulf %35, %41 : vector<8x32xf32>
    %45 = arith.addf %43, %44 : vector<8x32xf32>
    %46 = math.tanh %45 : vector<8x32xf32>
    %47 = arith.mulf %42, %46 : vector<8x32xf32>
    %48 = vector.extract_strided_slice %27 {offsets = [8, 0], sizes = [8, 128], strides = [1, 1]} : vector<64x128xf32> to vector<8x128xf32>
    %cst_19 = arith.constant dense<0.000000e+00> : vector<8x128xf32>
    %49 = tpu.matmul %47, %23, %cst_19 {dimension_numbers = #tpu.dot_dimension_numbers<[1], [0], [0], [1], [0, 0, 1, 1], [], []>} : vector<8x32xf32>, vector<32x128xf32>, vector<8x128xf32> -> vector<8x128xf32>
    %50 = arith.addf %48, %49 : vector<8x128xf32>
    %51 = arith.negf %50 : vector<8x128xf32>
    %52 = math.exp %51 : vector<8x128xf32>
    %cst_20 = arith.constant 1.000000e+00 : f32
    %53 = vector.broadcast %cst_20 : f32 to vector<8x128xf32>
    %54 = arith.addf %53, %52 : vector<8x128xf32>
    %55 = arith.divf %53, %54 : vector<8x128xf32>
    %56 = vector.extract_strided_slice %55 {offsets = [0, 0], sizes = [8, 32], strides = [1, 1]} : vector<8x128xf32> to vector<8x32xf32>
    %57 = vector.extract_strided_slice %55 {offsets = [0, 32], sizes = [8, 32], strides = [1, 1]} : vector<8x128xf32> to vector<8x32xf32>
    %58 = vector.extract_strided_slice %55 {offsets = [0, 64], sizes = [8, 32], strides = [1, 1]} : vector<8x128xf32> to vector<8x32xf32>
    %cst_21 = arith.constant 2.000000e+00 : f32
    %59 = vector.broadcast %cst_21 : f32 to vector<8x32xf32>
    %60 = arith.mulf %59, %58 : vector<8x32xf32>
    %cst_22 = arith.constant 1.000000e+00 : f32
    %61 = vector.broadcast %cst_22 : f32 to vector<8x32xf32>
    %62 = arith.subf %60, %61 : vector<8x32xf32>
    %63 = vector.extract_strided_slice %55 {offsets = [0, 96], sizes = [8, 32], strides = [1, 1]} : vector<8x128xf32> to vector<8x32xf32>
    %64 = arith.mulf %57, %45 : vector<8x32xf32>
    %65 = arith.mulf %56, %62 : vector<8x32xf32>
    %66 = arith.addf %64, %65 : vector<8x32xf32>
    %67 = math.tanh %66 : vector<8x32xf32>
    %68 = arith.mulf %63, %67 : vector<8x32xf32>
    %69 = vector.extract_strided_slice %27 {offsets = [16, 0], sizes = [8, 128], strides = [1, 1]} : vector<64x128xf32> to vector<8x128xf32>
    %cst_23 = arith.constant dense<0.000000e+00> : vector<8x128xf32>
    %70 = tpu.matmul %68, %23, %cst_23 {dimension_numbers = #tpu.dot_dimension_numbers<[1], [0], [0], [1], [0, 0, 1, 1], [], []>} : vector<8x32xf32>, vector<32x128xf32>, vector<8x128xf32> -> vector<8x128xf32>
    %71 = arith.addf %69, %70 : vector<8x128xf32>
    %72 = arith.negf %71 : vector<8x128xf32>
    %73 = math.exp %72 : vector<8x128xf32>
    %cst_24 = arith.constant 1.000000e+00 : f32
    %74 = vector.broadcast %cst_24 : f32 to vector<8x128xf32>
    %75 = arith.addf %74, %73 : vector<8x128xf32>
    %76 = arith.divf %74, %75 : vector<8x128xf32>
    %77 = vector.extract_strided_slice %76 {offsets = [0, 0], sizes = [8, 32], strides = [1, 1]} : vector<8x128xf32> to vector<8x32xf32>
    %78 = vector.extract_strided_slice %76 {offsets = [0, 32], sizes = [8, 32], strides = [1, 1]} : vector<8x128xf32> to vector<8x32xf32>
    %79 = vector.extract_strided_slice %76 {offsets = [0, 64], sizes = [8, 32], strides = [1, 1]} : vector<8x128xf32> to vector<8x32xf32>
    %cst_25 = arith.constant 2.000000e+00 : f32
    %80 = vector.broadcast %cst_25 : f32 to vector<8x32xf32>
    %81 = arith.mulf %80, %79 : vector<8x32xf32>
    %cst_26 = arith.constant 1.000000e+00 : f32
    %82 = vector.broadcast %cst_26 : f32 to vector<8x32xf32>
    %83 = arith.subf %81, %82 : vector<8x32xf32>
    %84 = vector.extract_strided_slice %76 {offsets = [0, 96], sizes = [8, 32], strides = [1, 1]} : vector<8x128xf32> to vector<8x32xf32>
    %85 = arith.mulf %78, %66 : vector<8x32xf32>
    %86 = arith.mulf %77, %83 : vector<8x32xf32>
    %87 = arith.addf %85, %86 : vector<8x32xf32>
    %88 = math.tanh %87 : vector<8x32xf32>
    %89 = arith.mulf %84, %88 : vector<8x32xf32>
    %90 = vector.extract_strided_slice %27 {offsets = [24, 0], sizes = [8, 128], strides = [1, 1]} : vector<64x128xf32> to vector<8x128xf32>
    %cst_27 = arith.constant dense<0.000000e+00> : vector<8x128xf32>
    %91 = tpu.matmul %89, %23, %cst_27 {dimension_numbers = #tpu.dot_dimension_numbers<[1], [0], [0], [1], [0, 0, 1, 1], [], []>} : vector<8x32xf32>, vector<32x128xf32>, vector<8x128xf32> -> vector<8x128xf32>
    %92 = arith.addf %90, %91 : vector<8x128xf32>
    %93 = arith.negf %92 : vector<8x128xf32>
    %94 = math.exp %93 : vector<8x128xf32>
    %cst_28 = arith.constant 1.000000e+00 : f32
    %95 = vector.broadcast %cst_28 : f32 to vector<8x128xf32>
    %96 = arith.addf %95, %94 : vector<8x128xf32>
    %97 = arith.divf %95, %96 : vector<8x128xf32>
    %98 = vector.extract_strided_slice %97 {offsets = [0, 0], sizes = [8, 32], strides = [1, 1]} : vector<8x128xf32> to vector<8x32xf32>
    %99 = vector.extract_strided_slice %97 {offsets = [0, 32], sizes = [8, 32], strides = [1, 1]} : vector<8x128xf32> to vector<8x32xf32>
    %100 = vector.extract_strided_slice %97 {offsets = [0, 64], sizes = [8, 32], strides = [1, 1]} : vector<8x128xf32> to vector<8x32xf32>
    %cst_29 = arith.constant 2.000000e+00 : f32
    %101 = vector.broadcast %cst_29 : f32 to vector<8x32xf32>
    %102 = arith.mulf %101, %100 : vector<8x32xf32>
    %cst_30 = arith.constant 1.000000e+00 : f32
    %103 = vector.broadcast %cst_30 : f32 to vector<8x32xf32>
    %104 = arith.subf %102, %103 : vector<8x32xf32>
    %105 = vector.extract_strided_slice %97 {offsets = [0, 96], sizes = [8, 32], strides = [1, 1]} : vector<8x128xf32> to vector<8x32xf32>
    %106 = arith.mulf %99, %87 : vector<8x32xf32>
    %107 = arith.mulf %98, %104 : vector<8x32xf32>
    %108 = arith.addf %106, %107 : vector<8x32xf32>
    %109 = math.tanh %108 : vector<8x32xf32>
    %110 = arith.mulf %105, %109 : vector<8x32xf32>
    %111 = vector.extract_strided_slice %27 {offsets = [32, 0], sizes = [8, 128], strides = [1, 1]} : vector<64x128xf32> to vector<8x128xf32>
    %cst_31 = arith.constant dense<0.000000e+00> : vector<8x128xf32>
    %112 = tpu.matmul %110, %23, %cst_31 {dimension_numbers = #tpu.dot_dimension_numbers<[1], [0], [0], [1], [0, 0, 1, 1], [], []>} : vector<8x32xf32>, vector<32x128xf32>, vector<8x128xf32> -> vector<8x128xf32>
    %113 = arith.addf %111, %112 : vector<8x128xf32>
    %114 = arith.negf %113 : vector<8x128xf32>
    %115 = math.exp %114 : vector<8x128xf32>
    %cst_32 = arith.constant 1.000000e+00 : f32
    %116 = vector.broadcast %cst_32 : f32 to vector<8x128xf32>
    %117 = arith.addf %116, %115 : vector<8x128xf32>
    %118 = arith.divf %116, %117 : vector<8x128xf32>
    %119 = vector.extract_strided_slice %118 {offsets = [0, 0], sizes = [8, 32], strides = [1, 1]} : vector<8x128xf32> to vector<8x32xf32>
    %120 = vector.extract_strided_slice %118 {offsets = [0, 32], sizes = [8, 32], strides = [1, 1]} : vector<8x128xf32> to vector<8x32xf32>
    %121 = vector.extract_strided_slice %118 {offsets = [0, 64], sizes = [8, 32], strides = [1, 1]} : vector<8x128xf32> to vector<8x32xf32>
    %cst_33 = arith.constant 2.000000e+00 : f32
    %122 = vector.broadcast %cst_33 : f32 to vector<8x32xf32>
    %123 = arith.mulf %122, %121 : vector<8x32xf32>
    %cst_34 = arith.constant 1.000000e+00 : f32
    %124 = vector.broadcast %cst_34 : f32 to vector<8x32xf32>
    %125 = arith.subf %123, %124 : vector<8x32xf32>
    %126 = vector.extract_strided_slice %118 {offsets = [0, 96], sizes = [8, 32], strides = [1, 1]} : vector<8x128xf32> to vector<8x32xf32>
    %127 = arith.mulf %120, %108 : vector<8x32xf32>
    %128 = arith.mulf %119, %125 : vector<8x32xf32>
    %129 = arith.addf %127, %128 : vector<8x32xf32>
    %130 = math.tanh %129 : vector<8x32xf32>
    %131 = arith.mulf %126, %130 : vector<8x32xf32>
    %132 = vector.extract_strided_slice %27 {offsets = [40, 0], sizes = [8, 128], strides = [1, 1]} : vector<64x128xf32> to vector<8x128xf32>
    %cst_35 = arith.constant dense<0.000000e+00> : vector<8x128xf32>
    %133 = tpu.matmul %131, %23, %cst_35 {dimension_numbers = #tpu.dot_dimension_numbers<[1], [0], [0], [1], [0, 0, 1, 1], [], []>} : vector<8x32xf32>, vector<32x128xf32>, vector<8x128xf32> -> vector<8x128xf32>
    %134 = arith.addf %132, %133 : vector<8x128xf32>
    %135 = arith.negf %134 : vector<8x128xf32>
    %136 = math.exp %135 : vector<8x128xf32>
    %cst_36 = arith.constant 1.000000e+00 : f32
    %137 = vector.broadcast %cst_36 : f32 to vector<8x128xf32>
    %138 = arith.addf %137, %136 : vector<8x128xf32>
    %139 = arith.divf %137, %138 : vector<8x128xf32>
    %140 = vector.extract_strided_slice %139 {offsets = [0, 0], sizes = [8, 32], strides = [1, 1]} : vector<8x128xf32> to vector<8x32xf32>
    %141 = vector.extract_strided_slice %139 {offsets = [0, 32], sizes = [8, 32], strides = [1, 1]} : vector<8x128xf32> to vector<8x32xf32>
    %142 = vector.extract_strided_slice %139 {offsets = [0, 64], sizes = [8, 32], strides = [1, 1]} : vector<8x128xf32> to vector<8x32xf32>
    %cst_37 = arith.constant 2.000000e+00 : f32
    %143 = vector.broadcast %cst_37 : f32 to vector<8x32xf32>
    %144 = arith.mulf %143, %142 : vector<8x32xf32>
    %cst_38 = arith.constant 1.000000e+00 : f32
    %145 = vector.broadcast %cst_38 : f32 to vector<8x32xf32>
    %146 = arith.subf %144, %145 : vector<8x32xf32>
    %147 = vector.extract_strided_slice %139 {offsets = [0, 96], sizes = [8, 32], strides = [1, 1]} : vector<8x128xf32> to vector<8x32xf32>
    %148 = arith.mulf %141, %129 : vector<8x32xf32>
    %149 = arith.mulf %140, %146 : vector<8x32xf32>
    %150 = arith.addf %148, %149 : vector<8x32xf32>
    %151 = math.tanh %150 : vector<8x32xf32>
    %152 = arith.mulf %147, %151 : vector<8x32xf32>
    %153 = vector.extract_strided_slice %27 {offsets = [48, 0], sizes = [8, 128], strides = [1, 1]} : vector<64x128xf32> to vector<8x128xf32>
    %cst_39 = arith.constant dense<0.000000e+00> : vector<8x128xf32>
    %154 = tpu.matmul %152, %23, %cst_39 {dimension_numbers = #tpu.dot_dimension_numbers<[1], [0], [0], [1], [0, 0, 1, 1], [], []>} : vector<8x32xf32>, vector<32x128xf32>, vector<8x128xf32> -> vector<8x128xf32>
    %155 = arith.addf %153, %154 : vector<8x128xf32>
    %156 = arith.negf %155 : vector<8x128xf32>
    %157 = math.exp %156 : vector<8x128xf32>
    %cst_40 = arith.constant 1.000000e+00 : f32
    %158 = vector.broadcast %cst_40 : f32 to vector<8x128xf32>
    %159 = arith.addf %158, %157 : vector<8x128xf32>
    %160 = arith.divf %158, %159 : vector<8x128xf32>
    %161 = vector.extract_strided_slice %160 {offsets = [0, 0], sizes = [8, 32], strides = [1, 1]} : vector<8x128xf32> to vector<8x32xf32>
    %162 = vector.extract_strided_slice %160 {offsets = [0, 32], sizes = [8, 32], strides = [1, 1]} : vector<8x128xf32> to vector<8x32xf32>
    %163 = vector.extract_strided_slice %160 {offsets = [0, 64], sizes = [8, 32], strides = [1, 1]} : vector<8x128xf32> to vector<8x32xf32>
    %cst_41 = arith.constant 2.000000e+00 : f32
    %164 = vector.broadcast %cst_41 : f32 to vector<8x32xf32>
    %165 = arith.mulf %164, %163 : vector<8x32xf32>
    %cst_42 = arith.constant 1.000000e+00 : f32
    %166 = vector.broadcast %cst_42 : f32 to vector<8x32xf32>
    %167 = arith.subf %165, %166 : vector<8x32xf32>
    %168 = vector.extract_strided_slice %160 {offsets = [0, 96], sizes = [8, 32], strides = [1, 1]} : vector<8x128xf32> to vector<8x32xf32>
    %169 = arith.mulf %162, %150 : vector<8x32xf32>
    %170 = arith.mulf %161, %167 : vector<8x32xf32>
    %171 = arith.addf %169, %170 : vector<8x32xf32>
    %172 = math.tanh %171 : vector<8x32xf32>
    %173 = arith.mulf %168, %172 : vector<8x32xf32>
    %174 = vector.extract_strided_slice %27 {offsets = [56, 0], sizes = [8, 128], strides = [1, 1]} : vector<64x128xf32> to vector<8x128xf32>
    %cst_43 = arith.constant dense<0.000000e+00> : vector<8x128xf32>
    %175 = tpu.matmul %173, %23, %cst_43 {dimension_numbers = #tpu.dot_dimension_numbers<[1], [0], [0], [1], [0, 0, 1, 1], [], []>} : vector<8x32xf32>, vector<32x128xf32>, vector<8x128xf32> -> vector<8x128xf32>
    %176 = arith.addf %174, %175 : vector<8x128xf32>
    %177 = arith.negf %176 : vector<8x128xf32>
    %178 = math.exp %177 : vector<8x128xf32>
    %cst_44 = arith.constant 1.000000e+00 : f32
    %179 = vector.broadcast %cst_44 : f32 to vector<8x128xf32>
    %180 = arith.addf %179, %178 : vector<8x128xf32>
    %181 = arith.divf %179, %180 : vector<8x128xf32>
    %182 = vector.extract_strided_slice %181 {offsets = [0, 0], sizes = [8, 32], strides = [1, 1]} : vector<8x128xf32> to vector<8x32xf32>
    %183 = vector.extract_strided_slice %181 {offsets = [0, 32], sizes = [8, 32], strides = [1, 1]} : vector<8x128xf32> to vector<8x32xf32>
    %184 = vector.extract_strided_slice %181 {offsets = [0, 64], sizes = [8, 32], strides = [1, 1]} : vector<8x128xf32> to vector<8x32xf32>
    %cst_45 = arith.constant 2.000000e+00 : f32
    %185 = vector.broadcast %cst_45 : f32 to vector<8x32xf32>
    %186 = arith.mulf %185, %184 : vector<8x32xf32>
    %cst_46 = arith.constant 1.000000e+00 : f32
    %187 = vector.broadcast %cst_46 : f32 to vector<8x32xf32>
    %188 = arith.subf %186, %187 : vector<8x32xf32>
    %189 = vector.extract_strided_slice %181 {offsets = [0, 96], sizes = [8, 32], strides = [1, 1]} : vector<8x128xf32> to vector<8x32xf32>
    %190 = arith.mulf %183, %171 : vector<8x32xf32>
    %191 = arith.mulf %182, %188 : vector<8x32xf32>
    %192 = arith.addf %190, %191 : vector<8x32xf32>
    %193 = math.tanh %192 : vector<8x32xf32>
    %194 = arith.mulf %189, %193 : vector<8x32xf32>
    %cst_47 = arith.constant dense<0.000000e+00> : vector<64x2xf32>
    %195 = tpu.matmul %5, %1, %cst_47 {dimension_numbers = #tpu.dot_dimension_numbers<[1], [0], [0], [1], [0, 0, 1, 1], [], []>} : vector<64x8xf32>, vector<8x2xf32>, vector<64x2xf32> -> vector<64x2xf32>
    %cst_48 = arith.constant dense<0.000000e+00> : vector<64x32xf32>
    %196 = tpu.matmul %6, %194, %cst_48 {dimension_numbers = #tpu.dot_dimension_numbers<[1], [0], [0], [1], [0, 0, 1, 1], [], []>} : vector<64x8xf32>, vector<8x32xf32>, vector<64x32xf32> -> vector<64x32xf32>
    %c152 = arith.constant 152 : index
    %c0_49 = arith.constant 0 : index
    %197 = vector.load %arg5[%c152, %c0_49] : memref<200x64xf32, #tpu.memory_space<vmem>>, vector<2x16xf32>
    %c154 = arith.constant 154 : index
    %c0_50 = arith.constant 0 : index
    %198 = vector.load %arg5[%c154, %c0_50] : memref<200x64xf32, #tpu.memory_space<vmem>>, vector<1x16xf32>
    %199 = vector.extract_strided_slice %195 {offsets = [0, 0], sizes = [64, 1], strides = [1, 1]} : vector<64x2xf32> to vector<64x1xf32>
    %200 = vector.extract_strided_slice %197 {offsets = [0, 0], sizes = [1, 16], strides = [1, 1]} : vector<2x16xf32> to vector<1x16xf32>
    %201 = vector.broadcast %199 : vector<64x1xf32> to vector<64x16xf32>
    %202 = vector.broadcast %200 : vector<1x16xf32> to vector<64x16xf32>
    %203 = arith.mulf %201, %202 : vector<64x16xf32>
    %204 = vector.extract_strided_slice %195 {offsets = [0, 1], sizes = [64, 1], strides = [1, 1]} : vector<64x2xf32> to vector<64x1xf32>
    %205 = vector.extract_strided_slice %197 {offsets = [1, 0], sizes = [1, 16], strides = [1, 1]} : vector<2x16xf32> to vector<1x16xf32>
    %206 = vector.broadcast %204 : vector<64x1xf32> to vector<64x16xf32>
    %207 = vector.broadcast %205 : vector<1x16xf32> to vector<64x16xf32>
    %208 = arith.mulf %206, %207 : vector<64x16xf32>
    %209 = arith.addf %203, %208 : vector<64x16xf32>
    %210 = vector.broadcast %198 : vector<1x16xf32> to vector<64x16xf32>
    %211 = arith.addf %209, %210 : vector<64x16xf32>
    %c0_51 = arith.constant 0 : index
    %c0_52 = arith.constant 0 : index
    %212 = vector.load %arg3[%c0_51, %c0_52] : memref<56x512xf32, #tpu.memory_space<vmem>>, vector<16x512xf32>
    %c16_53 = arith.constant 16 : index
    %c0_54 = arith.constant 0 : index
    %213 = vector.load %arg3[%c16_53, %c0_54] : memref<56x512xf32, #tpu.memory_space<vmem>>, vector<32x512xf32>
    %c48 = arith.constant 48 : index
    %c0_55 = arith.constant 0 : index
    %214 = vector.load %arg3[%c48, %c0_55] : memref<56x512xf32, #tpu.memory_space<vmem>>, vector<1x512xf32>
    %cst_56 = arith.constant dense<0.000000e+00> : vector<64x512xf32>
    %215 = tpu.matmul %211, %212, %cst_56 {dimension_numbers = #tpu.dot_dimension_numbers<[1], [0], [0], [1], [0, 0, 1, 1], [], []>} : vector<64x16xf32>, vector<16x512xf32>, vector<64x512xf32> -> vector<64x512xf32>
    %cst_57 = arith.constant dense<0.000000e+00> : vector<64x512xf32>
    %216 = tpu.matmul %196, %213, %cst_57 {dimension_numbers = #tpu.dot_dimension_numbers<[1], [0], [0], [1], [0, 0, 1, 1], [], []>} : vector<64x32xf32>, vector<32x512xf32>, vector<64x512xf32> -> vector<64x512xf32>
    %217 = arith.addf %215, %216 : vector<64x512xf32>
    %218 = vector.broadcast %214 : vector<1x512xf32> to vector<64x512xf32>
    %219 = arith.addf %217, %218 : vector<64x512xf32>
    %cst_58 = arith.constant 0.000000e+00 : f32
    %220 = vector.broadcast %cst_58 : f32 to vector<64x512xf32>
    %221 = arith.cmpf ogt, %219, %220 : vector<64x512xf32>
    %cst_59 = arith.constant 0.00999999977 : f32
    %222 = vector.broadcast %cst_59 : f32 to vector<64x512xf32>
    %223 = arith.mulf %222, %219 : vector<64x512xf32>
    %224 = arith.select %221, %219, %223 : vector<64x512xi1>, vector<64x512xf32>
    %c0_60 = arith.constant 0 : index
    %c0_61 = arith.constant 0 : index
    %225 = vector.load %arg4[%c0_60, %c0_61] : memref<520x32xf32, #tpu.memory_space<vmem>>, vector<512x32xf32>
    %c512 = arith.constant 512 : index
    %c0_62 = arith.constant 0 : index
    %226 = vector.load %arg4[%c512, %c0_62] : memref<520x32xf32, #tpu.memory_space<vmem>>, vector<1x32xf32>
    %cst_63 = arith.constant dense<0.000000e+00> : vector<64x32xf32>
    %227 = tpu.matmul %224, %225, %cst_63 {dimension_numbers = #tpu.dot_dimension_numbers<[1], [0], [0], [1], [0, 0, 1, 1], [], []>} : vector<64x512xf32>, vector<512x32xf32>, vector<64x32xf32> -> vector<64x32xf32>
    %228 = vector.broadcast %226 : vector<1x32xf32> to vector<64x32xf32>
    %229 = arith.addf %227, %228 : vector<64x32xf32>
    %cst_64 = arith.constant 0.000000e+00 : f32
    %230 = vector.broadcast %cst_64 : f32 to vector<64x32xf32>
    %231 = arith.cmpf ogt, %229, %230 : vector<64x32xf32>
    %cst_65 = arith.constant 0.00999999977 : f32
    %232 = vector.broadcast %cst_65 : f32 to vector<64x32xf32>
    %233 = arith.mulf %232, %229 : vector<64x32xf32>
    %234 = arith.select %231, %229, %233 : vector<64x32xi1>, vector<64x32xf32>
    %cst_66 = arith.constant 0.000000e+00 : f32
    %235 = vector.broadcast %cst_66 : f32 to vector<64x1xf32>
    %236 = arith.cmpf ogt, %4, %235 : vector<64x1xf32>
    %cst_67 = arith.constant -1.000000e+30 : f32
    %237 = vector.shape_cast %236 : vector<64x1xi1> to vector<64x1xi1>
    %238 = vector.broadcast %237 : vector<64x1xi1> to vector<64x32xi1>
    %239 = vector.broadcast %cst_67 : f32 to vector<64x32xf32>
    %240 = arith.select %238, %234, %239 : vector<64x32xi1>, vector<64x32xf32>
    %241 = vector.shape_cast %240 : vector<64x32xf32> to vector<8x8x32xf32>
    %cst_68 = arith.constant dense<0xFF800000> : vector<8x32xf32>
    %242 = vector.multi_reduction <maximumf>, %241, %cst_68 [1] : vector<8x8x32xf32> to vector<8x32xf32>
    %243 = vector.broadcast %3 : vector<8x1xf32> to vector<8x32xf32>
    %244 = arith.mulf %242, %243 : vector<8x32xf32>
    %c0_69 = arith.constant 0 : index
    %c0_70 = arith.constant 0 : index
    %245 = vector.load %arg5[%c0_69, %c0_70] : memref<200x64xf32, #tpu.memory_space<vmem>>, vector<32x64xf32>
    %c32 = arith.constant 32 : index
    %c0_71 = arith.constant 0 : index
    %246 = vector.load %arg5[%c32, %c0_71] : memref<200x64xf32, #tpu.memory_space<vmem>>, vector<32x64xf32>
    %c64_72 = arith.constant 64 : index
    %c0_73 = arith.constant 0 : index
    %247 = vector.load %arg5[%c64_72, %c0_73] : memref<200x64xf32, #tpu.memory_space<vmem>>, vector<1x64xf32>
    %cst_74 = arith.constant dense<0.000000e+00> : vector<8x64xf32>
    %248 = tpu.matmul %194, %245, %cst_74 {dimension_numbers = #tpu.dot_dimension_numbers<[1], [0], [0], [1], [0, 0, 1, 1], [], []>} : vector<8x32xf32>, vector<32x64xf32>, vector<8x64xf32> -> vector<8x64xf32>
    %cst_75 = arith.constant dense<0.000000e+00> : vector<8x64xf32>
    %249 = tpu.matmul %244, %246, %cst_75 {dimension_numbers = #tpu.dot_dimension_numbers<[1], [0], [0], [1], [0, 0, 1, 1], [], []>} : vector<8x32xf32>, vector<32x64xf32>, vector<8x64xf32> -> vector<8x64xf32>
    %250 = arith.addf %248, %249 : vector<8x64xf32>
    %251 = vector.broadcast %247 : vector<1x64xf32> to vector<8x64xf32>
    %252 = arith.addf %250, %251 : vector<8x64xf32>
    %cst_76 = arith.constant 0.000000e+00 : f32
    %253 = vector.broadcast %cst_76 : f32 to vector<8x64xf32>
    %254 = arith.cmpf ogt, %252, %253 : vector<8x64xf32>
    %cst_77 = arith.constant 0.00999999977 : f32
    %255 = vector.broadcast %cst_77 : f32 to vector<8x64xf32>
    %256 = arith.mulf %255, %252 : vector<8x64xf32>
    %257 = arith.select %254, %252, %256 : vector<8x64xi1>, vector<8x64xf32>
    %c72_78 = arith.constant 72 : index
    %c0_79 = arith.constant 0 : index
    %258 = vector.load %arg5[%c72_78, %c0_79] : memref<200x64xf32, #tpu.memory_space<vmem>>, vector<64x24xf32>
    %c136 = arith.constant 136 : index
    %c0_80 = arith.constant 0 : index
    %259 = vector.load %arg5[%c136, %c0_80] : memref<200x64xf32, #tpu.memory_space<vmem>>, vector<1x24xf32>
    %cst_81 = arith.constant dense<0.000000e+00> : vector<8x24xf32>
    %260 = tpu.matmul %257, %258, %cst_81 {dimension_numbers = #tpu.dot_dimension_numbers<[1], [0], [0], [1], [0, 0, 1, 1], [], []>} : vector<8x64xf32>, vector<64x24xf32>, vector<8x24xf32> -> vector<8x24xf32>
    %261 = vector.broadcast %259 : vector<1x24xf32> to vector<8x24xf32>
    %262 = arith.addf %260, %261 : vector<8x24xf32>
    %cst_82 = arith.constant 0.000000e+00 : f32
    %263 = vector.broadcast %cst_82 : f32 to vector<8x24xf32>
    %264 = arith.cmpf ogt, %262, %263 : vector<8x24xf32>
    %cst_83 = arith.constant 0.00999999977 : f32
    %265 = vector.broadcast %cst_83 : f32 to vector<8x24xf32>
    %266 = arith.mulf %265, %262 : vector<8x24xf32>
    %267 = arith.select %264, %262, %266 : vector<8x24xi1>, vector<8x24xf32>
    %268 = tpu.concatenate %267, %2 in 1 : vector<8x24xf32>, vector<8x8xf32> -> vector<8x32xf32>
    %cst_84 = arith.constant 0.000000e+00 : f32
    %269 = vector.broadcast %cst_84 : f32 to vector<8x32xf32>
    %c48_85 = arith.constant 48 : index
    %c0_86 = arith.constant 0 : index
    %270 = vector.load %arg2[%c48_85, %c0_86] : memref<120x128xf32, #tpu.memory_space<vmem>>, vector<32x128xf32>
    %c80_87 = arith.constant 80 : index
    %c0_88 = arith.constant 0 : index
    %271 = vector.load %arg2[%c80_87, %c0_88] : memref<120x128xf32, #tpu.memory_space<vmem>>, vector<32x128xf32>
    %c113 = arith.constant 113 : index
    %c0_89 = arith.constant 0 : index
    %272 = vector.load %arg2[%c113, %c0_89] : memref<120x128xf32, #tpu.memory_space<vmem>>, vector<1x128xf32>
    %c114 = arith.constant 114 : index
    %c0_90 = arith.constant 0 : index
    %273 = vector.load %arg2[%c114, %c0_90] : memref<120x128xf32, #tpu.memory_space<vmem>>, vector<1x128xf32>
    %c115 = arith.constant 115 : index
    %c0_91 = arith.constant 0 : index
    %274 = vector.load %arg2[%c115, %c0_91] : memref<120x128xf32, #tpu.memory_space<vmem>>, vector<2x128xf32>
    %275 = vector.extract_strided_slice %0 {offsets = [56, 0], sizes = [8, 2], strides = [1, 1]} : vector<64x2xf32> to vector<8x2xf32>
    %276 = vector.extract_strided_slice %275 {offsets = [0, 0], sizes = [8, 1], strides = [1, 1]} : vector<8x2xf32> to vector<8x1xf32>
    %277 = vector.extract_strided_slice %274 {offsets = [0, 0], sizes = [1, 128], strides = [1, 1]} : vector<2x128xf32> to vector<1x128xf32>
    %278 = vector.broadcast %276 : vector<8x1xf32> to vector<8x128xf32>
    %279 = vector.broadcast %277 : vector<1x128xf32> to vector<8x128xf32>
    %280 = arith.mulf %278, %279 : vector<8x128xf32>
    %281 = vector.extract_strided_slice %275 {offsets = [0, 1], sizes = [8, 1], strides = [1, 1]} : vector<8x2xf32> to vector<8x1xf32>
    %282 = vector.extract_strided_slice %274 {offsets = [1, 0], sizes = [1, 128], strides = [1, 1]} : vector<2x128xf32> to vector<1x128xf32>
    %283 = vector.broadcast %281 : vector<8x1xf32> to vector<8x128xf32>
    %284 = vector.broadcast %282 : vector<1x128xf32> to vector<8x128xf32>
    %285 = arith.mulf %283, %284 : vector<8x128xf32>
    %286 = arith.addf %280, %285 : vector<8x128xf32>
    %287 = vector.broadcast %272 : vector<1x128xf32> to vector<8x128xf32>
    %288 = arith.addf %286, %287 : vector<8x128xf32>
    %cst_92 = arith.constant dense<0.000000e+00> : vector<8x128xf32>
    %289 = tpu.matmul %268, %270, %cst_92 {dimension_numbers = #tpu.dot_dimension_numbers<[1], [0], [0], [1], [0, 0, 1, 1], [], []>} : vector<8x32xf32>, vector<32x128xf32>, vector<8x128xf32> -> vector<8x128xf32>
    %290 = arith.addf %288, %289 : vector<8x128xf32>
    %291 = arith.negf %290 : vector<8x128xf32>
    %292 = math.exp %291 : vector<8x128xf32>
    %cst_93 = arith.constant 1.000000e+00 : f32
    %293 = vector.broadcast %cst_93 : f32 to vector<8x128xf32>
    %294 = arith.addf %293, %292 : vector<8x128xf32>
    %295 = arith.divf %293, %294 : vector<8x128xf32>
    %296 = vector.extract_strided_slice %295 {offsets = [0, 0], sizes = [8, 32], strides = [1, 1]} : vector<8x128xf32> to vector<8x32xf32>
    %297 = vector.extract_strided_slice %295 {offsets = [0, 32], sizes = [8, 32], strides = [1, 1]} : vector<8x128xf32> to vector<8x32xf32>
    %298 = vector.extract_strided_slice %295 {offsets = [0, 64], sizes = [8, 32], strides = [1, 1]} : vector<8x128xf32> to vector<8x32xf32>
    %cst_94 = arith.constant 2.000000e+00 : f32
    %299 = vector.broadcast %cst_94 : f32 to vector<8x32xf32>
    %300 = arith.mulf %299, %298 : vector<8x32xf32>
    %cst_95 = arith.constant 1.000000e+00 : f32
    %301 = vector.broadcast %cst_95 : f32 to vector<8x32xf32>
    %302 = arith.subf %300, %301 : vector<8x32xf32>
    %303 = vector.extract_strided_slice %295 {offsets = [0, 96], sizes = [8, 32], strides = [1, 1]} : vector<8x128xf32> to vector<8x32xf32>
    %304 = arith.mulf %297, %269 : vector<8x32xf32>
    %305 = arith.mulf %296, %302 : vector<8x32xf32>
    %306 = arith.addf %304, %305 : vector<8x32xf32>
    %307 = math.tanh %306 : vector<8x32xf32>
    %308 = arith.mulf %303, %307 : vector<8x32xf32>
    %cst_96 = arith.constant dense<0.000000e+00> : vector<8x128xf32>
    %309 = tpu.matmul %308, %271, %cst_96 {dimension_numbers = #tpu.dot_dimension_numbers<[1], [0], [0], [1], [0, 0, 1, 1], [], []>} : vector<8x32xf32>, vector<32x128xf32>, vector<8x128xf32> -> vector<8x128xf32>
    %310 = vector.broadcast %273 : vector<1x128xf32> to vector<8x128xf32>
    %311 = arith.addf %309, %310 : vector<8x128xf32>
    %312 = arith.negf %311 : vector<8x128xf32>
    %313 = math.exp %312 : vector<8x128xf32>
    %cst_97 = arith.constant 1.000000e+00 : f32
    %314 = vector.broadcast %cst_97 : f32 to vector<8x128xf32>
    %315 = arith.addf %314, %313 : vector<8x128xf32>
    %316 = arith.divf %314, %315 : vector<8x128xf32>
    %317 = vector.extract_strided_slice %316 {offsets = [0, 0], sizes = [8, 32], strides = [1, 1]} : vector<8x128xf32> to vector<8x32xf32>
    %318 = vector.extract_strided_slice %316 {offsets = [0, 32], sizes = [8, 32], strides = [1, 1]} : vector<8x128xf32> to vector<8x32xf32>
    %319 = vector.extract_strided_slice %316 {offsets = [0, 64], sizes = [8, 32], strides = [1, 1]} : vector<8x128xf32> to vector<8x32xf32>
    %cst_98 = arith.constant 2.000000e+00 : f32
    %320 = vector.broadcast %cst_98 : f32 to vector<8x32xf32>
    %321 = arith.mulf %320, %319 : vector<8x32xf32>
    %cst_99 = arith.constant 1.000000e+00 : f32
    %322 = vector.broadcast %cst_99 : f32 to vector<8x32xf32>
    %323 = arith.subf %321, %322 : vector<8x32xf32>
    %324 = vector.extract_strided_slice %316 {offsets = [0, 96], sizes = [8, 32], strides = [1, 1]} : vector<8x128xf32> to vector<8x32xf32>
    %325 = arith.mulf %318, %306 : vector<8x32xf32>
    %326 = arith.mulf %317, %323 : vector<8x32xf32>
    %327 = arith.addf %325, %326 : vector<8x32xf32>
    %328 = math.tanh %327 : vector<8x32xf32>
    %329 = arith.mulf %324, %328 : vector<8x32xf32>
    %cst_100 = arith.constant dense<0.000000e+00> : vector<8x128xf32>
    %330 = tpu.matmul %329, %271, %cst_100 {dimension_numbers = #tpu.dot_dimension_numbers<[1], [0], [0], [1], [0, 0, 1, 1], [], []>} : vector<8x32xf32>, vector<32x128xf32>, vector<8x128xf32> -> vector<8x128xf32>
    %331 = vector.broadcast %273 : vector<1x128xf32> to vector<8x128xf32>
    %332 = arith.addf %330, %331 : vector<8x128xf32>
    %333 = arith.negf %332 : vector<8x128xf32>
    %334 = math.exp %333 : vector<8x128xf32>
    %cst_101 = arith.constant 1.000000e+00 : f32
    %335 = vector.broadcast %cst_101 : f32 to vector<8x128xf32>
    %336 = arith.addf %335, %334 : vector<8x128xf32>
    %337 = arith.divf %335, %336 : vector<8x128xf32>
    %338 = vector.extract_strided_slice %337 {offsets = [0, 0], sizes = [8, 32], strides = [1, 1]} : vector<8x128xf32> to vector<8x32xf32>
    %339 = vector.extract_strided_slice %337 {offsets = [0, 32], sizes = [8, 32], strides = [1, 1]} : vector<8x128xf32> to vector<8x32xf32>
    %340 = vector.extract_strided_slice %337 {offsets = [0, 64], sizes = [8, 32], strides = [1, 1]} : vector<8x128xf32> to vector<8x32xf32>
    %cst_102 = arith.constant 2.000000e+00 : f32
    %341 = vector.broadcast %cst_102 : f32 to vector<8x32xf32>
    %342 = arith.mulf %341, %340 : vector<8x32xf32>
    %cst_103 = arith.constant 1.000000e+00 : f32
    %343 = vector.broadcast %cst_103 : f32 to vector<8x32xf32>
    %344 = arith.subf %342, %343 : vector<8x32xf32>
    %345 = vector.extract_strided_slice %337 {offsets = [0, 96], sizes = [8, 32], strides = [1, 1]} : vector<8x128xf32> to vector<8x32xf32>
    %346 = arith.mulf %339, %327 : vector<8x32xf32>
    %347 = arith.mulf %338, %344 : vector<8x32xf32>
    %348 = arith.addf %346, %347 : vector<8x32xf32>
    %349 = math.tanh %348 : vector<8x32xf32>
    %350 = arith.mulf %345, %349 : vector<8x32xf32>
    %cst_104 = arith.constant dense<0.000000e+00> : vector<8x128xf32>
    %351 = tpu.matmul %350, %271, %cst_104 {dimension_numbers = #tpu.dot_dimension_numbers<[1], [0], [0], [1], [0, 0, 1, 1], [], []>} : vector<8x32xf32>, vector<32x128xf32>, vector<8x128xf32> -> vector<8x128xf32>
    %352 = vector.broadcast %273 : vector<1x128xf32> to vector<8x128xf32>
    %353 = arith.addf %351, %352 : vector<8x128xf32>
    %354 = arith.negf %353 : vector<8x128xf32>
    %355 = math.exp %354 : vector<8x128xf32>
    %cst_105 = arith.constant 1.000000e+00 : f32
    %356 = vector.broadcast %cst_105 : f32 to vector<8x128xf32>
    %357 = arith.addf %356, %355 : vector<8x128xf32>
    %358 = arith.divf %356, %357 : vector<8x128xf32>
    %359 = vector.extract_strided_slice %358 {offsets = [0, 0], sizes = [8, 32], strides = [1, 1]} : vector<8x128xf32> to vector<8x32xf32>
    %360 = vector.extract_strided_slice %358 {offsets = [0, 32], sizes = [8, 32], strides = [1, 1]} : vector<8x128xf32> to vector<8x32xf32>
    %361 = vector.extract_strided_slice %358 {offsets = [0, 64], sizes = [8, 32], strides = [1, 1]} : vector<8x128xf32> to vector<8x32xf32>
    %cst_106 = arith.constant 2.000000e+00 : f32
    %362 = vector.broadcast %cst_106 : f32 to vector<8x32xf32>
    %363 = arith.mulf %362, %361 : vector<8x32xf32>
    %cst_107 = arith.constant 1.000000e+00 : f32
    %364 = vector.broadcast %cst_107 : f32 to vector<8x32xf32>
    %365 = arith.subf %363, %364 : vector<8x32xf32>
    %366 = vector.extract_strided_slice %358 {offsets = [0, 96], sizes = [8, 32], strides = [1, 1]} : vector<8x128xf32> to vector<8x32xf32>
    %367 = arith.mulf %360, %348 : vector<8x32xf32>
    %368 = arith.mulf %359, %365 : vector<8x32xf32>
    %369 = arith.addf %367, %368 : vector<8x32xf32>
    %370 = math.tanh %369 : vector<8x32xf32>
    %371 = arith.mulf %366, %370 : vector<8x32xf32>
    %cst_108 = arith.constant dense<0.000000e+00> : vector<8x128xf32>
    %372 = tpu.matmul %371, %271, %cst_108 {dimension_numbers = #tpu.dot_dimension_numbers<[1], [0], [0], [1], [0, 0, 1, 1], [], []>} : vector<8x32xf32>, vector<32x128xf32>, vector<8x128xf32> -> vector<8x128xf32>
    %373 = vector.broadcast %273 : vector<1x128xf32> to vector<8x128xf32>
    %374 = arith.addf %372, %373 : vector<8x128xf32>
    %375 = arith.negf %374 : vector<8x128xf32>
    %376 = math.exp %375 : vector<8x128xf32>
    %cst_109 = arith.constant 1.000000e+00 : f32
    %377 = vector.broadcast %cst_109 : f32 to vector<8x128xf32>
    %378 = arith.addf %377, %376 : vector<8x128xf32>
    %379 = arith.divf %377, %378 : vector<8x128xf32>
    %380 = vector.extract_strided_slice %379 {offsets = [0, 0], sizes = [8, 32], strides = [1, 1]} : vector<8x128xf32> to vector<8x32xf32>
    %381 = vector.extract_strided_slice %379 {offsets = [0, 32], sizes = [8, 32], strides = [1, 1]} : vector<8x128xf32> to vector<8x32xf32>
    %382 = vector.extract_strided_slice %379 {offsets = [0, 64], sizes = [8, 32], strides = [1, 1]} : vector<8x128xf32> to vector<8x32xf32>
    %cst_110 = arith.constant 2.000000e+00 : f32
    %383 = vector.broadcast %cst_110 : f32 to vector<8x32xf32>
    %384 = arith.mulf %383, %382 : vector<8x32xf32>
    %cst_111 = arith.constant 1.000000e+00 : f32
    %385 = vector.broadcast %cst_111 : f32 to vector<8x32xf32>
    %386 = arith.subf %384, %385 : vector<8x32xf32>
    %387 = vector.extract_strided_slice %379 {offsets = [0, 96], sizes = [8, 32], strides = [1, 1]} : vector<8x128xf32> to vector<8x32xf32>
    %388 = arith.mulf %381, %369 : vector<8x32xf32>
    %389 = arith.mulf %380, %386 : vector<8x32xf32>
    %390 = arith.addf %388, %389 : vector<8x32xf32>
    %391 = math.tanh %390 : vector<8x32xf32>
    %392 = arith.mulf %387, %391 : vector<8x32xf32>
    %cst_112 = arith.constant dense<0.000000e+00> : vector<8x128xf32>
    %393 = tpu.matmul %392, %271, %cst_112 {dimension_numbers = #tpu.dot_dimension_numbers<[1], [0], [0], [1], [0, 0, 1, 1], [], []>} : vector<8x32xf32>, vector<32x128xf32>, vector<8x128xf32> -> vector<8x128xf32>
    %394 = vector.broadcast %273 : vector<1x128xf32> to vector<8x128xf32>
    %395 = arith.addf %393, %394 : vector<8x128xf32>
    %396 = arith.negf %395 : vector<8x128xf32>
    %397 = math.exp %396 : vector<8x128xf32>
    %cst_113 = arith.constant 1.000000e+00 : f32
    %398 = vector.broadcast %cst_113 : f32 to vector<8x128xf32>
    %399 = arith.addf %398, %397 : vector<8x128xf32>
    %400 = arith.divf %398, %399 : vector<8x128xf32>
    %401 = vector.extract_strided_slice %400 {offsets = [0, 0], sizes = [8, 32], strides = [1, 1]} : vector<8x128xf32> to vector<8x32xf32>
    %402 = vector.extract_strided_slice %400 {offsets = [0, 32], sizes = [8, 32], strides = [1, 1]} : vector<8x128xf32> to vector<8x32xf32>
    %403 = vector.extract_strided_slice %400 {offsets = [0, 64], sizes = [8, 32], strides = [1, 1]} : vector<8x128xf32> to vector<8x32xf32>
    %cst_114 = arith.constant 2.000000e+00 : f32
    %404 = vector.broadcast %cst_114 : f32 to vector<8x32xf32>
    %405 = arith.mulf %404, %403 : vector<8x32xf32>
    %cst_115 = arith.constant 1.000000e+00 : f32
    %406 = vector.broadcast %cst_115 : f32 to vector<8x32xf32>
    %407 = arith.subf %405, %406 : vector<8x32xf32>
    %408 = vector.extract_strided_slice %400 {offsets = [0, 96], sizes = [8, 32], strides = [1, 1]} : vector<8x128xf32> to vector<8x32xf32>
    %409 = arith.mulf %402, %390 : vector<8x32xf32>
    %410 = arith.mulf %401, %407 : vector<8x32xf32>
    %411 = arith.addf %409, %410 : vector<8x32xf32>
    %412 = math.tanh %411 : vector<8x32xf32>
    %413 = arith.mulf %408, %412 : vector<8x32xf32>
    %cst_116 = arith.constant dense<0.000000e+00> : vector<8x128xf32>
    %414 = tpu.matmul %413, %271, %cst_116 {dimension_numbers = #tpu.dot_dimension_numbers<[1], [0], [0], [1], [0, 0, 1, 1], [], []>} : vector<8x32xf32>, vector<32x128xf32>, vector<8x128xf32> -> vector<8x128xf32>
    %415 = vector.broadcast %273 : vector<1x128xf32> to vector<8x128xf32>
    %416 = arith.addf %414, %415 : vector<8x128xf32>
    %417 = arith.negf %416 : vector<8x128xf32>
    %418 = math.exp %417 : vector<8x128xf32>
    %cst_117 = arith.constant 1.000000e+00 : f32
    %419 = vector.broadcast %cst_117 : f32 to vector<8x128xf32>
    %420 = arith.addf %419, %418 : vector<8x128xf32>
    %421 = arith.divf %419, %420 : vector<8x128xf32>
    %422 = vector.extract_strided_slice %421 {offsets = [0, 0], sizes = [8, 32], strides = [1, 1]} : vector<8x128xf32> to vector<8x32xf32>
    %423 = vector.extract_strided_slice %421 {offsets = [0, 32], sizes = [8, 32], strides = [1, 1]} : vector<8x128xf32> to vector<8x32xf32>
    %424 = vector.extract_strided_slice %421 {offsets = [0, 64], sizes = [8, 32], strides = [1, 1]} : vector<8x128xf32> to vector<8x32xf32>
    %cst_118 = arith.constant 2.000000e+00 : f32
    %425 = vector.broadcast %cst_118 : f32 to vector<8x32xf32>
    %426 = arith.mulf %425, %424 : vector<8x32xf32>
    %cst_119 = arith.constant 1.000000e+00 : f32
    %427 = vector.broadcast %cst_119 : f32 to vector<8x32xf32>
    %428 = arith.subf %426, %427 : vector<8x32xf32>
    %429 = vector.extract_strided_slice %421 {offsets = [0, 96], sizes = [8, 32], strides = [1, 1]} : vector<8x128xf32> to vector<8x32xf32>
    %430 = arith.mulf %423, %411 : vector<8x32xf32>
    %431 = arith.mulf %422, %428 : vector<8x32xf32>
    %432 = arith.addf %430, %431 : vector<8x32xf32>
    %433 = math.tanh %432 : vector<8x32xf32>
    %434 = arith.mulf %429, %433 : vector<8x32xf32>
    %cst_120 = arith.constant dense<0.000000e+00> : vector<8x128xf32>
    %435 = tpu.matmul %434, %271, %cst_120 {dimension_numbers = #tpu.dot_dimension_numbers<[1], [0], [0], [1], [0, 0, 1, 1], [], []>} : vector<8x32xf32>, vector<32x128xf32>, vector<8x128xf32> -> vector<8x128xf32>
    %436 = vector.broadcast %273 : vector<1x128xf32> to vector<8x128xf32>
    %437 = arith.addf %435, %436 : vector<8x128xf32>
    %438 = arith.negf %437 : vector<8x128xf32>
    %439 = math.exp %438 : vector<8x128xf32>
    %cst_121 = arith.constant 1.000000e+00 : f32
    %440 = vector.broadcast %cst_121 : f32 to vector<8x128xf32>
    %441 = arith.addf %440, %439 : vector<8x128xf32>
    %442 = arith.divf %440, %441 : vector<8x128xf32>
    %443 = vector.extract_strided_slice %442 {offsets = [0, 0], sizes = [8, 32], strides = [1, 1]} : vector<8x128xf32> to vector<8x32xf32>
    %444 = vector.extract_strided_slice %442 {offsets = [0, 32], sizes = [8, 32], strides = [1, 1]} : vector<8x128xf32> to vector<8x32xf32>
    %445 = vector.extract_strided_slice %442 {offsets = [0, 64], sizes = [8, 32], strides = [1, 1]} : vector<8x128xf32> to vector<8x32xf32>
    %cst_122 = arith.constant 2.000000e+00 : f32
    %446 = vector.broadcast %cst_122 : f32 to vector<8x32xf32>
    %447 = arith.mulf %446, %445 : vector<8x32xf32>
    %cst_123 = arith.constant 1.000000e+00 : f32
    %448 = vector.broadcast %cst_123 : f32 to vector<8x32xf32>
    %449 = arith.subf %447, %448 : vector<8x32xf32>
    %450 = vector.extract_strided_slice %442 {offsets = [0, 96], sizes = [8, 32], strides = [1, 1]} : vector<8x128xf32> to vector<8x32xf32>
    %451 = arith.mulf %444, %432 : vector<8x32xf32>
    %452 = arith.mulf %443, %449 : vector<8x32xf32>
    %453 = arith.addf %451, %452 : vector<8x32xf32>
    %454 = math.tanh %453 : vector<8x32xf32>
    %455 = arith.mulf %450, %454 : vector<8x32xf32>
    %c160 = arith.constant 160 : index
    %c0_124 = arith.constant 0 : index
    %456 = vector.load %arg5[%c160, %c0_124] : memref<200x64xf32, #tpu.memory_space<vmem>>, vector<32x2xf32>
    %c192 = arith.constant 192 : index
    %c0_125 = arith.constant 0 : index
    %457 = vector.load %arg5[%c192, %c0_125] : memref<200x64xf32, #tpu.memory_space<vmem>>, vector<1x2xf32>
    %458 = tpu.concatenate %308, %329, %350, %371, %392, %413, %434, %455 in 0 : vector<8x32xf32>, vector<8x32xf32>, vector<8x32xf32>, vector<8x32xf32>, vector<8x32xf32>, vector<8x32xf32>, vector<8x32xf32>, vector<8x32xf32> -> vector<64x32xf32>
    %cst_126 = arith.constant dense<0.000000e+00> : vector<64x2xf32>
    %459 = tpu.matmul %458, %456, %cst_126 {dimension_numbers = #tpu.dot_dimension_numbers<[1], [0], [0], [1], [0, 0, 1, 1], [], []>} : vector<64x32xf32>, vector<32x2xf32>, vector<64x2xf32> -> vector<64x2xf32>
    %460 = vector.broadcast %457 : vector<1x2xf32> to vector<64x2xf32>
    %461 = arith.addf %459, %460 : vector<64x2xf32>
    %462 = vector.extract_strided_slice %461 {offsets = [0, 0], sizes = [8, 2], strides = [1, 1]} : vector<64x2xf32> to vector<8x2xf32>
    %463 = vector.extract_strided_slice %461 {offsets = [8, 0], sizes = [8, 2], strides = [1, 1]} : vector<64x2xf32> to vector<8x2xf32>
    %464 = vector.extract_strided_slice %461 {offsets = [16, 0], sizes = [8, 2], strides = [1, 1]} : vector<64x2xf32> to vector<8x2xf32>
    %465 = vector.extract_strided_slice %461 {offsets = [24, 0], sizes = [8, 2], strides = [1, 1]} : vector<64x2xf32> to vector<8x2xf32>
    %466 = vector.extract_strided_slice %461 {offsets = [32, 0], sizes = [8, 2], strides = [1, 1]} : vector<64x2xf32> to vector<8x2xf32>
    %467 = vector.extract_strided_slice %461 {offsets = [40, 0], sizes = [8, 2], strides = [1, 1]} : vector<64x2xf32> to vector<8x2xf32>
    %468 = vector.extract_strided_slice %461 {offsets = [48, 0], sizes = [8, 2], strides = [1, 1]} : vector<64x2xf32> to vector<8x2xf32>
    %469 = vector.extract_strided_slice %461 {offsets = [56, 0], sizes = [8, 2], strides = [1, 1]} : vector<64x2xf32> to vector<8x2xf32>
    %470 = tpu.concatenate %462, %463, %464, %465, %466, %467, %468, %469 in 1 : vector<8x2xf32>, vector<8x2xf32>, vector<8x2xf32>, vector<8x2xf32>, vector<8x2xf32>, vector<8x2xf32>, vector<8x2xf32>, vector<8x2xf32> -> vector<8x16xf32>
    %c0_127 = arith.constant 0 : index
    %c0_128 = arith.constant 0 : index
    %471 = vector.load %arg6[%c0_127, %c0_128] : memref<8x16xf32, #tpu.memory_space<vmem>>, vector<8x16xf32>
    tpu.vector_store %arg6[%c0_127, %c0_128], %470 {strides = array<i32>} : memref<8x16xf32, #tpu.memory_space<vmem>>, vector<8x16xf32>,
    return
  }
}

</mosaic_0001>

<llo_original>
// kernel: trajectory_generator_forward.1
$region0: #{trajectory_generator_forward.1}
  #allocation0 [shape = 'u32[]', space=smem, size = 0x4, offset = 0x4, fixed_abs, tag = 'smem constant byte address 0x4 - core index']
  #allocation1 [shape = 'u32[144,128]{1,0:T(1,128)}', space=vmem, size = 0x12000, scoped, tag = 'internal scratch']
  %s0 = inlined_call_operand.vmem [shape: f32[152,8], index: 0, kind: input, shape index: {}]
  %s1 = inlined_call_operand.vmem [shape: f32[128,8], index: 1, kind: input, shape index: {}]
  %s2 = inlined_call_operand.vmem [shape: f32[120,128], index: 2, kind: input, shape index: {}]
  %s3 = inlined_call_operand.vmem [shape: f32[56,512], index: 3, kind: input, shape index: {}]
  %s4 = inlined_call_operand.vmem [shape: f32[520,32], index: 4, kind: input, shape index: {}]
  %s5 = inlined_call_operand.vmem [shape: f32[200,64], index: 5, kind: input, shape index: {}]
  %s6 = inlined_call_operand.vmem [shape: f32[8,16], index: 6, kind: output, shape index: {}]
  %s7 = sld [smem:[#allocation0]]
  $region34: #{trajectory_generator_forward.1} parent=0
    _
  %s9 = ssub.s32 1, %s7
  %s10 = scalar_select 0, %s9, %s7
  // Predicated region
  $region2: #{trajectory_generator_forward.1} parent=0 // pred_check
    _
  $region3: #{trajectory_generator_forward.1} parent=0 // pred_check_branch
    %12 = sbr.rel (0) target = $region5
  $region4: #{trajectory_generator_forward.1} parent=0 // pred_region
    _
  $region5: #{trajectory_generator_forward.1} parent=0 // pred_fallthru
    _
  // Predicated region
  $region6: #{trajectory_generator_forward.1} parent=0 // pred_check
    _
  $region7: #{trajectory_generator_forward.1} parent=0 // pred_check_branch
    %14 = sbr.rel (0) target = $region9
  $region8: #{trajectory_generator_forward.1} parent=0 // pred_region
    _
  $region9: #{trajectory_generator_forward.1} parent=0 // pred_fallthru
    _
  // Predicated region
  $region10: #{trajectory_generator_forward.1} parent=0 // pred_check
    _
  $region11: #{trajectory_generator_forward.1} parent=0 // pred_check_branch
    %16 = sbr.rel (0) target = $region13
  $region12: #{trajectory_generator_forward.1} parent=0 // pred_region
    _
  $region13: #{trajectory_generator_forward.1} parent=0 // pred_fallthru
    _
  // Predicated region
  $region14: #{trajectory_generator_forward.1} parent=0 // pred_check
    _
  $region15: #{trajectory_generator_forward.1} parent=0 // pred_check_branch
    %18 = sbr.rel (0) target = $region17
  $region16: #{trajectory_generator_forward.1} parent=0 // pred_region
    _
  $region17: #{trajectory_generator_forward.1} parent=0 // pred_fallthru
    _
  // Predicated region
  $region18: #{trajectory_generator_forward.1} parent=0 // pred_check
    _
  $region19: #{trajectory_generator_forward.1} parent=0 // pred_check_branch
    %20 = sbr.rel (0) target = $region21
  $region20: #{trajectory_generator_forward.1} parent=0 // pred_region
    _
  $region21: #{trajectory_generator_forward.1} parent=0 // pred_fallthru
    _
  // Predicated region
  $region22: #{trajectory_generator_forward.1} parent=0 // pred_check
    _
  $region23: #{trajectory_generator_forward.1} parent=0 // pred_check_branch
    %22 = sbr.rel (0) target = $region25
  $region24: #{trajectory_generator_forward.1} parent=0 // pred_region
    _
  $region25: #{trajectory_generator_forward.1} parent=0 // pred_fallthru
    _
  %v23 = vld [vmem:[%s0] sm:$0xff]
  %v24 = vld [vmem:[%s0 + $0x8] sm:$0xff]
  %v25 = vld [vmem:[%s0 + $0x10] sm:$0xff]
  %v26 = vld [vmem:[%s0 + $0x18] sm:$0xff]
  %v27 = vld [vmem:[%s0 + $0x20] sm:$0xff]
  %v28 = vld [vmem:[%s0 + $0x28] sm:$0xff]
  %v29 = vld [vmem:[%s0 + $0x30] sm:$0xff]
  %v30 = vld [vmem:[%s0 + $0x38] sm:$0xff]
  %v31 = vld [vmem:[%s0 + $0x40] sm:$0xff]
  %v32 = vld [vmem:[%s0 + $0x48] sm:$0xff]
  %v33 = vld [vmem:[%s0 + $0x50] sm:$0xff]
  %v34 = vld [vmem:[%s0 + $0x58] sm:$0xff]
  %v35 = vld [vmem:[%s0 + $0x60] sm:$0xff]
  %v36 = vld [vmem:[%s0 + $0x68] sm:$0xff]
  %v37 = vld [vmem:[%s0 + $0x70] sm:$0xff]
  %v38 = vld [vmem:[%s0 + $0x78] sm:$0xff]
  %v39 = vld [vmem:[%s0 + $0x80] sm:$0xff]
  %v40 = vld [vmem:[%s0 + $0x88] sm:$0xff]
  %v41 = vld [vmem:[%s0 + $0x90] sm:$0xff]
  %v42 = vld [vmem:[%s1] sm:$0xff]
  %v43 = vld [vmem:[%s1 + $0x8] sm:$0xff]
  %v44 = vld [vmem:[%s1 + $0x10] sm:$0xff]
  %v45 = vld [vmem:[%s1 + $0x18] sm:$0xff]
  %v46 = vld [vmem:[%s1 + $0x20] sm:$0xff]
  %v47 = vld [vmem:[%s1 + $0x28] sm:$0xff]
  %v48 = vld [vmem:[%s1 + $0x30] sm:$0xff]
  %v49 = vld [vmem:[%s1 + $0x38] sm:$0xff]
  %v50 = vld [vmem:[%s1 + $0x40] sm:$0xff]
  %v51 = vld [vmem:[%s1 + $0x48] sm:$0xff]
  %v52 = vld [vmem:[%s1 + $0x50] sm:$0xff]
  %v53 = vld [vmem:[%s1 + $0x58] sm:$0xff]
  %v54 = vld [vmem:[%s1 + $0x60] sm:$0xff]
  %v55 = vld [vmem:[%s1 + $0x68] sm:$0xff]
  %v56 = vld [vmem:[%s1 + $0x70] sm:$0xff]
  %v57 = vld [vmem:[%s1 + $0x78] sm:$0xff]
  %v58 = vld [vmem:[%s5 + $0x90] sm:$0x3]
  %v59 = vld [vmem:[%s5 + $0x92] sm:$0x1]
  %61 = vset.pattern.permute.xlu0 0
  %62 = vperm.xlu0 %61, %v23
  %v63 = vpop.permute.xlu0 %62
  %66 = vset.pattern.permute.xlu0 0
  %67 = vperm.xlu0 %66, %v24
  %v68 = vpop.permute.xlu0 %67
  %71 = vset.pattern.permute.xlu0 0
  %72 = vperm.xlu0 %71, %v25
  %v73 = vpop.permute.xlu0 %72
  %76 = vset.pattern.permute.xlu0 0
  %77 = vperm.xlu0 %76, %v26
  %v78 = vpop.permute.xlu0 %77
  %81 = vset.pattern.permute.xlu0 0
  %82 = vperm.xlu0 %81, %v27
  %v83 = vpop.permute.xlu0 %82
  %86 = vset.pattern.permute.xlu0 0
  %87 = vperm.xlu0 %86, %v28
  %v88 = vpop.permute.xlu0 %87
  %91 = vset.pattern.permute.xlu0 0
  %92 = vperm.xlu0 %91, %v29
  %v93 = vpop.permute.xlu0 %92
  %96 = vset.pattern.permute.xlu0 0
  %97 = vperm.xlu0 %96, %v30
  %v98 = vpop.permute.xlu0 %97
  %v100 = vlaneseq
  %v101 = vshrl.u32 %v100, 7
  %v102 = vsub.s32 0, %v101
  %v103 = vrot.slane %v58, %v102
  %v104 = vmul.f32 %v63, %v103
  %v105 = vmul.f32 %v68, %v103
  %v106 = vmul.f32 %v73, %v103
  %v107 = vmul.f32 %v78, %v103
  %v108 = vmul.f32 %v83, %v103
  %v109 = vmul.f32 %v88, %v103
  %v110 = vmul.f32 %v93, %v103
  %v111 = vmul.f32 %v98, %v103
  %112 = vset.pattern.permute.xlu0 1
  %113 = vperm.xlu0 %112, %v23
  %v114 = vpop.permute.xlu0 %113
  %116 = vset.pattern.permute.xlu0 1
  %117 = vperm.xlu0 %116, %v24
  %v118 = vpop.permute.xlu0 %117
  %120 = vset.pattern.permute.xlu0 1
  %121 = vperm.xlu0 %120, %v25
  %v122 = vpop.permute.xlu0 %121
  %124 = vset.pattern.permute.xlu0 1
  %125 = vperm.xlu0 %124, %v26
  %v126 = vpop.permute.xlu0 %125
  %128 = vset.pattern.permute.xlu0 1
  %129 = vperm.xlu0 %128, %v27
  %v130 = vpop.permute.xlu0 %129
  %132 = vset.pattern.permute.xlu0 1
  %133 = vperm.xlu0 %132, %v28
  %v134 = vpop.permute.xlu0 %133
  %136 = vset.pattern.permute.xlu0 1
  %137 = vperm.xlu0 %136, %v29
  %v138 = vpop.permute.xlu0 %137
  %140 = vset.pattern.permute.xlu0 1
  %141 = vperm.xlu0 %140, %v30
  %v142 = vpop.permute.xlu0 %141
  %v144 = vlaneseq
  %v145 = vshrl.u32 %v144, 7
  %v146 = vsub.s32 1, %v145
  %v147 = vrot.slane %v58, %v146
  %v148 = vmul.f32 %v114, %v147
  %v149 = vmul.f32 %v118, %v147
  %v150 = vmul.f32 %v122, %v147
  %v151 = vmul.f32 %v126, %v147
  %v152 = vmul.f32 %v130, %v147
  %v153 = vmul.f32 %v134, %v147
  %v154 = vmul.f32 %v138, %v147
  %v155 = vmul.f32 %v142, %v147
  %v156 = vadd.f32 %v104, %v148
  %v157 = vadd.f32 %v105, %v149
  %v158 = vadd.f32 %v106, %v150
  %v159 = vadd.f32 %v107, %v151
  %v160 = vadd.f32 %v108, %v152
  %v161 = vadd.f32 %v109, %v153
  %v162 = vadd.f32 %v110, %v154
  %v163 = vadd.f32 %v111, %v155
  %v164 = vlaneseq
  %v165 = vshrl.u32 %v164, 7
  %v166 = vsub.s32 0, %v165
  %v167 = vrot.slane %v59, %v166
  %v168 = vadd.f32 %v156, %v167
  %v169 = vadd.f32 %v157, %v167
  %v170 = vadd.f32 %v158, %v167
  %v171 = vadd.f32 %v159, %v167
  %v172 = vadd.f32 %v160, %v167
  %v173 = vadd.f32 %v161, %v167
  %v174 = vadd.f32 %v162, %v167
  %v175 = vadd.f32 %v163, %v167
  %v176 = vld [vmem:[%s2] sm:$0xff]
  %v177 = vld [vmem:[%s2 + $0x8] sm:$0xff]
  %v178 = vld [vmem:[%s2 + $0x10] sm:$0xff]
  %v179 = vld [vmem:[%s2 + $0x18] sm:$0xff]
  %v180 = vld [vmem:[%s2 + $0x20] sm:$0xff]
  %v181 = vld [vmem:[%s2 + $0x28] sm:$0xff]
  %v182 = vld [vmem:[%s2 + $0x70] sm:$0x1]
  %v183 = vlaneseq
  %v184 = vshrl.u32 %v183, 7
  %v185 = vsub.s32 0, %v184
  %v186 = vrot.slane %v182, %v185
  %vm187 = vcmask 130048
  %v189 = vsel %vm187, %v168, 0
  %v192 = vsel %vm187, %v169, 0
  %v195 = vsel %vm187, %v170, 0
  %v198 = vsel %vm187, %v171, 0
  %v201 = vsel %vm187, %v172, 0
  %v204 = vsel %vm187, %v173, 0
  %v207 = vsel %vm187, %v174, 0
  %v210 = vsel %vm187, %v175, 0
  %212 = vmatprep.subr.mxu0 0.0
  %213 = vmatpush1.msra.mxu0 0.0
  %214 = vmatprep.subr.mxu0 0.0
  %215 = vmatpush1.msra.mxu0 0.0
  %216 = vmatprep.subr.mxu0 0.0
  %217 = vmatpush1.msra.mxu0 0.0
  %218 = vmatprep.subr.mxu0 0.0
  %219 = vmatpush1.msra.mxu0 0.0
  %220 = vmatprep.subr.mxu0 0.0
  %221 = vmatpush1.msra.mxu0 0.0
  %222 = vmatprep.subr.mxu0 0.0
  %223 = vmatpush1.msra.mxu0 0.0
  %224 = vmatprep.subr.mxu0 0.0
  %225 = vmatpush1.msra.mxu0 0.0
  %226 = vmatprep.subr.mxu0 0.0
  %227 = vmatpush1.msra.mxu0 0.0
  %228 = vmatprep.subr.mxu0 0.0
  %229 = vmatpush1.msra.mxu0 0.0
  %230 = vmatprep.subr.mxu0 0.0
  %231 = vmatpush1.msra.mxu0 0.0
  %232 = vmatprep.subr.mxu0 0.0
  %233 = vmatpush1.msra.mxu0 0.0
  %234 = vmatprep.subr.mxu0 0.0
  %235 = vmatpush1.msra.mxu0 0.0
  %236 = vmatprep.subr.mxu0 0.0
  %237 = vmatpush1.msra.mxu0 0.0
  %238 = vmatprep.subr.mxu0 0.0
  %239 = vmatpush1.msra.mxu0 0.0
  %240 = vmatprep.subr.mxu0 0.0
  %241 = vmatpush1.msra.mxu0 %v177
  %242 = vmatprep.subr.mxu0 0.0
  %243 = vmatpush1.msra.mxu0 %v176
  %244 = vmatprep.subr.mxu0 0.0
  %245 = vmatpush2.msra.mxu0 0.0
  %246 = vmatprep.subr.mxu0 0.0
  %247 = vmatpush2.msra.mxu0 0.0
  %248 = vmatprep.subr.mxu0 0.0
  %249 = vmatpush2.msra.mxu0 0.0
  %250 = vmatprep.subr.mxu0 0.0
  %251 = vmatpush2.msra.mxu0 0.0
  %252 = vmatprep.subr.mxu0 0.0
  %253 = vmatpush2.msra.mxu0 0.0
  %254 = vmatprep.subr.mxu0 0.0
  %255 = vmatpush2.msra.mxu0 0.0
  %256 = vmatprep.subr.mxu0 0.0
  %257 = vmatpush2.msra.mxu0 0.0
  %258 = vmatprep.subr.mxu0 0.0
  %259 = vmatpush2.msra.mxu0 0.0
  %260 = vmatprep.subr.mxu0 0.0
  %261 = vmatpush2.msra.mxu0 0.0
  %262 = vmatprep.subr.mxu0 0.0
  %263 = vmatpush2.msra.mxu0 0.0
  %264 = vmatprep.subr.mxu0 0.0
  %265 = vmatpush2.msra.mxu0 0.0
  %266 = vmatprep.subr.mxu0 0.0
  %267 = vmatpush2.msra.mxu0 0.0
  %268 = vmatprep.subr.mxu0 0.0
  %269 = vmatpush2.msra.mxu0 0.0
  %270 = vmatprep.subr.mxu0 0.0
  %271 = vmatpush2.msra.mxu0 0.0
  %272 = vmatprep.subr.mxu0 0.0
  %273 = vmatpush2.msra.mxu0 0.0
  %274 = vmatprep.subr.mxu0 0.0
  %275 = vmatpush2.msra.mxu0 0.0
  %276 = vmatprep.mubr.f32.mxu0 0.0
  %277 = vmatmul.mubr.f32.gmra.mxu0 %v189
  %v278 = vpop.f32.mrf.mxu0
  %v279 = vadd.f32 %v186, %v278
  %v280 = vpop.f32.mrf.mxu0
  %281 = vmatprep.mubr.f32.mxu0 0.0
  %282 = vmatmul.mubr.f32.gmra.mxu0 %v192
  %v283 = vpop.f32.mrf.mxu0
  %v284 = vadd.f32 %v186, %v283
  %v285 = vpop.f32.mrf.mxu0
  %286 = vmatprep.mubr.f32.mxu0 0.0
  %287 = vmatmul.mubr.f32.gmra.mxu0 %v195
  %v288 = vpop.f32.mrf.mxu0
  %v289 = vadd.f32 %v186, %v288
  %v290 = vpop.f32.mrf.mxu0
  %291 = vmatprep.mubr.f32.mxu0 0.0
  %292 = vmatmul.mubr.f32.gmra.mxu0 %v198
  %v293 = vpop.f32.mrf.mxu0
  %v294 = vadd.f32 %v186, %v293
  %v295 = vpop.f32.mrf.mxu0
  %296 = vmatprep.mubr.f32.mxu0 0.0
  %297 = vmatmul.mubr.f32.gmra.mxu0 %v201
  %v298 = vpop.f32.mrf.mxu0
  %v299 = vadd.f32 %v186, %v298
  %v300 = vpop.f32.mrf.mxu0
  %301 = vmatprep.mubr.f32.mxu0 0.0
  %302 = vmatmul.mubr.f32.gmra.mxu0 %v204
  %v303 = vpop.f32.mrf.mxu0
  %v304 = vadd.f32 %v186, %v303
  %v305 = vpop.f32.mrf.mxu0
  %306 = vmatprep.mubr.f32.mxu0 0.0
  %307 = vmatmul.mubr.f32.gmra.mxu0 %v207
  %v308 = vpop.f32.mrf.mxu0
  %v309 = vadd.f32 %v186, %v308
  %v310 = vpop.f32.mrf.mxu0
  %311 = vmatprep.mubr.f32.mxu0 0.0
  %312 = vmatmul.mubr.f32.gmra.mxu0 %v210
  %v313 = vpop.f32.mrf.mxu0
  %v314 = vadd.f32 %v186, %v313
  %v315 = vpop.f32.mrf.mxu0
  %316 = vdwg.mxu0
  %v317 = vxor.u32 %v279, 2147483648
  %v318 = vmul.f32 %v317, 1.442695
  %v319 = vpow.pop %v318
  %v320 = vadd.f32 %v319, 1.0
  %v321 = vrcp.pop %v320
  %v322 = vmul.f32 1.0, %v321
  %v323 = vmul.f32 %v322, 2.0
  %v324 = vsub.f32 %v323, 1.0
  %v325 = vmul.f32 %v322, 0.0
  %327 = vrot.lane.b32.xlu0 %v324, 64
  %v328 = vpop.permute.xlu0 %327
  %v330 = vmul.f32 %v322, %v328
  %332 = vrot.lane.b32.xlu0 %v330, 32
  %v333 = vpop.permute.xlu0 %332
  %v335 = vadd.f32 %v325, %v333
  %v336 = vtanh.pop %v335
  %338 = vrot.lane.b32.xlu0 %v336, 64
  %v339 = vpop.permute.xlu0 %338
  %v341 = vmul.f32 %v322, %v339
  %343 = vrot.lane.b32.xlu0 %v341, 32
  %v344 = vpop.permute.xlu0 %343
  %vm345 = vcmask 261120
  %v346 = vsel %vm345, %v344, 0
  %348 = vmatprep.subr.mxu0 0.0
  %349 = vmatpush1.msra.mxu0 0.0
  %350 = vmatprep.subr.mxu0 0.0
  %351 = vmatpush1.msra.mxu0 0.0
  %352 = vmatprep.subr.mxu0 0.0
  %353 = vmatpush1.msra.mxu0 0.0
  %354 = vmatprep.subr.mxu0 0.0
  %355 = vmatpush1.msra.mxu0 0.0
  %356 = vmatprep.subr.mxu0 0.0
  %357 = vmatpush1.msra.mxu0 0.0
  %358 = vmatprep.subr.mxu0 0.0
  %359 = vmatpush1.msra.mxu0 0.0
  %360 = vmatprep.subr.mxu0 0.0
  %361 = vmatpush1.msra.mxu0 0.0
  %362 = vmatprep.subr.mxu0 0.0
  %363 = vmatpush1.msra.mxu0 0.0
  %364 = vmatprep.subr.mxu0 0.0
  %365 = vmatpush1.msra.mxu0 0.0
  %366 = vmatprep.subr.mxu0 0.0
  %367 = vmatpush1.msra.mxu0 0.0
  %368 = vmatprep.subr.mxu0 0.0
  %369 = vmatpush1.msra.mxu0 0.0
  %370 = vmatprep.subr.mxu0 0.0
  %371 = vmatpush1.msra.mxu0 0.0
  %372 = vmatprep.subr.mxu0 0.0
  %373 = vmatpush1.msra.mxu0 %v181
  %374 = vmatprep.subr.mxu0 0.0
  %375 = vmatpush1.msra.mxu0 %v180
  %376 = vmatprep.subr.mxu0 0.0
  %377 = vmatpush1.msra.mxu0 %v179
  %378 = vmatprep.subr.mxu0 0.0
  %379 = vmatpush1.msra.mxu0 %v178
  %380 = vmatprep.subr.mxu0 0.0
  %381 = vmatpush2.msra.mxu0 0.0
  %382 = vmatprep.subr.mxu0 0.0
  %383 = vmatpush2.msra.mxu0 0.0
  %384 = vmatprep.subr.mxu0 0.0
  %385 = vmatpush2.msra.mxu0 0.0
  %386 = vmatprep.subr.mxu0 0.0
  %387 = vmatpush2.msra.mxu0 0.0
  %388 = vmatprep.subr.mxu0 0.0
  %389 = vmatpush2.msra.mxu0 0.0
  %390 = vmatprep.subr.mxu0 0.0
  %391 = vmatpush2.msra.mxu0 0.0
  %392 = vmatprep.subr.mxu0 0.0
  %393 = vmatpush2.msra.mxu0 0.0
  %394 = vmatprep.subr.mxu0 0.0
  %395 = vmatpush2.msra.mxu0 0.0
  %396 = vmatprep.subr.mxu0 0.0
  %397 = vmatpush2.msra.mxu0 0.0
  %398 = vmatprep.subr.mxu0 0.0
  %399 = vmatpush2.msra.mxu0 0.0
  %400 = vmatprep.subr.mxu0 0.0
  %401 = vmatpush2.msra.mxu0 0.0
  %402 = vmatprep.subr.mxu0 0.0
  %403 = vmatpush2.msra.mxu0 0.0
  %404 = vmatprep.subr.mxu0 0.0
  %405 = vmatpush2.msra.mxu0 0.0
  %406 = vmatprep.subr.mxu0 0.0
  %407 = vmatpush2.msra.mxu0 0.0
  %408 = vmatprep.subr.mxu0 0.0
  %409 = vmatpush2.msra.mxu0 0.0
  %410 = vmatprep.subr.mxu0 0.0
  %411 = vmatpush2.msra.mxu0 0.0
  %412 = vmatprep.mubr.f32.mxu0 0.0
  %413 = vmatmul.mubr.f32.gmra.mxu0 %v346
  %v414 = vpop.f32.mrf.mxu0
  %v415 = vadd.f32 0.0, %v414
  %v416 = vpop.f32.mrf.mxu0
  %417 = vdwg.mxu0
  %v418 = vadd.f32 %v284, %v415
  %v419 = vxor.u32 %v418, 2147483648
  %v420 = vmul.f32 %v419, 1.442695
  %v421 = vpow.pop %v420
  %v422 = vadd.f32 %v421, 1.0
  %v423 = vrcp.pop %v422
  %v424 = vmul.f32 1.0, %v423
  %v425 = vmul.f32 %v424, 2.0
  %v426 = vsub.f32 %v425, 1.0
  %v427 = vmul.f32 %v424, %v335
  %429 = vrot.lane.b32.xlu0 %v426, 64
  %v430 = vpop.permute.xlu0 %429
  %v432 = vmul.f32 %v424, %v430
  %434 = vrot.lane.b32.xlu0 %v432, 32
  %v435 = vpop.permute.xlu0 %434
  %v437 = vadd.f32 %v427, %v435
  %v438 = vtanh.pop %v437
  %440 = vrot.lane.b32.xlu0 %v438, 64
  %v441 = vpop.permute.xlu0 %440
  %v443 = vmul.f32 %v424, %v441
  %445 = vrot.lane.b32.xlu0 %v443, 32
  %v446 = vpop.permute.xlu0 %445
  %v447 = vsel %vm345, %v446, 0
  %449 = vmatprep.subr.mxu0 0.0
  %450 = vmatpush1.msra.mxu0 0.0
  %451 = vmatprep.subr.mxu0 0.0
  %452 = vmatpush1.msra.mxu0 0.0
  %453 = vmatprep.subr.mxu0 0.0
  %454 = vmatpush1.msra.mxu0 0.0
  %455 = vmatprep.subr.mxu0 0.0
  %456 = vmatpush1.msra.mxu0 0.0
  %457 = vmatprep.subr.mxu0 0.0
  %458 = vmatpush1.msra.mxu0 0.0
  %459 = vmatprep.subr.mxu0 0.0
  %460 = vmatpush1.msra.mxu0 0.0
  %461 = vmatprep.subr.mxu0 0.0
  %462 = vmatpush1.msra.mxu0 0.0
  %463 = vmatprep.subr.mxu0 0.0
  %464 = vmatpush1.msra.mxu0 0.0
  %465 = vmatprep.subr.mxu0 0.0
  %466 = vmatpush1.msra.mxu0 0.0
  %467 = vmatprep.subr.mxu0 0.0
  %468 = vmatpush1.msra.mxu0 0.0
  %469 = vmatprep.subr.mxu0 0.0
  %470 = vmatpush1.msra.mxu0 0.0
  %471 = vmatprep.subr.mxu0 0.0
  %472 = vmatpush1.msra.mxu0 0.0
  %473 = vmatprep.subr.mxu0 0.0
  %474 = vmatpush1.msra.mxu0 %v181
  %475 = vmatprep.subr.mxu0 0.0
  %476 = vmatpush1.msra.mxu0 %v180
  %477 = vmatprep.subr.mxu0 0.0
  %478 = vmatpush1.msra.mxu0 %v179
  %479 = vmatprep.subr.mxu0 0.0
  %480 = vmatpush1.msra.mxu0 %v178
  %481 = vmatprep.subr.mxu0 0.0
  %482 = vmatpush2.msra.mxu0 0.0
  %483 = vmatprep.subr.mxu0 0.0
  %484 = vmatpush2.msra.mxu0 0.0
  %485 = vmatprep.subr.mxu0 0.0
  %486 = vmatpush2.msra.mxu0 0.0
  %487 = vmatprep.subr.mxu0 0.0
  %488 = vmatpush2.msra.mxu0 0.0
  %489 = vmatprep.subr.mxu0 0.0
  %490 = vmatpush2.msra.mxu0 0.0
  %491 = vmatprep.subr.mxu0 0.0
  %492 = vmatpush2.msra.mxu0 0.0
  %493 = vmatprep.subr.mxu0 0.0
  %494 = vmatpush2.msra.mxu0 0.0
  %495 = vmatprep.subr.mxu0 0.0
  %496 = vmatpush2.msra.mxu0 0.0
  %497 = vmatprep.subr.mxu0 0.0
  %498 = vmatpush2.msra.mxu0 0.0
  %499 = vmatprep.subr.mxu0 0.0
  %500 = vmatpush2.msra.mxu0 0.0
  %501 = vmatprep.subr.mxu0 0.0
  %502 = vmatpush2.msra.mxu0 0.0
  %503 = vmatprep.subr.mxu0 0.0
  %504 = vmatpush2.msra.mxu0 0.0
  %505 = vmatprep.subr.mxu0 0.0
  %506 = vmatpush2.msra.mxu0 0.0
  %507 = vmatprep.subr.mxu0 0.0
  %508 = vmatpush2.msra.mxu0 0.0
  %509 = vmatprep.subr.mxu0 0.0
  %510 = vmatpush2.msra.mxu0 0.0
  %511 = vmatprep.subr.mxu0 0.0
  %512 = vmatpush2.msra.mxu0 0.0
  %513 = vmatprep.mubr.f32.mxu0 0.0
  %514 = vmatmul.mubr.f32.gmra.mxu0 %v447
  %v515 = vpop.f32.mrf.mxu0
  %v516 = vadd.f32 0.0, %v515
  %v517 = vpop.f32.mrf.mxu0
  %518 = vdwg.mxu0
  %v519 = vadd.f32 %v289, %v516
  %v520 = vxor.u32 %v519, 2147483648
  %v521 = vmul.f32 %v520, 1.442695
  %v522 = vpow.pop %v521
  %v523 = vadd.f32 %v522, 1.0
  %v524 = vrcp.pop %v523
  %v525 = vmul.f32 1.0, %v524
  %v526 = vmul.f32 %v525, 2.0
  %v527 = vsub.f32 %v526, 1.0
  %v528 = vmul.f32 %v525, %v437
  %530 = vrot.lane.b32.xlu0 %v527, 64
  %v531 = vpop.permute.xlu0 %530
  %v533 = vmul.f32 %v525, %v531
  %535 = vrot.lane.b32.xlu0 %v533, 32
  %v536 = vpop.permute.xlu0 %535
  %v538 = vadd.f32 %v528, %v536
  %v539 = vtanh.pop %v538
  %541 = vrot.lane.b32.xlu0 %v539, 64
  %v542 = vpop.permute.xlu0 %541
  %v544 = vmul.f32 %v525, %v542
  %546 = vrot.lane.b32.xlu0 %v544, 32
  %v547 = vpop.permute.xlu0 %546
  %v548 = vsel %vm345, %v547, 0
  %550 = vmatprep.subr.mxu0 0.0
  %551 = vmatpush1.msra.mxu0 0.0
  %552 = vmatprep.subr.mxu0 0.0
  %553 = vmatpush1.msra.mxu0 0.0
  %554 = vmatprep.subr.mxu0 0.0
  %555 = vmatpush1.msra.mxu0 0.0
  %556 = vmatprep.subr.mxu0 0.0
  %557 = vmatpush1.msra.mxu0 0.0
  %558 = vmatprep.subr.mxu0 0.0
  %559 = vmatpush1.msra.mxu0 0.0
  %560 = vmatprep.subr.mxu0 0.0
  %561 = vmatpush1.msra.mxu0 0.0
  %562 = vmatprep.subr.mxu0 0.0
  %563 = vmatpush1.msra.mxu0 0.0
  %564 = vmatprep.subr.mxu0 0.0
  %565 = vmatpush1.msra.mxu0 0.0
  %566 = vmatprep.subr.mxu0 0.0
  %567 = vmatpush1.msra.mxu0 0.0
  %568 = vmatprep.subr.mxu0 0.0
  %569 = vmatpush1.msra.mxu0 0.0
  %570 = vmatprep.subr.mxu0 0.0
  %571 = vmatpush1.msra.mxu0 0.0
  %572 = vmatprep.subr.mxu0 0.0
  %573 = vmatpush1.msra.mxu0 0.0
  %574 = vmatprep.subr.mxu0 0.0
  %575 = vmatpush1.msra.mxu0 %v181
  %576 = vmatprep.subr.mxu0 0.0
  %577 = vmatpush1.msra.mxu0 %v180
  %578 = vmatprep.subr.mxu0 0.0
  %579 = vmatpush1.msra.mxu0 %v179
  %580 = vmatprep.subr.mxu0 0.0
  %581 = vmatpush1.msra.mxu0 %v178
  %582 = vmatprep.subr.mxu0 0.0
  %583 = vmatpush2.msra.mxu0 0.0
  %584 = vmatprep.subr.mxu0 0.0
  %585 = vmatpush2.msra.mxu0 0.0
  %586 = vmatprep.subr.mxu0 0.0
  %587 = vmatpush2.msra.mxu0 0.0
  %588 = vmatprep.subr.mxu0 0.0
  %589 = vmatpush2.msra.mxu0 0.0
  %590 = vmatprep.subr.mxu0 0.0
  %591 = vmatpush2.msra.mxu0 0.0
  %592 = vmatprep.subr.mxu0 0.0
  %593 = vmatpush2.msra.mxu0 0.0
  %594 = vmatprep.subr.mxu0 0.0
  %595 = vmatpush2.msra.mxu0 0.0
  %596 = vmatprep.subr.mxu0 0.0
  %597 = vmatpush2.msra.mxu0 0.0
  %598 = vmatprep.subr.mxu0 0.0
  %599 = vmatpush2.msra.mxu0 0.0
  %600 = vmatprep.subr.mxu0 0.0
  %601 = vmatpush2.msra.mxu0 0.0
  %602 = vmatprep.subr.mxu0 0.0
  %603 = vmatpush2.msra.mxu0 0.0
  %604 = vmatprep.subr.mxu0 0.0
  %605 = vmatpush2.msra.mxu0 0.0
  %606 = vmatprep.subr.mxu0 0.0
  %607 = vmatpush2.msra.mxu0 0.0
  %608 = vmatprep.subr.mxu0 0.0
  %609 = vmatpush2.msra.mxu0 0.0
  %610 = vmatprep.subr.mxu0 0.0
  %611 = vmatpush2.msra.mxu0 0.0
  %612 = vmatprep.subr.mxu0 0.0
  %613 = vmatpush2.msra.mxu0 0.0
  %614 = vmatprep.mubr.f32.mxu0 0.0
  %615 = vmatmul.mubr.f32.gmra.mxu0 %v548
  %v616 = vpop.f32.mrf.mxu0
  %v617 = vadd.f32 0.0, %v616
  %v618 = vpop.f32.mrf.mxu0
  %619 = vdwg.mxu0
  %v620 = vadd.f32 %v294, %v617
  %v621 = vxor.u32 %v620, 2147483648
  %v622 = vmul.f32 %v621, 1.442695
  %v623 = vpow.pop %v622
  %v624 = vadd.f32 %v623, 1.0
  %v625 = vrcp.pop %v624
  %v626 = vmul.f32 1.0, %v625
  %v627 = vmul.f32 %v626, 2.0
  %v628 = vsub.f32 %v627, 1.0
  %v629 = vmul.f32 %v626, %v538
  %631 = vrot.lane.b32.xlu0 %v628, 64
  %v632 = vpop.permute.xlu0 %631
  %v634 = vmul.f32 %v626, %v632
  %636 = vrot.lane.b32.xlu0 %v634, 32
  %v637 = vpop.permute.xlu0 %636
  %v639 = vadd.f32 %v629, %v637
  %v640 = vtanh.pop %v639
  %642 = vrot.lane.b32.xlu0 %v640, 64
  %v643 = vpop.permute.xlu0 %642
  %v645 = vmul.f32 %v626, %v643
  %647 = vrot.lane.b32.xlu0 %v645, 32
  %v648 = vpop.permute.xlu0 %647
  %v649 = vsel %vm345, %v648, 0
  %651 = vmatprep.subr.mxu0 0.0
  %652 = vmatpush1.msra.mxu0 0.0
  %653 = vmatprep.subr.mxu0 0.0
  %654 = vmatpush1.msra.mxu0 0.0
  %655 = vmatprep.subr.mxu0 0.0
  %656 = vmatpush1.msra.mxu0 0.0
  %657 = vmatprep.subr.mxu0 0.0
  %658 = vmatpush1.msra.mxu0 0.0
  %659 = vmatprep.subr.mxu0 0.0
  %660 = vmatpush1.msra.mxu0 0.0
  %661 = vmatprep.subr.mxu0 0.0
  %662 = vmatpush1.msra.mxu0 0.0
  %663 = vmatprep.subr.mxu0 0.0
  %664 = vmatpush1.msra.mxu0 0.0
  %665 = vmatprep.subr.mxu0 0.0
  %666 = vmatpush1.msra.mxu0 0.0
  %667 = vmatprep.subr.mxu0 0.0
  %668 = vmatpush1.msra.mxu0 0.0
  %669 = vmatprep.subr.mxu0 0.0
  %670 = vmatpush1.msra.mxu0 0.0
  %671 = vmatprep.subr.mxu0 0.0
  %672 = vmatpush1.msra.mxu0 0.0
  %673 = vmatprep.subr.mxu0 0.0
  %674 = vmatpush1.msra.mxu0 0.0
  %675 = vmatprep.subr.mxu0 0.0
  %676 = vmatpush1.msra.mxu0 %v181
  %677 = vmatprep.subr.mxu0 0.0
  %678 = vmatpush1.msra.mxu0 %v180
  %679 = vmatprep.subr.mxu0 0.0
  %680 = vmatpush1.msra.mxu0 %v179
  %681 = vmatprep.subr.mxu0 0.0
  %682 = vmatpush1.msra.mxu0 %v178
  %683 = vmatprep.subr.mxu0 0.0
  %684 = vmatpush2.msra.mxu0 0.0
  %685 = vmatprep.subr.mxu0 0.0
  %686 = vmatpush2.msra.mxu0 0.0
  %687 = vmatprep.subr.mxu0 0.0
  %688 = vmatpush2.msra.mxu0 0.0
  %689 = vmatprep.subr.mxu0 0.0
  %690 = vmatpush2.msra.mxu0 0.0
  %691 = vmatprep.subr.mxu0 0.0
  %692 = vmatpush2.msra.mxu0 0.0
  %693 = vmatprep.subr.mxu0 0.0
  %694 = vmatpush2.msra.mxu0 0.0
  %695 = vmatprep.subr.mxu0 0.0
  %696 = vmatpush2.msra.mxu0 0.0
  %697 = vmatprep.subr.mxu0 0.0
  %698 = vmatpush2.msra.mxu0 0.0
  %699 = vmatprep.subr.mxu0 0.0
  %700 = vmatpush2.msra.mxu0 0.0
  %701 = vmatprep.subr.mxu0 0.0
  %702 = vmatpush2.msra.mxu0 0.0
  %703 = vmatprep.subr.mxu0 0.0
  %704 = vmatpush2.msra.mxu0 0.0
  %705 = vmatprep.subr.mxu0 0.0
  %706 = vmatpush2.msra.mxu0 0.0
  %707 = vmatprep.subr.mxu0 0.0
  %708 = vmatpush2.msra.mxu0 0.0
  %709 = vmatprep.subr.mxu0 0.0
  %710 = vmatpush2.msra.mxu0 0.0
  %711 = vmatprep.subr.mxu0 0.0
  %712 = vmatpush2.msra.mxu0 0.0
  %713 = vmatprep.subr.mxu0 0.0
  %714 = vmatpush2.msra.mxu0 0.0
  %715 = vmatprep.mubr.f32.mxu0 0.0
  %716 = vmatmul.mubr.f32.gmra.mxu0 %v649
  %v717 = vpop.f32.mrf.mxu0
  %v718 = vadd.f32 0.0, %v717
  %v719 = vpop.f32.mrf.mxu0
  %720 = vdwg.mxu0
  %v721 = vadd.f32 %v299, %v718
  %v722 = vxor.u32 %v721, 2147483648
  %v723 = vmul.f32 %v722, 1.442695
  %v724 = vpow.pop %v723
  %v725 = vadd.f32 %v724, 1.0
  %v726 = vrcp.pop %v725
  %v727 = vmul.f32 1.0, %v726
  %v728 = vmul.f32 %v727, 2.0
  %v729 = vsub.f32 %v728, 1.0
  %v730 = vmul.f32 %v727, %v639
  %732 = vrot.lane.b32.xlu0 %v729, 64
  %v733 = vpop.permute.xlu0 %732
  %v735 = vmul.f32 %v727, %v733
  %737 = vrot.lane.b32.xlu0 %v735, 32
  %v738 = vpop.permute.xlu0 %737
  %v740 = vadd.f32 %v730, %v738
  %v741 = vtanh.pop %v740
  %743 = vrot.lane.b32.xlu0 %v741, 64
  %v744 = vpop.permute.xlu0 %743
  %v746 = vmul.f32 %v727, %v744
  %748 = vrot.lane.b32.xlu0 %v746, 32
  %v749 = vpop.permute.xlu0 %748
  %v750 = vsel %vm345, %v749, 0
  %752 = vmatprep.subr.mxu0 0.0
  %753 = vmatpush1.msra.mxu0 0.0
  %754 = vmatprep.subr.mxu0 0.0
  %755 = vmatpush1.msra.mxu0 0.0
  %756 = vmatprep.subr.mxu0 0.0
  %757 = vmatpush1.msra.mxu0 0.0
  %758 = vmatprep.subr.mxu0 0.0
  %759 = vmatpush1.msra.mxu0 0.0
  %760 = vmatprep.subr.mxu0 0.0
  %761 = vmatpush1.msra.mxu0 0.0
  %762 = vmatprep.subr.mxu0 0.0
  %763 = vmatpush1.msra.mxu0 0.0
  %764 = vmatprep.subr.mxu0 0.0
  %765 = vmatpush1.msra.mxu0 0.0
  %766 = vmatprep.subr.mxu0 0.0
  %767 = vmatpush1.msra.mxu0 0.0
  %768 = vmatprep.subr.mxu0 0.0
  %769 = vmatpush1.msra.mxu0 0.0
  %770 = vmatprep.subr.mxu0 0.0
  %771 = vmatpush1.msra.mxu0 0.0
  %772 = vmatprep.subr.mxu0 0.0
  %773 = vmatpush1.msra.mxu0 0.0
  %774 = vmatprep.subr.mxu0 0.0
  %775 = vmatpush1.msra.mxu0 0.0
  %776 = vmatprep.subr.mxu0 0.0
  %777 = vmatpush1.msra.mxu0 %v181
  %778 = vmatprep.subr.mxu0 0.0
  %779 = vmatpush1.msra.mxu0 %v180
  %780 = vmatprep.subr.mxu0 0.0
  %781 = vmatpush1.msra.mxu0 %v179
  %782 = vmatprep.subr.mxu0 0.0
  %783 = vmatpush1.msra.mxu0 %v178
  %784 = vmatprep.subr.mxu0 0.0
  %785 = vmatpush2.msra.mxu0 0.0
  %786 = vmatprep.subr.mxu0 0.0
  %787 = vmatpush2.msra.mxu0 0.0
  %788 = vmatprep.subr.mxu0 0.0
  %789 = vmatpush2.msra.mxu0 0.0
  %790 = vmatprep.subr.mxu0 0.0
  %791 = vmatpush2.msra.mxu0 0.0
  %792 = vmatprep.subr.mxu0 0.0
  %793 = vmatpush2.msra.mxu0 0.0
  %794 = vmatprep.subr.mxu0 0.0
  %795 = vmatpush2.msra.mxu0 0.0
  %796 = vmatprep.subr.mxu0 0.0
  %797 = vmatpush2.msra.mxu0 0.0
  %798 = vmatprep.subr.mxu0 0.0
  %799 = vmatpush2.msra.mxu0 0.0
  %800 = vmatprep.subr.mxu0 0.0
  %801 = vmatpush2.msra.mxu0 0.0
  %802 = vmatprep.subr.mxu0 0.0
  %803 = vmatpush2.msra.mxu0 0.0
  %804 = vmatprep.subr.mxu0 0.0
  %805 = vmatpush2.msra.mxu0 0.0
  %806 = vmatprep.subr.mxu0 0.0
  %807 = vmatpush2.msra.mxu0 0.0
  %808 = vmatprep.subr.mxu0 0.0
  %809 = vmatpush2.msra.mxu0 0.0
  %810 = vmatprep.subr.mxu0 0.0
  %811 = vmatpush2.msra.mxu0 0.0
  %812 = vmatprep.subr.mxu0 0.0
  %813 = vmatpush2.msra.mxu0 0.0
  %814 = vmatprep.subr.mxu0 0.0
  %815 = vmatpush2.msra.mxu0 0.0
  %816 = vmatprep.mubr.f32.mxu0 0.0
  %817 = vmatmul.mubr.f32.gmra.mxu0 %v750
  %v818 = vpop.f32.mrf.mxu0
  %v819 = vadd.f32 0.0, %v818
  %v820 = vpop.f32.mrf.mxu0
  %821 = vdwg.mxu0
  %v822 = vadd.f32 %v304, %v819
  %v823 = vxor.u32 %v822, 2147483648
  %v824 = vmul.f32 %v823, 1.442695
  %v825 = vpow.pop %v824
  %v826 = vadd.f32 %v825, 1.0
  %v827 = vrcp.pop %v826
  %v828 = vmul.f32 1.0, %v827
  %v829 = vmul.f32 %v828, 2.0
  %v830 = vsub.f32 %v829, 1.0
  %v831 = vmul.f32 %v828, %v740
  %833 = vrot.lane.b32.xlu0 %v830, 64
  %v834 = vpop.permute.xlu0 %833
  %v836 = vmul.f32 %v828, %v834
  %838 = vrot.lane.b32.xlu0 %v836, 32
  %v839 = vpop.permute.xlu0 %838
  %v841 = vadd.f32 %v831, %v839
  %v842 = vtanh.pop %v841
  %844 = vrot.lane.b32.xlu0 %v842, 64
  %v845 = vpop.permute.xlu0 %844
  %v847 = vmul.f32 %v828, %v845
  %849 = vrot.lane.b32.xlu0 %v847, 32
  %v850 = vpop.permute.xlu0 %849
  %v851 = vsel %vm345, %v850, 0
  %853 = vmatprep.subr.mxu0 0.0
  %854 = vmatpush1.msra.mxu0 0.0
  %855 = vmatprep.subr.mxu0 0.0
  %856 = vmatpush1.msra.mxu0 0.0
  %857 = vmatprep.subr.mxu0 0.0
  %858 = vmatpush1.msra.mxu0 0.0
  %859 = vmatprep.subr.mxu0 0.0
  %860 = vmatpush1.msra.mxu0 0.0
  %861 = vmatprep.subr.mxu0 0.0
  %862 = vmatpush1.msra.mxu0 0.0
  %863 = vmatprep.subr.mxu0 0.0
  %864 = vmatpush1.msra.mxu0 0.0
  %865 = vmatprep.subr.mxu0 0.0
  %866 = vmatpush1.msra.mxu0 0.0
  %867 = vmatprep.subr.mxu0 0.0
  %868 = vmatpush1.msra.mxu0 0.0
  %869 = vmatprep.subr.mxu0 0.0
  %870 = vmatpush1.msra.mxu0 0.0
  %871 = vmatprep.subr.mxu0 0.0
  %872 = vmatpush1.msra.mxu0 0.0
  %873 = vmatprep.subr.mxu0 0.0
  %874 = vmatpush1.msra.mxu0 0.0
  %875 = vmatprep.subr.mxu0 0.0
  %876 = vmatpush1.msra.mxu0 0.0
  %877 = vmatprep.subr.mxu0 0.0
  %878 = vmatpush1.msra.mxu0 %v181
  %879 = vmatprep.subr.mxu0 0.0
  %880 = vmatpush1.msra.mxu0 %v180
  %881 = vmatprep.subr.mxu0 0.0
  %882 = vmatpush1.msra.mxu0 %v179
  %883 = vmatprep.subr.mxu0 0.0
  %884 = vmatpush1.msra.mxu0 %v178
  %885 = vmatprep.subr.mxu0 0.0
  %886 = vmatpush2.msra.mxu0 0.0
  %887 = vmatprep.subr.mxu0 0.0
  %888 = vmatpush2.msra.mxu0 0.0
  %889 = vmatprep.subr.mxu0 0.0
  %890 = vmatpush2.msra.mxu0 0.0
  %891 = vmatprep.subr.mxu0 0.0
  %892 = vmatpush2.msra.mxu0 0.0
  %893 = vmatprep.subr.mxu0 0.0
  %894 = vmatpush2.msra.mxu0 0.0
  %895 = vmatprep.subr.mxu0 0.0
  %896 = vmatpush2.msra.mxu0 0.0
  %897 = vmatprep.subr.mxu0 0.0
  %898 = vmatpush2.msra.mxu0 0.0
  %899 = vmatprep.subr.mxu0 0.0
  %900 = vmatpush2.msra.mxu0 0.0
  %901 = vmatprep.subr.mxu0 0.0
  %902 = vmatpush2.msra.mxu0 0.0
  %903 = vmatprep.subr.mxu0 0.0
  %904 = vmatpush2.msra.mxu0 0.0
  %905 = vmatprep.subr.mxu0 0.0
  %906 = vmatpush2.msra.mxu0 0.0
  %907 = vmatprep.subr.mxu0 0.0
  %908 = vmatpush2.msra.mxu0 0.0
  %909 = vmatprep.subr.mxu0 0.0
  %910 = vmatpush2.msra.mxu0 0.0
  %911 = vmatprep.subr.mxu0 0.0
  %912 = vmatpush2.msra.mxu0 0.0
  %913 = vmatprep.subr.mxu0 0.0
  %914 = vmatpush2.msra.mxu0 0.0
  %915 = vmatprep.subr.mxu0 0.0
  %916 = vmatpush2.msra.mxu0 0.0
  %917 = vmatprep.mubr.f32.mxu0 0.0
  %918 = vmatmul.mubr.f32.gmra.mxu0 %v851
  %v919 = vpop.f32.mrf.mxu0
  %v920 = vadd.f32 0.0, %v919
  %v921 = vpop.f32.mrf.mxu0
  %922 = vdwg.mxu0
  %v923 = vadd.f32 %v309, %v920
  %v924 = vxor.u32 %v923, 2147483648
  %v925 = vmul.f32 %v924, 1.442695
  %v926 = vpow.pop %v925
  %v927 = vadd.f32 %v926, 1.0
  %v928 = vrcp.pop %v927
  %v929 = vmul.f32 1.0, %v928
  %v930 = vmul.f32 %v929, 2.0
  %v931 = vsub.f32 %v930, 1.0
  %v932 = vmul.f32 %v929, %v841
  %934 = vrot.lane.b32.xlu0 %v931, 64
  %v935 = vpop.permute.xlu0 %934
  %v937 = vmul.f32 %v929, %v935
  %939 = vrot.lane.b32.xlu0 %v937, 32
  %v940 = vpop.permute.xlu0 %939
  %v942 = vadd.f32 %v932, %v940
  %v943 = vtanh.pop %v942
  %945 = vrot.lane.b32.xlu0 %v943, 64
  %v946 = vpop.permute.xlu0 %945
  %v948 = vmul.f32 %v929, %v946
  %950 = vrot.lane.b32.xlu0 %v948, 32
  %v951 = vpop.permute.xlu0 %950
  %v952 = vsel %vm345, %v951, 0
  %954 = vmatprep.subr.mxu0 0.0
  %955 = vmatpush1.msra.mxu0 0.0
  %956 = vmatprep.subr.mxu0 0.0
  %957 = vmatpush1.msra.mxu0 0.0
  %958 = vmatprep.subr.mxu0 0.0
  %959 = vmatpush1.msra.mxu0 0.0
  %960 = vmatprep.subr.mxu0 0.0
  %961 = vmatpush1.msra.mxu0 0.0
  %962 = vmatprep.subr.mxu0 0.0
  %963 = vmatpush1.msra.mxu0 0.0
  %964 = vmatprep.subr.mxu0 0.0
  %965 = vmatpush1.msra.mxu0 0.0
  %966 = vmatprep.subr.mxu0 0.0
  %967 = vmatpush1.msra.mxu0 0.0
  %968 = vmatprep.subr.mxu0 0.0
  %969 = vmatpush1.msra.mxu0 0.0
  %970 = vmatprep.subr.mxu0 0.0
  %971 = vmatpush1.msra.mxu0 0.0
  %972 = vmatprep.subr.mxu0 0.0
  %973 = vmatpush1.msra.mxu0 0.0
  %974 = vmatprep.subr.mxu0 0.0
  %975 = vmatpush1.msra.mxu0 0.0
  %976 = vmatprep.subr.mxu0 0.0
  %977 = vmatpush1.msra.mxu0 0.0
  %978 = vmatprep.subr.mxu0 0.0
  %979 = vmatpush1.msra.mxu0 %v181
  %980 = vmatprep.subr.mxu0 0.0
  %981 = vmatpush1.msra.mxu0 %v180
  %982 = vmatprep.subr.mxu0 0.0
  %983 = vmatpush1.msra.mxu0 %v179
  %984 = vmatprep.subr.mxu0 0.0
  %985 = vmatpush1.msra.mxu0 %v178
  %986 = vmatprep.subr.mxu0 0.0
  %987 = vmatpush2.msra.mxu0 0.0
  %988 = vmatprep.subr.mxu0 0.0
  %989 = vmatpush2.msra.mxu0 0.0
  %990 = vmatprep.subr.mxu0 0.0
  %991 = vmatpush2.msra.mxu0 0.0
  %992 = vmatprep.subr.mxu0 0.0
  %993 = vmatpush2.msra.mxu0 0.0
  %994 = vmatprep.subr.mxu0 0.0
  %995 = vmatpush2.msra.mxu0 0.0
  %996 = vmatprep.subr.mxu0 0.0
  %997 = vmatpush2.msra.mxu0 0.0
  %998 = vmatprep.subr.mxu0 0.0
  %999 = vmatpush2.msra.mxu0 0.0
  %1000 = vmatprep.subr.mxu0 0.0
  %1001 = vmatpush2.msra.mxu0 0.0
  %1002 = vmatprep.subr.mxu0 0.0
  %1003 = vmatpush2.msra.mxu0 0.0
  %1004 = vmatprep.subr.mxu0 0.0
  %1005 = vmatpush2.msra.mxu0 0.0
  %1006 = vmatprep.subr.mxu0 0.0
  %1007 = vmatpush2.msra.mxu0 0.0
  %1008 = vmatprep.subr.mxu0 0.0
  %1009 = vmatpush2.msra.mxu0 0.0
  %1010 = vmatprep.subr.mxu0 0.0
  %1011 = vmatpush2.msra.mxu0 0.0
  %1012 = vmatprep.subr.mxu0 0.0
  %1013 = vmatpush2.msra.mxu0 0.0
  %1014 = vmatprep.subr.mxu0 0.0
  %1015 = vmatpush2.msra.mxu0 0.0
  %1016 = vmatprep.subr.mxu0 0.0
  %1017 = vmatpush2.msra.mxu0 0.0
  %1018 = vmatprep.mubr.f32.mxu0 0.0
  %1019 = vmatmul.mubr.f32.gmra.mxu0 %v952
  %v1020 = vpop.f32.mrf.mxu0
  %v1021 = vadd.f32 0.0, %v1020
  %v1022 = vpop.f32.mrf.mxu0
  %1023 = vdwg.mxu0
  %v1024 = vadd.f32 %v314, %v1021
  %v1025 = vxor.u32 %v1024, 2147483648
  %v1026 = vmul.f32 %v1025, 1.442695
  %v1027 = vpow.pop %v1026
  %v1028 = vadd.f32 %v1027, 1.0
  %v1029 = vrcp.pop %v1028
  %v1030 = vmul.f32 1.0, %v1029
  %v1031 = vmul.f32 %v1030, 2.0
  %v1032 = vsub.f32 %v1031, 1.0
  %v1033 = vmul.f32 %v1030, %v942
  %1035 = vrot.lane.b32.xlu0 %v1032, 64
  %v1036 = vpop.permute.xlu0 %1035
  %v1038 = vmul.f32 %v1030, %v1036
  %1040 = vrot.lane.b32.xlu0 %v1038, 32
  %v1041 = vpop.permute.xlu0 %1040
  %v1043 = vadd.f32 %v1033, %v1041
  %v1044 = vtanh.pop %v1043
  %1046 = vrot.lane.b32.xlu0 %v1044, 64
  %v1047 = vpop.permute.xlu0 %1046
  %v1049 = vmul.f32 %v1030, %v1047
  %vm1050 = vcmask 64512
  %v1052 = vsel %vm1050, %v42, 0
  %v1055 = vsel %vm1050, %v43, 0
  %v1058 = vsel %vm1050, %v44, 0
  %v1061 = vsel %vm1050, %v45, 0
  %v1064 = vsel %vm1050, %v46, 0
  %v1067 = vsel %vm1050, %v47, 0
  %v1070 = vsel %vm1050, %v48, 0
  %v1073 = vsel %vm1050, %v49, 0
  %1075 = vmatprep.subr.mxu0 0.0
  %1076 = vmatpush1.msra.mxu0 0.0
  %1077 = vmatprep.subr.mxu0 0.0
  %1078 = vmatpush1.msra.mxu0 0.0
  %1079 = vmatprep.subr.mxu0 0.0
  %1080 = vmatpush1.msra.mxu0 0.0
  %1081 = vmatprep.subr.mxu0 0.0
  %1082 = vmatpush1.msra.mxu0 0.0
  %1083 = vmatprep.subr.mxu0 0.0
  %1084 = vmatpush1.msra.mxu0 0.0
  %1085 = vmatprep.subr.mxu0 0.0
  %1086 = vmatpush1.msra.mxu0 0.0
  %1087 = vmatprep.subr.mxu0 0.0
  %1088 = vmatpush1.msra.mxu0 0.0
  %1089 = vmatprep.subr.mxu0 0.0
  %1090 = vmatpush1.msra.mxu0 0.0
  %1091 = vmatprep.subr.mxu0 0.0
  %1092 = vmatpush1.msra.mxu0 0.0
  %1093 = vmatprep.subr.mxu0 0.0
  %1094 = vmatpush1.msra.mxu0 0.0
  %1095 = vmatprep.subr.mxu0 0.0
  %1096 = vmatpush1.msra.mxu0 0.0
  %1097 = vmatprep.subr.mxu0 0.0
  %1098 = vmatpush1.msra.mxu0 0.0
  %1099 = vmatprep.subr.mxu0 0.0
  %1100 = vmatpush1.msra.mxu0 0.0
  %1101 = vmatprep.subr.mxu0 0.0
  %1102 = vmatpush1.msra.mxu0 0.0
  %1103 = vmatprep.subr.mxu0 0.0
  %1104 = vmatpush1.msra.mxu0 0.0
  %1105 = vmatprep.subr.mxu0 0.0
  %1106 = vmatpush1.msra.mxu0 %v31
  %1107 = vmatprep.subr.mxu0 0.0
  %1108 = vmatpush2.msra.mxu0 0.0
  %1109 = vmatprep.subr.mxu0 0.0
  %1110 = vmatpush2.msra.mxu0 0.0
  %1111 = vmatprep.subr.mxu0 0.0
  %1112 = vmatpush2.msra.mxu0 0.0
  %1113 = vmatprep.subr.mxu0 0.0
  %1114 = vmatpush2.msra.mxu0 0.0
  %1115 = vmatprep.subr.mxu0 0.0
  %1116 = vmatpush2.msra.mxu0 0.0
  %1117 = vmatprep.subr.mxu0 0.0
  %1118 = vmatpush2.msra.mxu0 0.0
  %1119 = vmatprep.subr.mxu0 0.0
  %1120 = vmatpush2.msra.mxu0 0.0
  %1121 = vmatprep.subr.mxu0 0.0
  %1122 = vmatpush2.msra.mxu0 0.0
  %1123 = vmatprep.subr.mxu0 0.0
  %1124 = vmatpush2.msra.mxu0 0.0
  %1125 = vmatprep.subr.mxu0 0.0
  %1126 = vmatpush2.msra.mxu0 0.0
  %1127 = vmatprep.subr.mxu0 0.0
  %1128 = vmatpush2.msra.mxu0 0.0
  %1129 = vmatprep.subr.mxu0 0.0
  %1130 = vmatpush2.msra.mxu0 0.0
  %1131 = vmatprep.subr.mxu0 0.0
  %1132 = vmatpush2.msra.mxu0 0.0
  %1133 = vmatprep.subr.mxu0 0.0
  %1134 = vmatpush2.msra.mxu0 0.0
  %1135 = vmatprep.subr.mxu0 0.0
  %1136 = vmatpush2.msra.mxu0 0.0
  %1137 = vmatprep.subr.mxu0 0.0
  %1138 = vmatpush2.msra.mxu0 0.0
  %1139 = vmatprep.mubr.f32.mxu0 0.0
  %1140 = vmatmul.mubr.f32.gmra.mxu0 %v1052
  %v1141 = vpop.f32.mrf.mxu0
  %v1142 = vadd.f32 0.0, %v1141
  %v1143 = vpop.f32.mrf.mxu0
  %1144 = vmatprep.mubr.f32.mxu0 0.0
  %1145 = vmatmul.mubr.f32.gmra.mxu0 %v1055
  %v1146 = vpop.f32.mrf.mxu0
  %v1147 = vadd.f32 0.0, %v1146
  %v1148 = vpop.f32.mrf.mxu0
  %1149 = vmatprep.mubr.f32.mxu0 0.0
  %1150 = vmatmul.mubr.f32.gmra.mxu0 %v1058
  %v1151 = vpop.f32.mrf.mxu0
  %v1152 = vadd.f32 0.0, %v1151
  %v1153 = vpop.f32.mrf.mxu0
  %1154 = vmatprep.mubr.f32.mxu0 0.0
  %1155 = vmatmul.mubr.f32.gmra.mxu0 %v1061
  %v1156 = vpop.f32.mrf.mxu0
  %v1157 = vadd.f32 0.0, %v1156
  %v1158 = vpop.f32.mrf.mxu0
  %1159 = vmatprep.mubr.f32.mxu0 0.0
  %1160 = vmatmul.mubr.f32.gmra.mxu0 %v1064
  %v1161 = vpop.f32.mrf.mxu0
  %v1162 = vadd.f32 0.0, %v1161
  %v1163 = vpop.f32.mrf.mxu0
  %1164 = vmatprep.mubr.f32.mxu0 0.0
  %1165 = vmatmul.mubr.f32.gmra.mxu0 %v1067
  %v1166 = vpop.f32.mrf.mxu0
  %v1167 = vadd.f32 0.0, %v1166
  %v1168 = vpop.f32.mrf.mxu0
  %1169 = vmatprep.mubr.f32.mxu0 0.0
  %1170 = vmatmul.mubr.f32.gmra.mxu0 %v1070
  %v1171 = vpop.f32.mrf.mxu0
  %v1172 = vadd.f32 0.0, %v1171
  %v1173 = vpop.f32.mrf.mxu0
  %1174 = vmatprep.mubr.f32.mxu0 0.0
  %1175 = vmatmul.mubr.f32.gmra.mxu0 %v1073
  %v1176 = vpop.f32.mrf.mxu0
  %v1177 = vadd.f32 0.0, %v1176
  %v1178 = vpop.f32.mrf.mxu0
  %1179 = vdwg.mxu0
  %1181 = vrot.lane.b32.xlu0 %v1049, 32
  %v1182 = vpop.permute.xlu0 %1181
  %v1185 = vsel %vm1050, %v50, 0
  %v1188 = vsel %vm1050, %v51, 0
  %v1191 = vsel %vm1050, %v52, 0
  %v1194 = vsel %vm1050, %v53, 0
  %v1197 = vsel %vm1050, %v54, 0
  %v1200 = vsel %vm1050, %v55, 0
  %v1203 = vsel %vm1050, %v56, 0
  %v1206 = vsel %vm1050, %v57, 0
  %1208 = vmatprep.subr.mxu0 0.0
  %1209 = vmatpush1.msra.mxu0 0.0
  %1210 = vmatprep.subr.mxu0 0.0
  %1211 = vmatpush1.msra.mxu0 0.0
  %1212 = vmatprep.subr.mxu0 0.0
  %1213 = vmatpush1.msra.mxu0 0.0
  %1214 = vmatprep.subr.mxu0 0.0
  %1215 = vmatpush1.msra.mxu0 0.0
  %1216 = vmatprep.subr.mxu0 0.0
  %1217 = vmatpush1.msra.mxu0 0.0
  %1218 = vmatprep.subr.mxu0 0.0
  %1219 = vmatpush1.msra.mxu0 0.0
  %1220 = vmatprep.subr.mxu0 0.0
  %1221 = vmatpush1.msra.mxu0 0.0
  %1222 = vmatprep.subr.mxu0 0.0
  %1223 = vmatpush1.msra.mxu0 0.0
  %1224 = vmatprep.subr.mxu0 0.0
  %1225 = vmatpush1.msra.mxu0 0.0
  %1226 = vmatprep.subr.mxu0 0.0
  %1227 = vmatpush1.msra.mxu0 0.0
  %1228 = vmatprep.subr.mxu0 0.0
  %1229 = vmatpush1.msra.mxu0 0.0
  %1230 = vmatprep.subr.mxu0 0.0
  %1231 = vmatpush1.msra.mxu0 0.0
  %1232 = vmatprep.subr.mxu0 0.0
  %1233 = vmatpush1.msra.mxu0 0.0
  %1234 = vmatprep.subr.mxu0 0.0
  %1235 = vmatpush1.msra.mxu0 0.0
  %1236 = vmatprep.subr.mxu0 0.0
  %1237 = vmatpush1.msra.mxu0 0.0
  %1238 = vmatprep.subr.mxu0 0.0
  %1239 = vmatpush1.msra.mxu0 %v1182
  %1240 = vmatprep.subr.mxu0 0.0
  %1241 = vmatpush2.msra.mxu0 0.0
  %1242 = vmatprep.subr.mxu0 0.0
  %1243 = vmatpush2.msra.mxu0 0.0
  %1244 = vmatprep.subr.mxu0 0.0
  %1245 = vmatpush2.msra.mxu0 0.0
  %1246 = vmatprep.subr.mxu0 0.0
  %1247 = vmatpush2.msra.mxu0 0.0
  %1248 = vmatprep.subr.mxu0 0.0
  %1249 = vmatpush2.msra.mxu0 0.0
  %1250 = vmatprep.subr.mxu0 0.0
  %1251 = vmatpush2.msra.mxu0 0.0
  %1252 = vmatprep.subr.mxu0 0.0
  %1253 = vmatpush2.msra.mxu0 0.0
  %1254 = vmatprep.subr.mxu0 0.0
  %1255 = vmatpush2.msra.mxu0 0.0
  %1256 = vmatprep.subr.mxu0 0.0
  %1257 = vmatpush2.msra.mxu0 0.0
  %1258 = vmatprep.subr.mxu0 0.0
  %1259 = vmatpush2.msra.mxu0 0.0
  %1260 = vmatprep.subr.mxu0 0.0
  %1261 = vmatpush2.msra.mxu0 0.0
  %1262 = vmatprep.subr.mxu0 0.0
  %1263 = vmatpush2.msra.mxu0 0.0
  %1264 = vmatprep.subr.mxu0 0.0
  %1265 = vmatpush2.msra.mxu0 0.0
  %1266 = vmatprep.subr.mxu0 0.0
  %1267 = vmatpush2.msra.mxu0 0.0
  %1268 = vmatprep.subr.mxu0 0.0
  %1269 = vmatpush2.msra.mxu0 0.0
  %1270 = vmatprep.subr.mxu0 0.0
  %1271 = vmatpush2.msra.mxu0 0.0
  %1272 = vmatprep.mubr.f32.mxu0 0.0
  %1273 = vmatmul.mubr.f32.gmra.mxu0 %v1185
  %v1274 = vpop.f32.mrf.mxu0
  %v1275 = vadd.f32 0.0, %v1274
  %v1276 = vpop.f32.mrf.mxu0
  %1277 = vmatprep.mubr.f32.mxu0 0.0
  %1278 = vmatmul.mubr.f32.gmra.mxu0 %v1188
  %v1279 = vpop.f32.mrf.mxu0
  %v1280 = vadd.f32 0.0, %v1279
  %v1281 = vpop.f32.mrf.mxu0
  %1282 = vmatprep.mubr.f32.mxu0 0.0
  %1283 = vmatmul.mubr.f32.gmra.mxu0 %v1191
  %v1284 = vpop.f32.mrf.mxu0
  %v1285 = vadd.f32 0.0, %v1284
  %v1286 = vpop.f32.mrf.mxu0
  %1287 = vmatprep.mubr.f32.mxu0 0.0
  %1288 = vmatmul.mubr.f32.gmra.mxu0 %v1194
  %v1289 = vpop.f32.mrf.mxu0
  %v1290 = vadd.f32 0.0, %v1289
  %v1291 = vpop.f32.mrf.mxu0
  %1292 = vmatprep.mubr.f32.mxu0 0.0
  %1293 = vmatmul.mubr.f32.gmra.mxu0 %v1197
  %v1294 = vpop.f32.mrf.mxu0
  %v1295 = vadd.f32 0.0, %v1294
  %v1296 = vpop.f32.mrf.mxu0
  %1297 = vmatprep.mubr.f32.mxu0 0.0
  %1298 = vmatmul.mubr.f32.gmra.mxu0 %v1200
  %v1299 = vpop.f32.mrf.mxu0
  %v1300 = vadd.f32 0.0, %v1299
  %v1301 = vpop.f32.mrf.mxu0
  %1302 = vmatprep.mubr.f32.mxu0 0.0
  %1303 = vmatmul.mubr.f32.gmra.mxu0 %v1203
  %v1304 = vpop.f32.mrf.mxu0
  %v1305 = vadd.f32 0.0, %v1304
  %v1306 = vpop.f32.mrf.mxu0
  %1307 = vmatprep.mubr.f32.mxu0 0.0
  %1308 = vmatmul.mubr.f32.gmra.mxu0 %v1206
  %v1309 = vpop.f32.mrf.mxu0
  %v1310 = vadd.f32 0.0, %v1309
  %v1311 = vpop.f32.mrf.mxu0
  %1312 = vdwg.mxu0
  %v1313 = vld [vmem:[%s5 + $0x98] sm:$0x3]
  %v1314 = vld [vmem:[%s5 + $0x9a] sm:$0x1]
  %1316 = vset.pattern.permute.xlu0 0
  %1317 = vperm.xlu0 %1316, %v1142
  %v1318 = vpop.permute.xlu0 %1317
  %1321 = vset.pattern.permute.xlu0 0
  %1322 = vperm.xlu0 %1321, %v1147
  %v1323 = vpop.permute.xlu0 %1322
  %1326 = vset.pattern.permute.xlu0 0
  %1327 = vperm.xlu0 %1326, %v1152
  %v1328 = vpop.permute.xlu0 %1327
  %1331 = vset.pattern.permute.xlu0 0
  %1332 = vperm.xlu0 %1331, %v1157
  %v1333 = vpop.permute.xlu0 %1332
  %1336 = vset.pattern.permute.xlu0 0
  %1337 = vperm.xlu0 %1336, %v1162
  %v1338 = vpop.permute.xlu0 %1337
  %1341 = vset.pattern.permute.xlu0 0
  %1342 = vperm.xlu0 %1341, %v1167
  %v1343 = vpop.permute.xlu0 %1342
  %1346 = vset.pattern.permute.xlu0 0
  %1347 = vperm.xlu0 %1346, %v1172
  %v1348 = vpop.permute.xlu0 %1347
  %1351 = vset.pattern.permute.xlu0 0
  %1352 = vperm.xlu0 %1351, %v1177
  %v1353 = vpop.permute.xlu0 %1352
  %v1355 = vlaneseq
  %v1356 = vshrl.u32 %v1355, 7
  %v1357 = vsub.s32 0, %v1356
  %v1358 = vrot.slane %v1313, %v1357
  %v1359 = vmul.f32 %v1318, %v1358
  %v1360 = vmul.f32 %v1323, %v1358
  %v1361 = vmul.f32 %v1328, %v1358
  %v1362 = vmul.f32 %v1333, %v1358
  %v1363 = vmul.f32 %v1338, %v1358
  %v1364 = vmul.f32 %v1343, %v1358
  %v1365 = vmul.f32 %v1348, %v1358
  %v1366 = vmul.f32 %v1353, %v1358
  %1367 = vset.pattern.permute.xlu0 1
  %1368 = vperm.xlu0 %1367, %v1142
  %v1369 = vpop.permute.xlu0 %1368
  %1371 = vset.pattern.permute.xlu0 1
  %1372 = vperm.xlu0 %1371, %v1147
  %v1373 = vpop.permute.xlu0 %1372
  %1375 = vset.pattern.permute.xlu0 1
  %1376 = vperm.xlu0 %1375, %v1152
  %v1377 = vpop.permute.xlu0 %1376
  %1379 = vset.pattern.permute.xlu0 1
  %1380 = vperm.xlu0 %1379, %v1157
  %v1381 = vpop.permute.xlu0 %1380
  %1383 = vset.pattern.permute.xlu0 1
  %1384 = vperm.xlu0 %1383, %v1162
  %v1385 = vpop.permute.xlu0 %1384
  %1387 = vset.pattern.permute.xlu0 1
  %1388 = vperm.xlu0 %1387, %v1167
  %v1389 = vpop.permute.xlu0 %1388
  %1391 = vset.pattern.permute.xlu0 1
  %1392 = vperm.xlu0 %1391, %v1172
  %v1393 = vpop.permute.xlu0 %1392
  %1395 = vset.pattern.permute.xlu0 1
  %1396 = vperm.xlu0 %1395, %v1177
  %v1397 = vpop.permute.xlu0 %1396
  %v1399 = vlaneseq
  %v1400 = vshrl.u32 %v1399, 7
  %v1401 = vsub.s32 1, %v1400
  %v1402 = vrot.slane %v1313, %v1401
  %v1403 = vmul.f32 %v1369, %v1402
  %v1404 = vmul.f32 %v1373, %v1402
  %v1405 = vmul.f32 %v1377, %v1402
  %v1406 = vmul.f32 %v1381, %v1402
  %v1407 = vmul.f32 %v1385, %v1402
  %v1408 = vmul.f32 %v1389, %v1402
  %v1409 = vmul.f32 %v1393, %v1402
  %v1410 = vmul.f32 %v1397, %v1402
  %v1411 = vadd.f32 %v1359, %v1403
  %v1412 = vadd.f32 %v1360, %v1404
  %v1413 = vadd.f32 %v1361, %v1405
  %v1414 = vadd.f32 %v1362, %v1406
  %v1415 = vadd.f32 %v1363, %v1407
  %v1416 = vadd.f32 %v1364, %v1408
  %v1417 = vadd.f32 %v1365, %v1409
  %v1418 = vadd.f32 %v1366, %v1410
  %v1419 = vlaneseq
  %v1420 = vshrl.u32 %v1419, 7
  %v1421 = vsub.s32 0, %v1420
  %v1422 = vrot.slane %v1314, %v1421
  %v1423 = vadd.f32 %v1411, %v1422
  %v1424 = vadd.f32 %v1412, %v1422
  %v1425 = vadd.f32 %v1413, %v1422
  %v1426 = vadd.f32 %v1414, %v1422
  %v1427 = vadd.f32 %v1415, %v1422
  %v1428 = vadd.f32 %v1416, %v1422
  %v1429 = vadd.f32 %v1417, %v1422
  %v1430 = vadd.f32 %v1418, %v1422
  %v1431 = vld [vmem:[%s3] sm:$0xff]
  %v1432 = vld [vmem:[%s3 + $0x8] sm:$0xff]
  %v1433 = vld [vmem:[%s3 + $0x10] sm:$0xff]
  %v1434 = vld [vmem:[%s3 + $0x18] sm:$0xff]
  %v1435 = vld [vmem:[%s3 + $0x20] sm:$0xff]
  %v1436 = vld [vmem:[%s3 + $0x28] sm:$0xff]
  %v1437 = vld [vmem:[%s3 + $0x30] sm:$0xff]
  %v1438 = vld [vmem:[%s3 + $0x38] sm:$0xff]
  %v1439 = vld [vmem:[%s3 + $0x40] sm:$0xff]
  %v1440 = vld [vmem:[%s3 + $0x48] sm:$0xff]
  %v1441 = vld [vmem:[%s3 + $0x50] sm:$0xff]
  %v1442 = vld [vmem:[%s3 + $0x58] sm:$0xff]
  %v1443 = vld [vmem:[%s3 + $0x60] sm:$0xff]
  %v1444 = vld [vmem:[%s3 + $0x68] sm:$0xff]
  %v1445 = vld [vmem:[%s3 + $0x70] sm:$0xff]
  %v1446 = vld [vmem:[%s3 + $0x78] sm:$0xff]
  %v1447 = vld [vmem:[%s3 + $0x80] sm:$0xff]
  %v1448 = vld [vmem:[%s3 + $0x88] sm:$0xff]
  %v1449 = vld [vmem:[%s3 + $0x90] sm:$0xff]
  %v1450 = vld [vmem:[%s3 + $0x98] sm:$0xff]
  %v1451 = vld [vmem:[%s3 + $0xa0] sm:$0xff]
  %v1452 = vld [vmem:[%s3 + $0xa8] sm:$0xff]
  %v1453 = vld [vmem:[%s3 + $0xb0] sm:$0xff]
  %v1454 = vld [vmem:[%s3 + $0xb8] sm:$0xff]
  %s1455 = scalar_lea.vmem %s3, 192
  %v1456 = vld [vmem:[%s1455] ss:$8 sm:$0xf]
  %v1458 = vsel %vm345, %v1275, 0
  %v1461 = vsel %vm345, %v1280, 0
  %v1464 = vsel %vm345, %v1285, 0
  %v1467 = vsel %vm345, %v1290, 0
  %v1470 = vsel %vm345, %v1295, 0
  %v1473 = vsel %vm345, %v1300, 0
  %v1476 = vsel %vm345, %v1305, 0
  %v1479 = vsel %vm345, %v1310, 0
  %1481 = vmatprep.subr.mxu0 0.0
  %1482 = vmatpush1.msra.mxu0 0.0
  %1483 = vmatprep.subr.mxu0 0.0
  %1484 = vmatpush1.msra.mxu0 0.0
  %1485 = vmatprep.subr.mxu0 0.0
  %1486 = vmatpush1.msra.mxu0 0.0
  %1487 = vmatprep.subr.mxu0 0.0
  %1488 = vmatpush1.msra.mxu0 0.0
  %1489 = vmatprep.subr.mxu0 0.0
  %1490 = vmatpush1.msra.mxu0 0.0
  %1491 = vmatprep.subr.mxu0 0.0
  %1492 = vmatpush1.msra.mxu0 0.0
  %1493 = vmatprep.subr.mxu0 0.0
  %1494 = vmatpush1.msra.mxu0 0.0
  %1495 = vmatprep.subr.mxu0 0.0
  %1496 = vmatpush1.msra.mxu0 0.0
  %1497 = vmatprep.subr.mxu0 0.0
  %1498 = vmatpush1.msra.mxu0 0.0
  %1499 = vmatprep.subr.mxu0 0.0
  %1500 = vmatpush1.msra.mxu0 0.0
  %1501 = vmatprep.subr.mxu0 0.0
  %1502 = vmatpush1.msra.mxu0 0.0
  %1503 = vmatprep.subr.mxu0 0.0
  %1504 = vmatpush1.msra.mxu0 0.0
  %1505 = vmatprep.subr.mxu0 %v1452
  %1506 = vmatpush1.msra.mxu0 %v1451
  %1507 = vmatprep.subr.mxu0 %v1448
  %1508 = vmatpush1.msra.mxu0 %v1447
  %1509 = vmatprep.subr.mxu0 %v1444
  %1510 = vmatpush1.msra.mxu0 %v1443
  %1511 = vmatprep.subr.mxu0 %v1440
  %1512 = vmatpush1.msra.mxu0 %v1439
  %1513 = vmatprep.subr.mxu0 0.0
  %1514 = vmatpush2.msra.mxu0 0.0
  %1515 = vmatprep.subr.mxu0 0.0
  %1516 = vmatpush2.msra.mxu0 0.0
  %1517 = vmatprep.subr.mxu0 0.0
  %1518 = vmatpush2.msra.mxu0 0.0
  %1519 = vmatprep.subr.mxu0 0.0
  %1520 = vmatpush2.msra.mxu0 0.0
  %1521 = vmatprep.subr.mxu0 0.0
  %1522 = vmatpush2.msra.mxu0 0.0
  %1523 = vmatprep.subr.mxu0 0.0
  %1524 = vmatpush2.msra.mxu0 0.0
  %1525 = vmatprep.subr.mxu0 0.0
  %1526 = vmatpush2.msra.mxu0 0.0
  %1527 = vmatprep.subr.mxu0 0.0
  %1528 = vmatpush2.msra.mxu0 0.0
  %1529 = vmatprep.subr.mxu0 0.0
  %1530 = vmatpush2.msra.mxu0 0.0
  %1531 = vmatprep.subr.mxu0 0.0
  %1532 = vmatpush2.msra.mxu0 0.0
  %1533 = vmatprep.subr.mxu0 0.0
  %1534 = vmatpush2.msra.mxu0 0.0
  %1535 = vmatprep.subr.mxu0 0.0
  %1536 = vmatpush2.msra.mxu0 0.0
  %1537 = vmatprep.subr.mxu0 0.0
  %1538 = vmatpush2.msra.mxu0 0.0
  %1539 = vmatprep.subr.mxu0 0.0
  %1540 = vmatpush2.msra.mxu0 0.0
  %1541 = vmatprep.subr.mxu0 0.0
  %1542 = vmatpush2.msra.mxu0 0.0
  %1543 = vmatprep.subr.mxu0 0.0
  %1544 = vmatpush2.msra.mxu0 0.0
  %1545 = vmatprep.mubr.f32.mxu0 0.0
  %1546 = vmatmul.mubr.f32.gmra.mxu0 %v1458
  %v1547 = vpop.f32.mrf.mxu0
  %v1548 = vadd.f32 0.0, %v1547
  %v1549 = vpop.f32.mrf.mxu0
  %v1550 = vadd.f32 0.0, %v1549
  %1551 = vmatprep.mubr.f32.mxu0 0.0
  %1552 = vmatmul.mubr.f32.gmra.mxu0 %v1461
  %v1553 = vpop.f32.mrf.mxu0
  %v1554 = vadd.f32 0.0, %v1553
  %v1555 = vpop.f32.mrf.mxu0
  %v1556 = vadd.f32 0.0, %v1555
  %1557 = vmatprep.mubr.f32.mxu0 0.0
  %1558 = vmatmul.mubr.f32.gmra.mxu0 %v1464
  %v1559 = vpop.f32.mrf.mxu0
  %v1560 = vadd.f32 0.0, %v1559
  %v1561 = vpop.f32.mrf.mxu0
  %v1562 = vadd.f32 0.0, %v1561
  %1563 = vmatprep.mubr.f32.mxu0 0.0
  %1564 = vmatmul.mubr.f32.gmra.mxu0 %v1467
  %v1565 = vpop.f32.mrf.mxu0
  %v1566 = vadd.f32 0.0, %v1565
  %v1567 = vpop.f32.mrf.mxu0
  %v1568 = vadd.f32 0.0, %v1567
  %1569 = vmatprep.mubr.f32.mxu0 0.0
  %1570 = vmatmul.mubr.f32.gmra.mxu0 %v1470
  %v1571 = vpop.f32.mrf.mxu0
  %v1572 = vadd.f32 0.0, %v1571
  %v1573 = vpop.f32.mrf.mxu0
  %v1574 = vadd.f32 0.0, %v1573
  %1575 = vmatprep.mubr.f32.mxu0 0.0
  %1576 = vmatmul.mubr.f32.gmra.mxu0 %v1473
  %v1577 = vpop.f32.mrf.mxu0
  %v1578 = vadd.f32 0.0, %v1577
  %v1579 = vpop.f32.mrf.mxu0
  %v1580 = vadd.f32 0.0, %v1579
  %1581 = vmatprep.mubr.f32.mxu0 0.0
  %1582 = vmatmul.mubr.f32.gmra.mxu0 %v1476
  %v1583 = vpop.f32.mrf.mxu0
  %v1584 = vadd.f32 0.0, %v1583
  %v1585 = vpop.f32.mrf.mxu0
  %v1586 = vadd.f32 0.0, %v1585
  %1587 = vmatprep.mubr.f32.mxu0 0.0
  %1588 = vmatmul.mubr.f32.gmra.mxu0 %v1479
  %v1589 = vpop.f32.mrf.mxu0
  %v1590 = vadd.f32 0.0, %v1589
  %v1591 = vpop.f32.mrf.mxu0
  %v1592 = vadd.f32 0.0, %v1591
  %1593 = vdwg.mxu0
  %1594 = vmatprep.subr.mxu0 0.0
  %1595 = vmatpush1.msra.mxu0 0.0
  %1596 = vmatprep.subr.mxu0 0.0
  %1597 = vmatpush1.msra.mxu0 0.0
  %1598 = vmatprep.subr.mxu0 0.0
  %1599 = vmatpush1.msra.mxu0 0.0
  %1600 = vmatprep.subr.mxu0 0.0
  %1601 = vmatpush1.msra.mxu0 0.0
  %1602 = vmatprep.subr.mxu0 0.0
  %1603 = vmatpush1.msra.mxu0 0.0
  %1604 = vmatprep.subr.mxu0 0.0
  %1605 = vmatpush1.msra.mxu0 0.0
  %1606 = vmatprep.subr.mxu0 0.0
  %1607 = vmatpush1.msra.mxu0 0.0
  %1608 = vmatprep.subr.mxu0 0.0
  %1609 = vmatpush1.msra.mxu0 0.0
  %1610 = vmatprep.subr.mxu0 0.0
  %1611 = vmatpush1.msra.mxu0 0.0
  %1612 = vmatprep.subr.mxu0 0.0
  %1613 = vmatpush1.msra.mxu0 0.0
  %1614 = vmatprep.subr.mxu0 0.0
  %1615 = vmatpush1.msra.mxu0 0.0
  %1616 = vmatprep.subr.mxu0 0.0
  %1617 = vmatpush1.msra.mxu0 0.0
  %1618 = vmatprep.subr.mxu0 %v1454
  %1619 = vmatpush1.msra.mxu0 %v1453
  %1620 = vmatprep.subr.mxu0 %v1450
  %1621 = vmatpush1.msra.mxu0 %v1449
  %1622 = vmatprep.subr.mxu0 %v1446
  %1623 = vmatpush1.msra.mxu0 %v1445
  %1624 = vmatprep.subr.mxu0 %v1442
  %1625 = vmatpush1.msra.mxu0 %v1441
  %1626 = vmatprep.subr.mxu0 0.0
  %1627 = vmatpush2.msra.mxu0 0.0
  %1628 = vmatprep.subr.mxu0 0.0
  %1629 = vmatpush2.msra.mxu0 0.0
  %1630 = vmatprep.subr.mxu0 0.0
  %1631 = vmatpush2.msra.mxu0 0.0
  %1632 = vmatprep.subr.mxu0 0.0
  %1633 = vmatpush2.msra.mxu0 0.0
  %1634 = vmatprep.subr.mxu0 0.0
  %1635 = vmatpush2.msra.mxu0 0.0
  %1636 = vmatprep.subr.mxu0 0.0
  %1637 = vmatpush2.msra.mxu0 0.0
  %1638 = vmatprep.subr.mxu0 0.0
  %1639 = vmatpush2.msra.mxu0 0.0
  %1640 = vmatprep.subr.mxu0 0.0
  %1641 = vmatpush2.msra.mxu0 0.0
  %1642 = vmatprep.subr.mxu0 0.0
  %1643 = vmatpush2.msra.mxu0 0.0
  %1644 = vmatprep.subr.mxu0 0.0
  %1645 = vmatpush2.msra.mxu0 0.0
  %1646 = vmatprep.subr.mxu0 0.0
  %1647 = vmatpush2.msra.mxu0 0.0
  %1648 = vmatprep.subr.mxu0 0.0
  %1649 = vmatpush2.msra.mxu0 0.0
  %1650 = vmatprep.subr.mxu0 0.0
  %1651 = vmatpush2.msra.mxu0 0.0
  %1652 = vmatprep.subr.mxu0 0.0
  %1653 = vmatpush2.msra.mxu0 0.0
  %1654 = vmatprep.subr.mxu0 0.0
  %1655 = vmatpush2.msra.mxu0 0.0
  %1656 = vmatprep.subr.mxu0 0.0
  %1657 = vmatpush2.msra.mxu0 0.0
  %1658 = vmatprep.mubr.f32.mxu0 0.0
  %1659 = vmatmul.mubr.f32.gmra.mxu0 %v1458
  %v1660 = vpop.f32.mrf.mxu0
  %v1661 = vadd.f32 0.0, %v1660
  %v1662 = vpop.f32.mrf.mxu0
  %v1663 = vadd.f32 0.0, %v1662
  %1664 = vmatprep.mubr.f32.mxu0 0.0
  %1665 = vmatmul.mubr.f32.gmra.mxu0 %v1461
  %v1666 = vpop.f32.mrf.mxu0
  %v1667 = vadd.f32 0.0, %v1666
  %v1668 = vpop.f32.mrf.mxu0
  %v1669 = vadd.f32 0.0, %v1668
  %1670 = vmatprep.mubr.f32.mxu0 0.0
  %1671 = vmatmul.mubr.f32.gmra.mxu0 %v1464
  %v1672 = vpop.f32.mrf.mxu0
  %v1673 = vadd.f32 0.0, %v1672
  %v1674 = vpop.f32.mrf.mxu0
  %v1675 = vadd.f32 0.0, %v1674
  %1676 = vmatprep.mubr.f32.mxu0 0.0
  %1677 = vmatmul.mubr.f32.gmra.mxu0 %v1467
  %v1678 = vpop.f32.mrf.mxu0
  %v1679 = vadd.f32 0.0, %v1678
  %v1680 = vpop.f32.mrf.mxu0
  %v1681 = vadd.f32 0.0, %v1680
  %1682 = vmatprep.mubr.f32.mxu0 0.0
  %1683 = vmatmul.mubr.f32.gmra.mxu0 %v1470
  %v1684 = vpop.f32.mrf.mxu0
  %v1685 = vadd.f32 0.0, %v1684
  %v1686 = vpop.f32.mrf.mxu0
  %v1687 = vadd.f32 0.0, %v1686
  %1688 = vmatprep.mubr.f32.mxu0 0.0
  %1689 = vmatmul.mubr.f32.gmra.mxu0 %v1473
  %v1690 = vpop.f32.mrf.mxu0
  %v1691 = vadd.f32 0.0, %v1690
  %v1692 = vpop.f32.mrf.mxu0
  %v1693 = vadd.f32 0.0, %v1692
  %1694 = vmatprep.mubr.f32.mxu0 0.0
  %1695 = vmatmul.mubr.f32.gmra.mxu0 %v1476
  %v1696 = vpop.f32.mrf.mxu0
  %v1697 = vadd.f32 0.0, %v1696
  %v1698 = vpop.f32.mrf.mxu0
  %v1699 = vadd.f32 0.0, %v1698
  %1700 = vmatprep.mubr.f32.mxu0 0.0
  %1701 = vmatmul.mubr.f32.gmra.mxu0 %v1479
  %v1702 = vpop.f32.mrf.mxu0
  %v1703 = vadd.f32 0.0, %v1702
  %v1704 = vpop.f32.mrf.mxu0
  %v1705 = vadd.f32 0.0, %v1704
  %1706 = vdwg.mxu0
  %v1708 = vsel %vm187, %v1423, 0
  %v1711 = vsel %vm187, %v1424, 0
  %v1714 = vsel %vm187, %v1425, 0
  %v1717 = vsel %vm187, %v1426, 0
  %v1720 = vsel %vm187, %v1427, 0
  %v1723 = vsel %vm187, %v1428, 0
  %v1726 = vsel %vm187, %v1429, 0
  %v1729 = vsel %vm187, %v1430, 0
  %1731 = vmatprep.subr.mxu0 0.0
  %1732 = vmatpush1.msra.mxu0 0.0
  %1733 = vmatprep.subr.mxu0 0.0
  %1734 = vmatpush1.msra.mxu0 0.0
  %1735 = vmatprep.subr.mxu0 0.0
  %1736 = vmatpush1.msra.mxu0 0.0
  %1737 = vmatprep.subr.mxu0 0.0
  %1738 = vmatpush1.msra.mxu0 0.0
  %1739 = vmatprep.subr.mxu0 0.0
  %1740 = vmatpush1.msra.mxu0 0.0
  %1741 = vmatprep.subr.mxu0 0.0
  %1742 = vmatpush1.msra.mxu0 0.0
  %1743 = vmatprep.subr.mxu0 0.0
  %1744 = vmatpush1.msra.mxu0 0.0
  %1745 = vmatprep.subr.mxu0 0.0
  %1746 = vmatpush1.msra.mxu0 0.0
  %1747 = vmatprep.subr.mxu0 0.0
  %1748 = vmatpush1.msra.mxu0 0.0
  %1749 = vmatprep.subr.mxu0 0.0
  %1750 = vmatpush1.msra.mxu0 0.0
  %1751 = vmatprep.subr.mxu0 0.0
  %1752 = vmatpush1.msra.mxu0 0.0
  %1753 = vmatprep.subr.mxu0 0.0
  %1754 = vmatpush1.msra.mxu0 0.0
  %1755 = vmatprep.subr.mxu0 0.0
  %1756 = vmatpush1.msra.mxu0 0.0
  %1757 = vmatprep.subr.mxu0 0.0
  %1758 = vmatpush1.msra.mxu0 0.0
  %1759 = vmatprep.subr.mxu0 %v1436
  %1760 = vmatpush1.msra.mxu0 %v1435
  %1761 = vmatprep.subr.mxu0 %v1432
  %1762 = vmatpush1.msra.mxu0 %v1431
  %1763 = vmatprep.subr.mxu0 0.0
  %1764 = vmatpush2.msra.mxu0 0.0
  %1765 = vmatprep.subr.mxu0 0.0
  %1766 = vmatpush2.msra.mxu0 0.0
  %1767 = vmatprep.subr.mxu0 0.0
  %1768 = vmatpush2.msra.mxu0 0.0
  %1769 = vmatprep.subr.mxu0 0.0
  %1770 = vmatpush2.msra.mxu0 0.0
  %1771 = vmatprep.subr.mxu0 0.0
  %1772 = vmatpush2.msra.mxu0 0.0
  %1773 = vmatprep.subr.mxu0 0.0
  %1774 = vmatpush2.msra.mxu0 0.0
  %1775 = vmatprep.subr.mxu0 0.0
  %1776 = vmatpush2.msra.mxu0 0.0
  %1777 = vmatprep.subr.mxu0 0.0
  %1778 = vmatpush2.msra.mxu0 0.0
  %1779 = vmatprep.subr.mxu0 0.0
  %1780 = vmatpush2.msra.mxu0 0.0
  %1781 = vmatprep.subr.mxu0 0.0
  %1782 = vmatpush2.msra.mxu0 0.0
  %1783 = vmatprep.subr.mxu0 0.0
  %1784 = vmatpush2.msra.mxu0 0.0
  %1785 = vmatprep.subr.mxu0 0.0
  %1786 = vmatpush2.msra.mxu0 0.0
  %1787 = vmatprep.subr.mxu0 0.0
  %1788 = vmatpush2.msra.mxu0 0.0
  %1789 = vmatprep.subr.mxu0 0.0
  %1790 = vmatpush2.msra.mxu0 0.0
  %1791 = vmatprep.subr.mxu0 0.0
  %1792 = vmatpush2.msra.mxu0 0.0
  %1793 = vmatprep.subr.mxu0 0.0
  %1794 = vmatpush2.msra.mxu0 0.0
  %1795 = vmatprep.mubr.f32.mxu0 0.0
  %1796 = vmatmul.mubr.f32.gmra.mxu0 %v1708
  %v1797 = vpop.f32.mrf.mxu0
  %v1798 = vadd.f32 %v1548, %v1797
  %v1799 = vpop.f32.mrf.mxu0
  %v1800 = vadd.f32 %v1550, %v1799
  %1801 = vmatprep.mubr.f32.mxu0 0.0
  %1802 = vmatmul.mubr.f32.gmra.mxu0 %v1711
  %v1803 = vpop.f32.mrf.mxu0
  %v1804 = vadd.f32 %v1554, %v1803
  %v1805 = vpop.f32.mrf.mxu0
  %v1806 = vadd.f32 %v1556, %v1805
  %1807 = vmatprep.mubr.f32.mxu0 0.0
  %1808 = vmatmul.mubr.f32.gmra.mxu0 %v1714
  %v1809 = vpop.f32.mrf.mxu0
  %v1810 = vadd.f32 %v1560, %v1809
  %v1811 = vpop.f32.mrf.mxu0
  %v1812 = vadd.f32 %v1562, %v1811
  %1813 = vmatprep.mubr.f32.mxu0 0.0
  %1814 = vmatmul.mubr.f32.gmra.mxu0 %v1717
  %v1815 = vpop.f32.mrf.mxu0
  %v1816 = vadd.f32 %v1566, %v1815
  %v1817 = vpop.f32.mrf.mxu0
  %v1818 = vadd.f32 %v1568, %v1817
  %1819 = vmatprep.mubr.f32.mxu0 0.0
  %1820 = vmatmul.mubr.f32.gmra.mxu0 %v1720
  %v1821 = vpop.f32.mrf.mxu0
  %v1822 = vadd.f32 %v1572, %v1821
  %v1823 = vpop.f32.mrf.mxu0
  %v1824 = vadd.f32 %v1574, %v1823
  %1825 = vmatprep.mubr.f32.mxu0 0.0
  %1826 = vmatmul.mubr.f32.gmra.mxu0 %v1723
  %v1827 = vpop.f32.mrf.mxu0
  %v1828 = vadd.f32 %v1578, %v1827
  %v1829 = vpop.f32.mrf.mxu0
  %v1830 = vadd.f32 %v1580, %v1829
  %1831 = vmatprep.mubr.f32.mxu0 0.0
  %1832 = vmatmul.mubr.f32.gmra.mxu0 %v1726
  %v1833 = vpop.f32.mrf.mxu0
  %v1834 = vadd.f32 %v1584, %v1833
  %v1835 = vpop.f32.mrf.mxu0
  %v1836 = vadd.f32 %v1586, %v1835
  %1837 = vmatprep.mubr.f32.mxu0 0.0
  %1838 = vmatmul.mubr.f32.gmra.mxu0 %v1729
  %v1839 = vpop.f32.mrf.mxu0
  %v1840 = vadd.f32 %v1590, %v1839
  %v1841 = vpop.f32.mrf.mxu0
  %v1842 = vadd.f32 %v1592, %v1841
  %1843 = vdwg.mxu0
  %1844 = vmatprep.subr.mxu0 0.0
  %1845 = vmatpush1.msra.mxu0 0.0
  %1846 = vmatprep.subr.mxu0 0.0
  %1847 = vmatpush1.msra.mxu0 0.0
  %1848 = vmatprep.subr.mxu0 0.0
  %1849 = vmatpush1.msra.mxu0 0.0
  %1850 = vmatprep.subr.mxu0 0.0
  %1851 = vmatpush1.msra.mxu0 0.0
  %1852 = vmatprep.subr.mxu0 0.0
  %1853 = vmatpush1.msra.mxu0 0.0
  %1854 = vmatprep.subr.mxu0 0.0
  %1855 = vmatpush1.msra.mxu0 0.0
  %1856 = vmatprep.subr.mxu0 0.0
  %1857 = vmatpush1.msra.mxu0 0.0
  %1858 = vmatprep.subr.mxu0 0.0
  %1859 = vmatpush1.msra.mxu0 0.0
  %1860 = vmatprep.subr.mxu0 0.0
  %1861 = vmatpush1.msra.mxu0 0.0
  %1862 = vmatprep.subr.mxu0 0.0
  %1863 = vmatpush1.msra.mxu0 0.0
  %1864 = vmatprep.subr.mxu0 0.0
  %1865 = vmatpush1.msra.mxu0 0.0
  %1866 = vmatprep.subr.mxu0 0.0
  %1867 = vmatpush1.msra.mxu0 0.0
  %1868 = vmatprep.subr.mxu0 0.0
  %1869 = vmatpush1.msra.mxu0 0.0
  %1870 = vmatprep.subr.mxu0 0.0
  %1871 = vmatpush1.msra.mxu0 0.0
  %1872 = vmatprep.subr.mxu0 %v1438
  %1873 = vmatpush1.msra.mxu0 %v1437
  %1874 = vmatprep.subr.mxu0 %v1434
  %1875 = vmatpush1.msra.mxu0 %v1433
  %1876 = vmatprep.subr.mxu0 0.0
  %1877 = vmatpush2.msra.mxu0 0.0
  %1878 = vmatprep.subr.mxu0 0.0
  %1879 = vmatpush2.msra.mxu0 0.0
  %1880 = vmatprep.subr.mxu0 0.0
  %1881 = vmatpush2.msra.mxu0 0.0
  %1882 = vmatprep.subr.mxu0 0.0
  %1883 = vmatpush2.msra.mxu0 0.0
  %1884 = vmatprep.subr.mxu0 0.0
  %1885 = vmatpush2.msra.mxu0 0.0
  %1886 = vmatprep.subr.mxu0 0.0
  %1887 = vmatpush2.msra.mxu0 0.0
  %1888 = vmatprep.subr.mxu0 0.0
  %1889 = vmatpush2.msra.mxu0 0.0
  %1890 = vmatprep.subr.mxu0 0.0
  %1891 = vmatpush2.msra.mxu0 0.0
  %1892 = vmatprep.subr.mxu0 0.0
  %1893 = vmatpush2.msra.mxu0 0.0
  %1894 = vmatprep.subr.mxu0 0.0
  %1895 = vmatpush2.msra.mxu0 0.0
  %1896 = vmatprep.subr.mxu0 0.0
  %1897 = vmatpush2.msra.mxu0 0.0
  %1898 = vmatprep.subr.mxu0 0.0
  %1899 = vmatpush2.msra.mxu0 0.0
  %1900 = vmatprep.subr.mxu0 0.0
  %1901 = vmatpush2.msra.mxu0 0.0
  %1902 = vmatprep.subr.mxu0 0.0
  %1903 = vmatpush2.msra.mxu0 0.0
  %1904 = vmatprep.subr.mxu0 0.0
  %1905 = vmatpush2.msra.mxu0 0.0
  %1906 = vmatprep.subr.mxu0 0.0
  %1907 = vmatpush2.msra.mxu0 0.0
  %1908 = vmatprep.mubr.f32.mxu0 0.0
  %1909 = vmatmul.mubr.f32.gmra.mxu0 %v1708
  %v1910 = vpop.f32.mrf.mxu0
  %v1911 = vadd.f32 %v1661, %v1910
  %v1912 = vpop.f32.mrf.mxu0
  %v1913 = vadd.f32 %v1663, %v1912
  %1914 = vmatprep.mubr.f32.mxu0 0.0
  %1915 = vmatmul.mubr.f32.gmra.mxu0 %v1711
  %v1916 = vpop.f32.mrf.mxu0
  %v1917 = vadd.f32 %v1667, %v1916
  %v1918 = vpop.f32.mrf.mxu0
  %v1919 = vadd.f32 %v1669, %v1918
  %1920 = vmatprep.mubr.f32.mxu0 0.0
  %1921 = vmatmul.mubr.f32.gmra.mxu0 %v1714
  %v1922 = vpop.f32.mrf.mxu0
  %v1923 = vadd.f32 %v1673, %v1922
  %v1924 = vpop.f32.mrf.mxu0
  %v1925 = vadd.f32 %v1675, %v1924
  %1926 = vmatprep.mubr.f32.mxu0 0.0
  %1927 = vmatmul.mubr.f32.gmra.mxu0 %v1717
  %v1928 = vpop.f32.mrf.mxu0
  %v1929 = vadd.f32 %v1679, %v1928
  %v1930 = vpop.f32.mrf.mxu0
  %v1931 = vadd.f32 %v1681, %v1930
  %1932 = vmatprep.mubr.f32.mxu0 0.0
  %1933 = vmatmul.mubr.f32.gmra.mxu0 %v1720
  %v1934 = vpop.f32.mrf.mxu0
  %v1935 = vadd.f32 %v1685, %v1934
  %v1936 = vpop.f32.mrf.mxu0
  %v1937 = vadd.f32 %v1687, %v1936
  %1938 = vmatprep.mubr.f32.mxu0 0.0
  %1939 = vmatmul.mubr.f32.gmra.mxu0 %v1723
  %v1940 = vpop.f32.mrf.mxu0
  %v1941 = vadd.f32 %v1691, %v1940
  %v1942 = vpop.f32.mrf.mxu0
  %v1943 = vadd.f32 %v1693, %v1942
  %1944 = vmatprep.mubr.f32.mxu0 0.0
  %1945 = vmatmul.mubr.f32.gmra.mxu0 %v1726
  %v1946 = vpop.f32.mrf.mxu0
  %v1947 = vadd.f32 %v1697, %v1946
  %v1948 = vpop.f32.mrf.mxu0
  %v1949 = vadd.f32 %v1699, %v1948
  %1950 = vmatprep.mubr.f32.mxu0 0.0
  %1951 = vmatmul.mubr.f32.gmra.mxu0 %v1729
  %v1952 = vpop.f32.mrf.mxu0
  %v1953 = vadd.f32 %v1703, %v1952
  %v1954 = vpop.f32.mrf.mxu0
  %v1955 = vadd.f32 %v1705, %v1954
  %1956 = vdwg.mxu0
  %v1958 = vlaneseq
  %v1959 = vshrl.u32 %v1958, 7
  %v1960 = vsub.s32 0, %v1959
  %v1961 = vrot.slane %v1456, %v1960
  %v1962 = vlaneseq
  %v1963 = vshrl.u32 %v1962, 7
  %v1964 = vsub.s32 1, %v1963
  %v1965 = vrot.slane %v1456, %v1964
  %v1966 = vlaneseq
  %v1967 = vshrl.u32 %v1966, 7
  %v1968 = vsub.s32 2, %v1967
  %v1969 = vrot.slane %v1456, %v1968
  %v1970 = vlaneseq
  %v1971 = vshrl.u32 %v1970, 7
  %v1972 = vsub.s32 3, %v1971
  %v1973 = vrot.slane %v1456, %v1972
  %v1978 = vadd.f32 %v1798, %v1961
  %v1979 = vadd.f32 %v1800, %v1965
  %v1980 = vadd.f32 %v1911, %v1969
  %v1981 = vadd.f32 %v1913, %v1973
  %v1982 = vadd.f32 %v1804, %v1961
  %v1983 = vadd.f32 %v1806, %v1965
  %v1984 = vadd.f32 %v1917, %v1969
  %v1985 = vadd.f32 %v1919, %v1973
  %v1986 = vadd.f32 %v1810, %v1961
  %v1987 = vadd.f32 %v1812, %v1965
  %v1988 = vadd.f32 %v1923, %v1969
  %v1989 = vadd.f32 %v1925, %v1973
  %v1990 = vadd.f32 %v1816, %v1961
  %v1991 = vadd.f32 %v1818, %v1965
  %v1992 = vadd.f32 %v1929, %v1969
  %v1993 = vadd.f32 %v1931, %v1973
  %v1994 = vadd.f32 %v1822, %v1961
  %v1995 = vadd.f32 %v1824, %v1965
  %v1996 = vadd.f32 %v1935, %v1969
  %v1997 = vadd.f32 %v1937, %v1973
  %v1998 = vadd.f32 %v1828, %v1961
  %v1999 = vadd.f32 %v1830, %v1965
  %v2000 = vadd.f32 %v1941, %v1969
  %v2001 = vadd.f32 %v1943, %v1973
  %v2002 = vadd.f32 %v1834, %v1961
  %v2003 = vadd.f32 %v1836, %v1965
  %v2004 = vadd.f32 %v1947, %v1969
  %v2005 = vadd.f32 %v1949, %v1973
  %v2006 = vadd.f32 %v1840, %v1961
  %v2007 = vadd.f32 %v1842, %v1965
  %v2008 = vadd.f32 %v1953, %v1969
  %v2009 = vadd.f32 %v1955, %v1973
  %vm2010 = vcmp.gt.f32.partialorder %v1978, 0.0
  %vm2011 = vcmp.gt.f32.partialorder %v1979, 0.0
  %vm2012 = vcmp.gt.f32.partialorder %v1980, 0.0
  %vm2013 = vcmp.gt.f32.partialorder %v1981, 0.0
  %vm2014 = vcmp.gt.f32.partialorder %v1982, 0.0
  %vm2015 = vcmp.gt.f32.partialorder %v1983, 0.0
  %vm2016 = vcmp.gt.f32.partialorder %v1984, 0.0
  %vm2017 = vcmp.gt.f32.partialorder %v1985, 0.0
  %vm2018 = vcmp.gt.f32.partialorder %v1986, 0.0
  %vm2019 = vcmp.gt.f32.partialorder %v1987, 0.0
  %vm2020 = vcmp.gt.f32.partialorder %v1988, 0.0
  %vm2021 = vcmp.gt.f32.partialorder %v1989, 0.0
  %vm2022 = vcmp.gt.f32.partialorder %v1990, 0.0
  %vm2023 = vcmp.gt.f32.partialorder %v1991, 0.0
  %vm2024 = vcmp.gt.f32.partialorder %v1992, 0.0
  %vm2025 = vcmp.gt.f32.partialorder %v1993, 0.0
  %vm2026 = vcmp.gt.f32.partialorder %v1994, 0.0
  %vm2027 = vcmp.gt.f32.partialorder %v1995, 0.0
  %vm2028 = vcmp.gt.f32.partialorder %v1996, 0.0
  %vm2029 = vcmp.gt.f32.partialorder %v1997, 0.0
  %vm2030 = vcmp.gt.f32.partialorder %v1998, 0.0
  %vm2031 = vcmp.gt.f32.partialorder %v1999, 0.0
  %vm2032 = vcmp.gt.f32.partialorder %v2000, 0.0
  %vm2033 = vcmp.gt.f32.partialorder %v2001, 0.0
  %vm2034 = vcmp.gt.f32.partialorder %v2002, 0.0
  %vm2035 = vcmp.gt.f32.partialorder %v2003, 0.0
  %vm2036 = vcmp.gt.f32.partialorder %v2004, 0.0
  %vm2037 = vcmp.gt.f32.partialorder %v2005, 0.0
  %vm2038 = vcmp.gt.f32.partialorder %v2006, 0.0
  %vm2039 = vcmp.gt.f32.partialorder %v2007, 0.0
  %vm2040 = vcmp.gt.f32.partialorder %v2008, 0.0
  %vm2041 = vcmp.gt.f32.partialorder %v2009, 0.0
  %v2042 = vmul.f32 %v1978, 0.01
  %v2043 = vmul.f32 %v1979, 0.01
  %v2044 = vmul.f32 %v1980, 0.01
  %v2045 = vmul.f32 %v1981, 0.01
  %v2046 = vmul.f32 %v1982, 0.01
  %v2047 = vmul.f32 %v1983, 0.01
  %v2048 = vmul.f32 %v1984, 0.01
  %v2049 = vmul.f32 %v1985, 0.01
  %v2050 = vmul.f32 %v1986, 0.01
  %v2051 = vmul.f32 %v1987, 0.01
  %v2052 = vmul.f32 %v1988, 0.01
  %v2053 = vmul.f32 %v1989, 0.01
  %v2054 = vmul.f32 %v1990, 0.01
  %v2055 = vmul.f32 %v1991, 0.01
  %v2056 = vmul.f32 %v1992, 0.01
  %v2057 = vmul.f32 %v1993, 0.01
  %v2058 = vmul.f32 %v1994, 0.01
  %v2059 = vmul.f32 %v1995, 0.01
  %v2060 = vmul.f32 %v1996, 0.01
  %v2061 = vmul.f32 %v1997, 0.01
  %v2062 = vmul.f32 %v1998, 0.01
  %v2063 = vmul.f32 %v1999, 0.01
  %v2064 = vmul.f32 %v2000, 0.01
  %v2065 = vmul.f32 %v2001, 0.01
  %v2066 = vmul.f32 %v2002, 0.01
  %v2067 = vmul.f32 %v2003, 0.01
  %v2068 = vmul.f32 %v2004, 0.01
  %v2069 = vmul.f32 %v2005, 0.01
  %v2070 = vmul.f32 %v2006, 0.01
  %v2071 = vmul.f32 %v2007, 0.01
  %v2072 = vmul.f32 %v2008, 0.01
  %v2073 = vmul.f32 %v2009, 0.01
  %v2074 = vsel %vm2010, %v1978, %v2042
  %v2075 = vsel %vm2011, %v1979, %v2043
  %v2076 = vsel %vm2012, %v1980, %v2044
  %v2077 = vsel %vm2013, %v1981, %v2045
  %v2078 = vsel %vm2014, %v1982, %v2046
  %v2079 = vsel %vm2015, %v1983, %v2047
  %v2080 = vsel %vm2016, %v1984, %v2048
  %v2081 = vsel %vm2017, %v1985, %v2049
  %v2082 = vsel %vm2018, %v1986, %v2050
  %v2083 = vsel %vm2019, %v1987, %v2051
  %v2084 = vsel %vm2020, %v1988, %v2052
  %v2085 = vsel %vm2021, %v1989, %v2053
  %v2086 = vsel %vm2022, %v1990, %v2054
  %v2087 = vsel %vm2023, %v1991, %v2055
  %v2088 = vsel %vm2024, %v1992, %v2056
  %v2089 = vsel %vm2025, %v1993, %v2057
  %v2090 = vsel %vm2026, %v1994, %v2058
  %v2091 = vsel %vm2027, %v1995, %v2059
  %v2092 = vsel %vm2028, %v1996, %v2060
  %v2093 = vsel %vm2029, %v1997, %v2061
  %v2094 = vsel %vm2030, %v1998, %v2062
  %v2095 = vsel %vm2031, %v1999, %v2063
  %v2096 = vsel %vm2032, %v2000, %v2064
  %v2097 = vsel %vm2033, %v2001, %v2065
  %v2098 = vsel %vm2034, %v2002, %v2066
  %v2099 = vsel %vm2035, %v2003, %v2067
  %v2100 = vsel %vm2036, %v2004, %v2068
  %v2101 = vsel %vm2037, %v2005, %v2069
  %v2102 = vsel %vm2038, %v2006, %v2070
  %v2103 = vsel %vm2039, %v2007, %v2071
  %v2104 = vsel %vm2040, %v2008, %v2072
  %v2105 = vsel %vm2041, %v2009, %v2073
  %v2106 = vld [vmem:[%s4] sm:$0xff]
  %v2107 = vld [vmem:[%s4 + $0x8] sm:$0xff]
  %v2108 = vld [vmem:[%s4 + $0x10] sm:$0xff]
  %v2109 = vld [vmem:[%s4 + $0x18] sm:$0xff]
  %v2110 = vld [vmem:[%s4 + $0x20] sm:$0xff]
  %v2111 = vld [vmem:[%s4 + $0x28] sm:$0xff]
  %v2112 = vld [vmem:[%s4 + $0x30] sm:$0xff]
  %v2113 = vld [vmem:[%s4 + $0x38] sm:$0xff]
  %v2114 = vld [vmem:[%s4 + $0x40] sm:$0xff]
  %v2115 = vld [vmem:[%s4 + $0x48] sm:$0xff]
  %v2116 = vld [vmem:[%s4 + $0x50] sm:$0xff]
  %v2117 = vld [vmem:[%s4 + $0x58] sm:$0xff]
  %v2118 = vld [vmem:[%s4 + $0x60] sm:$0xff]
  %v2119 = vld [vmem:[%s4 + $0x68] sm:$0xff]
  %v2120 = vld [vmem:[%s4 + $0x70] sm:$0xff]
  %v2121 = vld [vmem:[%s4 + $0x78] sm:$0xff]
  %v2122 = vld [vmem:[%s4 + $0x80] sm:$0xff]
  %v2123 = vld [vmem:[%s4 + $0x88] sm:$0xff]
  %v2124 = vld [vmem:[%s4 + $0x90] sm:$0xff]
  %v2125 = vld [vmem:[%s4 + $0x98] sm:$0xff]
  %v2126 = vld [vmem:[%s4 + $0xa0] sm:$0xff]
  %v2127 = vld [vmem:[%s4 + $0xa8] sm:$0xff]
  %v2128 = vld [vmem:[%s4 + $0xb0] sm:$0xff]
  %v2129 = vld [vmem:[%s4 + $0xb8] sm:$0xff]
  %v2130 = vld [vmem:[%s4 + $0xc0] sm:$0xff]
  %v2131 = vld [vmem:[%s4 + $0xc8] sm:$0xff]
  %v2132 = vld [vmem:[%s4 + $0xd0] sm:$0xff]
  %v2133 = vld [vmem:[%s4 + $0xd8] sm:$0xff]
  %v2134 = vld [vmem:[%s4 + $0xe0] sm:$0xff]
  %v2135 = vld [vmem:[%s4 + $0xe8] sm:$0xff]
  %v2136 = vld [vmem:[%s4 + $0xf0] sm:$0xff]
  %v2137 = vld [vmem:[%s4 + $0xf8] sm:$0xff]
  %v2138 = vld [vmem:[%s4 + $0x100] sm:$0xff]
  %v2139 = vld [vmem:[%s4 + $0x108] sm:$0xff]
  %v2140 = vld [vmem:[%s4 + $0x110] sm:$0xff]
  %v2141 = vld [vmem:[%s4 + $0x118] sm:$0xff]
  %v2142 = vld [vmem:[%s4 + $0x120] sm:$0xff]
  %v2143 = vld [vmem:[%s4 + $0x128] sm:$0xff]
  %v2144 = vld [vmem:[%s4 + $0x130] sm:$0xff]
  %v2145 = vld [vmem:[%s4 + $0x138] sm:$0xff]
  %v2146 = vld [vmem:[%s4 + $0x140] sm:$0xff]
  %v2147 = vld [vmem:[%s4 + $0x148] sm:$0xff]
  %v2148 = vld [vmem:[%s4 + $0x150] sm:$0xff]
  %v2149 = vld [vmem:[%s4 + $0x158] sm:$0xff]
  %v2150 = vld [vmem:[%s4 + $0x160] sm:$0xff]
  %v2151 = vld [vmem:[%s4 + $0x168] sm:$0xff]
  %v2152 = vld [vmem:[%s4 + $0x170] sm:$0xff]
  %v2153 = vld [vmem:[%s4 + $0x178] sm:$0xff]
  %v2154 = vld [vmem:[%s4 + $0x180] sm:$0xff]
  %v2155 = vld [vmem:[%s4 + $0x188] sm:$0xff]
  %v2156 = vld [vmem:[%s4 + $0x190] sm:$0xff]
  %v2157 = vld [vmem:[%s4 + $0x198] sm:$0xff]
  %v2158 = vld [vmem:[%s4 + $0x1a0] sm:$0xff]
  %v2159 = vld [vmem:[%s4 + $0x1a8] sm:$0xff]
  %v2160 = vld [vmem:[%s4 + $0x1b0] sm:$0xff]
  %v2161 = vld [vmem:[%s4 + $0x1b8] sm:$0xff]
  %v2162 = vld [vmem:[%s4 + $0x1c0] sm:$0xff]
  %v2163 = vld [vmem:[%s4 + $0x1c8] sm:$0xff]
  %v2164 = vld [vmem:[%s4 + $0x1d0] sm:$0xff]
  %v2165 = vld [vmem:[%s4 + $0x1d8] sm:$0xff]
  %v2166 = vld [vmem:[%s4 + $0x1e0] sm:$0xff]
  %v2167 = vld [vmem:[%s4 + $0x1e8] sm:$0xff]
  %v2168 = vld [vmem:[%s4 + $0x1f0] sm:$0xff]
  %v2169 = vld [vmem:[%s4 + $0x1f8] sm:$0xff]
  %v2170 = vld [vmem:[%s4 + $0x200] sm:$0x1]
  %v2171 = vlaneseq
  %v2172 = vshrl.u32 %v2171, 7
  %v2173 = vsub.s32 0, %v2172
  %v2174 = vrot.slane %v2170, %v2173
  %2175 = vmatprep.subr.mxu0 0.0
  %2176 = vmatpush1.msra.mxu0 %v2121
  %2177 = vmatprep.subr.mxu0 0.0
  %2178 = vmatpush1.msra.mxu0 %v2120
  %2179 = vmatprep.subr.mxu0 0.0
  %2180 = vmatpush1.msra.mxu0 %v2119
  %2181 = vmatprep.subr.mxu0 0.0
  %2182 = vmatpush1.msra.mxu0 %v2118
  %2183 = vmatprep.subr.mxu0 0.0
  %2184 = vmatpush1.msra.mxu0 %v2117
  %2185 = vmatprep.subr.mxu0 0.0
  %2186 = vmatpush1.msra.mxu0 %v2116
  %2187 = vmatprep.subr.mxu0 0.0
  %2188 = vmatpush1.msra.mxu0 %v2115
  %2189 = vmatprep.subr.mxu0 0.0
  %2190 = vmatpush1.msra.mxu0 %v2114
  %2191 = vmatprep.subr.mxu0 0.0
  %2192 = vmatpush1.msra.mxu0 %v2113
  %2193 = vmatprep.subr.mxu0 0.0
  %2194 = vmatpush1.msra.mxu0 %v2112
  %2195 = vmatprep.subr.mxu0 0.0
  %2196 = vmatpush1.msra.mxu0 %v2111
  %2197 = vmatprep.subr.mxu0 0.0
  %2198 = vmatpush1.msra.mxu0 %v2110
  %2199 = vmatprep.subr.mxu0 0.0
  %2200 = vmatpush1.msra.mxu0 %v2109
  %2201 = vmatprep.subr.mxu0 0.0
  %2202 = vmatpush1.msra.mxu0 %v2108
  %2203 = vmatprep.subr.mxu0 0.0
  %2204 = vmatpush1.msra.mxu0 %v2107
  %2205 = vmatprep.subr.mxu0 0.0
  %2206 = vmatpush1.msra.mxu0 %v2106
  %2207 = vmatprep.subr.mxu0 0.0
  %2208 = vmatpush2.msra.mxu0 %v2137
  %2209 = vmatprep.subr.mxu0 0.0
  %2210 = vmatpush2.msra.mxu0 %v2136
  %2211 = vmatprep.subr.mxu0 0.0
  %2212 = vmatpush2.msra.mxu0 %v2135
  %2213 = vmatprep.subr.mxu0 0.0
  %2214 = vmatpush2.msra.mxu0 %v2134
  %2215 = vmatprep.subr.mxu0 0.0
  %2216 = vmatpush2.msra.mxu0 %v2133
  %2217 = vmatprep.subr.mxu0 0.0
  %2218 = vmatpush2.msra.mxu0 %v2132
  %2219 = vmatprep.subr.mxu0 0.0
  %2220 = vmatpush2.msra.mxu0 %v2131
  %2221 = vmatprep.subr.mxu0 0.0
  %2222 = vmatpush2.msra.mxu0 %v2130
  %2223 = vmatprep.subr.mxu0 0.0
  %2224 = vmatpush2.msra.mxu0 %v2129
  %2225 = vmatprep.subr.mxu0 0.0
  %2226 = vmatpush2.msra.mxu0 %v2128
  %2227 = vmatprep.subr.mxu0 0.0
  %2228 = vmatpush2.msra.mxu0 %v2127
  %2229 = vmatprep.subr.mxu0 0.0
  %2230 = vmatpush2.msra.mxu0 %v2126
  %2231 = vmatprep.subr.mxu0 0.0
  %2232 = vmatpush2.msra.mxu0 %v2125
  %2233 = vmatprep.subr.mxu0 0.0
  %2234 = vmatpush2.msra.mxu0 %v2124
  %2235 = vmatprep.subr.mxu0 0.0
  %2236 = vmatpush2.msra.mxu0 %v2123
  %2237 = vmatprep.subr.mxu0 0.0
  %2238 = vmatpush2.msra.mxu0 %v2122
  %2239 = vmatprep.mubr.f32.mxu0 %v2075
  %2240 = vmatmul.mubr.f32.gmra.mxu0 %v2074
  %v2241 = vpop.f32.mrf.mxu0
  %v2242 = vadd.f32 %v2174, %v2241
  %v2243 = vpop.f32.mrf.mxu0
  %2244 = vmatprep.mubr.f32.mxu0 %v2079
  %2245 = vmatmul.mubr.f32.gmra.mxu0 %v2078
  %v2246 = vpop.f32.mrf.mxu0
  %v2247 = vadd.f32 %v2174, %v2246
  %v2248 = vpop.f32.mrf.mxu0
  %2249 = vmatprep.mubr.f32.mxu0 %v2083
  %2250 = vmatmul.mubr.f32.gmra.mxu0 %v2082
  %v2251 = vpop.f32.mrf.mxu0
  %v2252 = vadd.f32 %v2174, %v2251
  %v2253 = vpop.f32.mrf.mxu0
  %2254 = vmatprep.mubr.f32.mxu0 %v2087
  %2255 = vmatmul.mubr.f32.gmra.mxu0 %v2086
  %v2256 = vpop.f32.mrf.mxu0
  %v2257 = vadd.f32 %v2174, %v2256
  %v2258 = vpop.f32.mrf.mxu0
  %2259 = vmatprep.mubr.f32.mxu0 %v2091
  %2260 = vmatmul.mubr.f32.gmra.mxu0 %v2090
  %v2261 = vpop.f32.mrf.mxu0
  %v2262 = vadd.f32 %v2174, %v2261
  %v2263 = vpop.f32.mrf.mxu0
  %2264 = vmatprep.mubr.f32.mxu0 %v2095
  %2265 = vmatmul.mubr.f32.gmra.mxu0 %v2094
  %v2266 = vpop.f32.mrf.mxu0
  %v2267 = vadd.f32 %v2174, %v2266
  %v2268 = vpop.f32.mrf.mxu0
  %2269 = vmatprep.mubr.f32.mxu0 %v2099
  %2270 = vmatmul.mubr.f32.gmra.mxu0 %v2098
  %v2271 = vpop.f32.mrf.mxu0
  %v2272 = vadd.f32 %v2174, %v2271
  %v2273 = vpop.f32.mrf.mxu0
  %2274 = vmatprep.mubr.f32.mxu0 %v2103
  %2275 = vmatmul.mubr.f32.gmra.mxu0 %v2102
  %v2276 = vpop.f32.mrf.mxu0
  %v2277 = vadd.f32 %v2174, %v2276
  %v2278 = vpop.f32.mrf.mxu0
  %2279 = vdwg.mxu0
  %2280 = vmatprep.subr.mxu0 0.0
  %2281 = vmatpush1.msra.mxu0 %v2153
  %2282 = vmatprep.subr.mxu0 0.0
  %2283 = vmatpush1.msra.mxu0 %v2152
  %2284 = vmatprep.subr.mxu0 0.0
  %2285 = vmatpush1.msra.mxu0 %v2151
  %2286 = vmatprep.subr.mxu0 0.0
  %2287 = vmatpush1.msra.mxu0 %v2150
  %2288 = vmatprep.subr.mxu0 0.0
  %2289 = vmatpush1.msra.mxu0 %v2149
  %2290 = vmatprep.subr.mxu0 0.0
  %2291 = vmatpush1.msra.mxu0 %v2148
  %2292 = vmatprep.subr.mxu0 0.0
  %2293 = vmatpush1.msra.mxu0 %v2147
  %2294 = vmatprep.subr.mxu0 0.0
  %2295 = vmatpush1.msra.mxu0 %v2146
  %2296 = vmatprep.subr.mxu0 0.0
  %2297 = vmatpush1.msra.mxu0 %v2145
  %2298 = vmatprep.subr.mxu0 0.0
  %2299 = vmatpush1.msra.mxu0 %v2144
  %2300 = vmatprep.subr.mxu0 0.0
  %2301 = vmatpush1.msra.mxu0 %v2143
  %2302 = vmatprep.subr.mxu0 0.0
  %2303 = vmatpush1.msra.mxu0 %v2142
  %2304 = vmatprep.subr.mxu0 0.0
  %2305 = vmatpush1.msra.mxu0 %v2141
  %2306 = vmatprep.subr.mxu0 0.0
  %2307 = vmatpush1.msra.mxu0 %v2140
  %2308 = vmatprep.subr.mxu0 0.0
  %2309 = vmatpush1.msra.mxu0 %v2139
  %2310 = vmatprep.subr.mxu0 0.0
  %2311 = vmatpush1.msra.mxu0 %v2138
  %2312 = vmatprep.subr.mxu0 0.0
  %2313 = vmatpush2.msra.mxu0 %v2169
  %2314 = vmatprep.subr.mxu0 0.0
  %2315 = vmatpush2.msra.mxu0 %v2168
  %2316 = vmatprep.subr.mxu0 0.0
  %2317 = vmatpush2.msra.mxu0 %v2167
  %2318 = vmatprep.subr.mxu0 0.0
  %2319 = vmatpush2.msra.mxu0 %v2166
  %2320 = vmatprep.subr.mxu0 0.0
  %2321 = vmatpush2.msra.mxu0 %v2165
  %2322 = vmatprep.subr.mxu0 0.0
  %2323 = vmatpush2.msra.mxu0 %v2164
  %2324 = vmatprep.subr.mxu0 0.0
  %2325 = vmatpush2.msra.mxu0 %v2163
  %2326 = vmatprep.subr.mxu0 0.0
  %2327 = vmatpush2.msra.mxu0 %v2162
  %2328 = vmatprep.subr.mxu0 0.0
  %2329 = vmatpush2.msra.mxu0 %v2161
  %2330 = vmatprep.subr.mxu0 0.0
  %2331 = vmatpush2.msra.mxu0 %v2160
  %2332 = vmatprep.subr.mxu0 0.0
  %2333 = vmatpush2.msra.mxu0 %v2159
  %2334 = vmatprep.subr.mxu0 0.0
  %2335 = vmatpush2.msra.mxu0 %v2158
  %2336 = vmatprep.subr.mxu0 0.0
  %2337 = vmatpush2.msra.mxu0 %v2157
  %2338 = vmatprep.subr.mxu0 0.0
  %2339 = vmatpush2.msra.mxu0 %v2156
  %2340 = vmatprep.subr.mxu0 0.0
  %2341 = vmatpush2.msra.mxu0 %v2155
  %2342 = vmatprep.subr.mxu0 0.0
  %2343 = vmatpush2.msra.mxu0 %v2154
  %2344 = vmatprep.mubr.f32.mxu0 %v2077
  %2345 = vmatmul.mubr.f32.gmra.mxu0 %v2076
  %v2346 = vpop.f32.mrf.mxu0
  %v2347 = vadd.f32 %v2242, %v2346
  %v2348 = vpop.f32.mrf.mxu0
  %2349 = vmatprep.mubr.f32.mxu0 %v2081
  %2350 = vmatmul.mubr.f32.gmra.mxu0 %v2080
  %v2351 = vpop.f32.mrf.mxu0
  %v2352 = vadd.f32 %v2247, %v2351
  %v2353 = vpop.f32.mrf.mxu0
  %2354 = vmatprep.mubr.f32.mxu0 %v2085
  %2355 = vmatmul.mubr.f32.gmra.mxu0 %v2084
  %v2356 = vpop.f32.mrf.mxu0
  %v2357 = vadd.f32 %v2252, %v2356
  %v2358 = vpop.f32.mrf.mxu0
  %2359 = vmatprep.mubr.f32.mxu0 %v2089
  %2360 = vmatmul.mubr.f32.gmra.mxu0 %v2088
  %v2361 = vpop.f32.mrf.mxu0
  %v2362 = vadd.f32 %v2257, %v2361
  %v2363 = vpop.f32.mrf.mxu0
  %2364 = vmatprep.mubr.f32.mxu0 %v2093
  %2365 = vmatmul.mubr.f32.gmra.mxu0 %v2092
  %v2366 = vpop.f32.mrf.mxu0
  %v2367 = vadd.f32 %v2262, %v2366
  %v2368 = vpop.f32.mrf.mxu0
  %2369 = vmatprep.mubr.f32.mxu0 %v2097
  %2370 = vmatmul.mubr.f32.gmra.mxu0 %v2096
  %v2371 = vpop.f32.mrf.mxu0
  %v2372 = vadd.f32 %v2267, %v2371
  %v2373 = vpop.f32.mrf.mxu0
  %2374 = vmatprep.mubr.f32.mxu0 %v2101
  %2375 = vmatmul.mubr.f32.gmra.mxu0 %v2100
  %v2376 = vpop.f32.mrf.mxu0
  %v2377 = vadd.f32 %v2272, %v2376
  %v2378 = vpop.f32.mrf.mxu0
  %2379 = vmatprep.mubr.f32.mxu0 %v2105
  %2380 = vmatmul.mubr.f32.gmra.mxu0 %v2104
  %v2381 = vpop.f32.mrf.mxu0
  %v2382 = vadd.f32 %v2277, %v2381
  %v2383 = vpop.f32.mrf.mxu0
  %2384 = vdwg.mxu0
  %vm2385 = vcmp.gt.f32.partialorder %v2347, 0.0
  %vm2386 = vcmp.gt.f32.partialorder %v2352, 0.0
  %vm2387 = vcmp.gt.f32.partialorder %v2357, 0.0
  %vm2388 = vcmp.gt.f32.partialorder %v2362, 0.0
  %vm2389 = vcmp.gt.f32.partialorder %v2367, 0.0
  %vm2390 = vcmp.gt.f32.partialorder %v2372, 0.0
  %vm2391 = vcmp.gt.f32.partialorder %v2377, 0.0
  %vm2392 = vcmp.gt.f32.partialorder %v2382, 0.0
  %v2393 = vmul.f32 %v2347, 0.01
  %v2394 = vmul.f32 %v2352, 0.01
  %v2395 = vmul.f32 %v2357, 0.01
  %v2396 = vmul.f32 %v2362, 0.01
  %v2397 = vmul.f32 %v2367, 0.01
  %v2398 = vmul.f32 %v2372, 0.01
  %v2399 = vmul.f32 %v2377, 0.01
  %v2400 = vmul.f32 %v2382, 0.01
  %v2401 = vsel %vm2385, %v2347, %v2393
  %v2402 = vsel %vm2386, %v2352, %v2394
  %v2403 = vsel %vm2387, %v2357, %v2395
  %v2404 = vsel %vm2388, %v2362, %v2396
  %v2405 = vsel %vm2389, %v2367, %v2397
  %v2406 = vsel %vm2390, %v2372, %v2398
  %v2407 = vsel %vm2391, %v2377, %v2399
  %v2408 = vsel %vm2392, %v2382, %v2400
  %vm2409 = vcmp.gt.f32.partialorder %v34, 0.0
  %vm2410 = vcmp.gt.f32.partialorder %v35, 0.0
  %vm2411 = vcmp.gt.f32.partialorder %v36, 0.0
  %vm2412 = vcmp.gt.f32.partialorder %v37, 0.0
  %vm2413 = vcmp.gt.f32.partialorder %v38, 0.0
  %vm2414 = vcmp.gt.f32.partialorder %v39, 0.0
  %vm2415 = vcmp.gt.f32.partialorder %v40, 0.0
  %vm2416 = vcmp.gt.f32.partialorder %v41, 0.0
  %v2417 = vsel %vm2409, 1, 0
  %v2418 = vsel %vm2410, 1, 0
  %v2419 = vsel %vm2411, 1, 0
  %v2420 = vsel %vm2412, 1, 0
  %v2421 = vsel %vm2413, 1, 0
  %v2422 = vsel %vm2414, 1, 0
  %v2423 = vsel %vm2415, 1, 0
  %v2424 = vsel %vm2416, 1, 0
  %2425 = vset.pattern.permute.xlu0 0
  %2426 = vperm.xlu0 %2425, %v2417
  %v2427 = vpop.permute.xlu0 %2426
  %2428 = vset.pattern.permute.xlu0 0
  %2429 = vperm.xlu0 %2428, %v2418
  %v2430 = vpop.permute.xlu0 %2429
  %2431 = vset.pattern.permute.xlu0 0
  %2432 = vperm.xlu0 %2431, %v2419
  %v2433 = vpop.permute.xlu0 %2432
  %2434 = vset.pattern.permute.xlu0 0
  %2435 = vperm.xlu0 %2434, %v2420
  %v2436 = vpop.permute.xlu0 %2435
  %2437 = vset.pattern.permute.xlu0 0
  %2438 = vperm.xlu0 %2437, %v2421
  %v2439 = vpop.permute.xlu0 %2438
  %2440 = vset.pattern.permute.xlu0 0
  %2441 = vperm.xlu0 %2440, %v2422
  %v2442 = vpop.permute.xlu0 %2441
  %2443 = vset.pattern.permute.xlu0 0
  %2444 = vperm.xlu0 %2443, %v2423
  %v2445 = vpop.permute.xlu0 %2444
  %2446 = vset.pattern.permute.xlu0 0
  %2447 = vperm.xlu0 %2446, %v2424
  %v2448 = vpop.permute.xlu0 %2447
  %vm2449 = vcmp.eq.s32.totalorder %v2427, 1
  %vm2450 = vcmp.eq.s32.totalorder %v2430, 1
  %vm2451 = vcmp.eq.s32.totalorder %v2433, 1
  %vm2452 = vcmp.eq.s32.totalorder %v2436, 1
  %vm2453 = vcmp.eq.s32.totalorder %v2439, 1
  %vm2454 = vcmp.eq.s32.totalorder %v2442, 1
  %vm2455 = vcmp.eq.s32.totalorder %v2445, 1
  %vm2456 = vcmp.eq.s32.totalorder %v2448, 1
  %v2457 = vsel %vm2449, %v2401, -1e+30
  %v2458 = vsel %vm2450, %v2402, -1e+30
  %v2459 = vsel %vm2451, %v2403, -1e+30
  %v2460 = vsel %vm2452, %v2404, -1e+30
  %v2461 = vsel %vm2453, %v2405, -1e+30
  %v2462 = vsel %vm2454, %v2406, -1e+30
  %v2463 = vsel %vm2455, %v2407, -1e+30
  %v2464 = vsel %vm2456, %v2408, -1e+30
  %v2465 = vsel %vm345, %v2457, -inf
  %v2466 = vrot.slane %v2465, 4
  %v2467 = vmax.f32 %v2465, %v2466
  %v2468 = vrot.slane %v2467, 2
  %v2469 = vmax.f32 %v2467, %v2468
  %v2470 = vrot.slane %v2469, 1
  %v2471 = vmax.f32 %v2469, %v2470
  %v2472 = vsel %vm345, %v2458, -inf
  %v2473 = vrot.slane %v2472, 4
  %v2474 = vmax.f32 %v2472, %v2473
  %v2475 = vrot.slane %v2474, 2
  %v2476 = vmax.f32 %v2474, %v2475
  %v2477 = vrot.slane %v2476, 1
  %v2478 = vmax.f32 %v2476, %v2477
  %v2479 = vsel %vm345, %v2459, -inf
  %v2480 = vrot.slane %v2479, 4
  %v2481 = vmax.f32 %v2479, %v2480
  %v2482 = vrot.slane %v2481, 2
  %v2483 = vmax.f32 %v2481, %v2482
  %v2484 = vrot.slane %v2483, 1
  %v2485 = vmax.f32 %v2483, %v2484
  %v2486 = vsel %vm345, %v2460, -inf
  %v2487 = vrot.slane %v2486, 4
  %v2488 = vmax.f32 %v2486, %v2487
  %v2489 = vrot.slane %v2488, 2
  %v2490 = vmax.f32 %v2488, %v2489
  %v2491 = vrot.slane %v2490, 1
  %v2492 = vmax.f32 %v2490, %v2491
  %v2493 = vsel %vm345, %v2461, -inf
  %v2494 = vrot.slane %v2493, 4
  %v2495 = vmax.f32 %v2493, %v2494
  %v2496 = vrot.slane %v2495, 2
  %v2497 = vmax.f32 %v2495, %v2496
  %v2498 = vrot.slane %v2497, 1
  %v2499 = vmax.f32 %v2497, %v2498
  %v2500 = vsel %vm345, %v2462, -inf
  %v2501 = vrot.slane %v2500, 4
  %v2502 = vmax.f32 %v2500, %v2501
  %v2503 = vrot.slane %v2502, 2
  %v2504 = vmax.f32 %v2502, %v2503
  %v2505 = vrot.slane %v2504, 1
  %v2506 = vmax.f32 %v2504, %v2505
  %v2507 = vsel %vm345, %v2463, -inf
  %v2508 = vrot.slane %v2507, 4
  %v2509 = vmax.f32 %v2507, %v2508
  %v2510 = vrot.slane %v2509, 2
  %v2511 = vmax.f32 %v2509, %v2510
  %v2512 = vrot.slane %v2511, 1
  %v2513 = vmax.f32 %v2511, %v2512
  %v2514 = vsel %vm345, %v2464, -inf
  %v2515 = vrot.slane %v2514, 4
  %v2516 = vmax.f32 %v2514, %v2515
  %v2517 = vrot.slane %v2516, 2
  %v2518 = vmax.f32 %v2516, %v2517
  %v2519 = vrot.slane %v2518, 1
  %v2520 = vmax.f32 %v2518, %v2519
  %2522 = vset.pattern.permute.xlu0 0
  %2523 = vperm.xlu0 %2522, %v33
  %v2524 = vpop.permute.xlu0 %2523
  %v2525 = vrot.slane %v2524, 1
  %v2526 = vrot.slane %v2524, 2
  %v2527 = vrot.slane %v2524, 3
  %v2528 = vrot.slane %v2524, 4
  %v2529 = vrot.slane %v2524, 5
  %v2530 = vrot.slane %v2524, 6
  %v2531 = vrot.slane %v2524, 7
  %v2540 = vmul.f32 %v2471, %v2524
  %v2541 = vmul.f32 %v2478, %v2525
  %v2542 = vmul.f32 %v2485, %v2526
  %v2543 = vmul.f32 %v2492, %v2527
  %v2544 = vmul.f32 %v2499, %v2528
  %v2545 = vmul.f32 %v2506, %v2529
  %v2546 = vmul.f32 %v2513, %v2530
  %v2547 = vmul.f32 %v2520, %v2531
  %v2548 = vld [vmem:[%s5] sm:$0xff]
  %v2549 = vld [vmem:[%s5 + $0x8] sm:$0xff]
  %v2550 = vld [vmem:[%s5 + $0x10] sm:$0xff]
  %v2551 = vld [vmem:[%s5 + $0x18] sm:$0xff]
  %v2552 = vld [vmem:[%s5 + $0x20] sm:$0xff]
  %v2553 = vld [vmem:[%s5 + $0x28] sm:$0xff]
  %v2554 = vld [vmem:[%s5 + $0x30] sm:$0xff]
  %v2555 = vld [vmem:[%s5 + $0x38] sm:$0xff]
  %v2556 = vld [vmem:[%s5 + $0x40] sm:$0x1]
  %v2565 = vrot.slane %v2541, 7
  %vm2566 = vcmask 1041409
  %v2567 = vsel %vm2566, %v2565, %v2540
  %v2568 = vrot.slane %v2542, 6
  %vm2569 = vcmask 1042434
  %v2570 = vsel %vm2569, %v2568, %v2567
  %v2571 = vrot.slane %v2543, 5
  %vm2572 = vcmask 1043459
  %v2573 = vsel %vm2572, %v2571, %v2570
  %v2574 = vrot.slane %v2544, 4
  %vm2575 = vcmask 1044484
  %v2576 = vsel %vm2575, %v2574, %v2573
  %v2577 = vrot.slane %v2545, 3
  %vm2578 = vcmask 1045509
  %v2579 = vsel %vm2578, %v2577, %v2576
  %v2580 = vrot.slane %v2546, 2
  %vm2581 = vcmask 1046534
  %v2582 = vsel %vm2581, %v2580, %v2579
  %v2583 = vrot.slane %v2547, 1
  %vm2584 = vcmask 1047559
  %v2585 = vsel %vm2584, %v2583, %v2582
  %v2586 = vsel %vm345, %v2585, 0
  %2588 = vmatprep.subr.mxu0 0.0
  %2589 = vmatpush1.msra.mxu0 0.0
  %2590 = vmatprep.subr.mxu0 0.0
  %2591 = vmatpush1.msra.mxu0 0.0
  %2592 = vmatprep.subr.mxu0 0.0
  %2593 = vmatpush1.msra.mxu0 0.0
  %2594 = vmatprep.subr.mxu0 0.0
  %2595 = vmatpush1.msra.mxu0 0.0
  %2596 = vmatprep.subr.mxu0 0.0
  %2597 = vmatpush1.msra.mxu0 0.0
  %2598 = vmatprep.subr.mxu0 0.0
  %2599 = vmatpush1.msra.mxu0 0.0
  %2600 = vmatprep.subr.mxu0 0.0
  %2601 = vmatpush1.msra.mxu0 0.0
  %2602 = vmatprep.subr.mxu0 0.0
  %2603 = vmatpush1.msra.mxu0 0.0
  %2604 = vmatprep.subr.mxu0 0.0
  %2605 = vmatpush1.msra.mxu0 0.0
  %2606 = vmatprep.subr.mxu0 0.0
  %2607 = vmatpush1.msra.mxu0 0.0
  %2608 = vmatprep.subr.mxu0 0.0
  %2609 = vmatpush1.msra.mxu0 0.0
  %2610 = vmatprep.subr.mxu0 0.0
  %2611 = vmatpush1.msra.mxu0 0.0
  %2612 = vmatprep.subr.mxu0 0.0
  %2613 = vmatpush1.msra.mxu0 %v2555
  %2614 = vmatprep.subr.mxu0 0.0
  %2615 = vmatpush1.msra.mxu0 %v2554
  %2616 = vmatprep.subr.mxu0 0.0
  %2617 = vmatpush1.msra.mxu0 %v2553
  %2618 = vmatprep.subr.mxu0 0.0
  %2619 = vmatpush1.msra.mxu0 %v2552
  %2620 = vmatprep.subr.mxu0 0.0
  %2621 = vmatpush2.msra.mxu0 0.0
  %2622 = vmatprep.subr.mxu0 0.0
  %2623 = vmatpush2.msra.mxu0 0.0
  %2624 = vmatprep.subr.mxu0 0.0
  %2625 = vmatpush2.msra.mxu0 0.0
  %2626 = vmatprep.subr.mxu0 0.0
  %2627 = vmatpush2.msra.mxu0 0.0
  %2628 = vmatprep.subr.mxu0 0.0
  %2629 = vmatpush2.msra.mxu0 0.0
  %2630 = vmatprep.subr.mxu0 0.0
  %2631 = vmatpush2.msra.mxu0 0.0
  %2632 = vmatprep.subr.mxu0 0.0
  %2633 = vmatpush2.msra.mxu0 0.0
  %2634 = vmatprep.subr.mxu0 0.0
  %2635 = vmatpush2.msra.mxu0 0.0
  %2636 = vmatprep.subr.mxu0 0.0
  %2637 = vmatpush2.msra.mxu0 0.0
  %2638 = vmatprep.subr.mxu0 0.0
  %2639 = vmatpush2.msra.mxu0 0.0
  %2640 = vmatprep.subr.mxu0 0.0
  %2641 = vmatpush2.msra.mxu0 0.0
  %2642 = vmatprep.subr.mxu0 0.0
  %2643 = vmatpush2.msra.mxu0 0.0
  %2644 = vmatprep.subr.mxu0 0.0
  %2645 = vmatpush2.msra.mxu0 0.0
  %2646 = vmatprep.subr.mxu0 0.0
  %2647 = vmatpush2.msra.mxu0 0.0
  %2648 = vmatprep.subr.mxu0 0.0
  %2649 = vmatpush2.msra.mxu0 0.0
  %2650 = vmatprep.subr.mxu0 0.0
  %2651 = vmatpush2.msra.mxu0 0.0
  %2652 = vmatprep.mubr.f32.mxu0 0.0
  %2653 = vmatmul.mubr.f32.gmra.mxu0 %v2586
  %v2654 = vpop.f32.mrf.mxu0
  %v2655 = vadd.f32 0.0, %v2654
  %v2656 = vpop.f32.mrf.mxu0
  %2657 = vdwg.mxu0
  %v2658 = vsel %vm345, %v1182, 0
  %2660 = vmatprep.subr.mxu0 0.0
  %2661 = vmatpush1.msra.mxu0 0.0
  %2662 = vmatprep.subr.mxu0 0.0
  %2663 = vmatpush1.msra.mxu0 0.0
  %2664 = vmatprep.subr.mxu0 0.0
  %2665 = vmatpush1.msra.mxu0 0.0
  %2666 = vmatprep.subr.mxu0 0.0
  %2667 = vmatpush1.msra.mxu0 0.0
  %2668 = vmatprep.subr.mxu0 0.0
  %2669 = vmatpush1.msra.mxu0 0.0
  %2670 = vmatprep.subr.mxu0 0.0
  %2671 = vmatpush1.msra.mxu0 0.0
  %2672 = vmatprep.subr.mxu0 0.0
  %2673 = vmatpush1.msra.mxu0 0.0
  %2674 = vmatprep.subr.mxu0 0.0
  %2675 = vmatpush1.msra.mxu0 0.0
  %2676 = vmatprep.subr.mxu0 0.0
  %2677 = vmatpush1.msra.mxu0 0.0
  %2678 = vmatprep.subr.mxu0 0.0
  %2679 = vmatpush1.msra.mxu0 0.0
  %2680 = vmatprep.subr.mxu0 0.0
  %2681 = vmatpush1.msra.mxu0 0.0
  %2682 = vmatprep.subr.mxu0 0.0
  %2683 = vmatpush1.msra.mxu0 0.0
  %2684 = vmatprep.subr.mxu0 0.0
  %2685 = vmatpush1.msra.mxu0 %v2551
  %2686 = vmatprep.subr.mxu0 0.0
  %2687 = vmatpush1.msra.mxu0 %v2550
  %2688 = vmatprep.subr.mxu0 0.0
  %2689 = vmatpush1.msra.mxu0 %v2549
  %2690 = vmatprep.subr.mxu0 0.0
  %2691 = vmatpush1.msra.mxu0 %v2548
  %2692 = vmatprep.subr.mxu0 0.0
  %2693 = vmatpush2.msra.mxu0 0.0
  %2694 = vmatprep.subr.mxu0 0.0
  %2695 = vmatpush2.msra.mxu0 0.0
  %2696 = vmatprep.subr.mxu0 0.0
  %2697 = vmatpush2.msra.mxu0 0.0
  %2698 = vmatprep.subr.mxu0 0.0
  %2699 = vmatpush2.msra.mxu0 0.0
  %2700 = vmatprep.subr.mxu0 0.0
  %2701 = vmatpush2.msra.mxu0 0.0
  %2702 = vmatprep.subr.mxu0 0.0
  %2703 = vmatpush2.msra.mxu0 0.0
  %2704 = vmatprep.subr.mxu0 0.0
  %2705 = vmatpush2.msra.mxu0 0.0
  %2706 = vmatprep.subr.mxu0 0.0
  %2707 = vmatpush2.msra.mxu0 0.0
  %2708 = vmatprep.subr.mxu0 0.0
  %2709 = vmatpush2.msra.mxu0 0.0
  %2710 = vmatprep.subr.mxu0 0.0
  %2711 = vmatpush2.msra.mxu0 0.0
  %2712 = vmatprep.subr.mxu0 0.0
  %2713 = vmatpush2.msra.mxu0 0.0
  %2714 = vmatprep.subr.mxu0 0.0
  %2715 = vmatpush2.msra.mxu0 0.0
  %2716 = vmatprep.subr.mxu0 0.0
  %2717 = vmatpush2.msra.mxu0 0.0
  %2718 = vmatprep.subr.mxu0 0.0
  %2719 = vmatpush2.msra.mxu0 0.0
  %2720 = vmatprep.subr.mxu0 0.0
  %2721 = vmatpush2.msra.mxu0 0.0
  %2722 = vmatprep.subr.mxu0 0.0
  %2723 = vmatpush2.msra.mxu0 0.0
  %2724 = vmatprep.mubr.f32.mxu0 0.0
  %2725 = vmatmul.mubr.f32.gmra.mxu0 %v2658
  %v2726 = vpop.f32.mrf.mxu0
  %v2727 = vadd.f32 %v2655, %v2726
  %v2728 = vpop.f32.mrf.mxu0
  %2729 = vdwg.mxu0
  %v2730 = vlaneseq
  %v2731 = vshrl.u32 %v2730, 7
  %v2732 = vsub.s32 0, %v2731
  %v2733 = vrot.slane %v2556, %v2732
  %v2734 = vadd.f32 %v2727, %v2733
  %vm2735 = vcmp.gt.f32.partialorder %v2734, 0.0
  %v2736 = vmul.f32 %v2734, 0.01
  %v2737 = vsel %vm2735, %v2734, %v2736
  %v2738 = vld [vmem:[%s5 + $0x48] sm:$0xff]
  %v2739 = vld [vmem:[%s5 + $0x50] sm:$0xff]
  %v2740 = vld [vmem:[%s5 + $0x58] sm:$0xff]
  %v2741 = vld [vmem:[%s5 + $0x60] sm:$0xff]
  %v2742 = vld [vmem:[%s5 + $0x68] sm:$0xff]
  %v2743 = vld [vmem:[%s5 + $0x70] sm:$0xff]
  %v2744 = vld [vmem:[%s5 + $0x78] sm:$0xff]
  %v2745 = vld [vmem:[%s5 + $0x80] sm:$0xff]
  %v2746 = vld [vmem:[%s5 + $0x88] sm:$0x1]
  %v2747 = vlaneseq
  %v2748 = vshrl.u32 %v2747, 7
  %v2749 = vsub.s32 0, %v2748
  %v2750 = vrot.slane %v2746, %v2749
  %vm2751 = vcmask 523264
  %v2753 = vsel %vm2751, %v2737, 0
  %2755 = vmatprep.subr.mxu0 0.0
  %2756 = vmatpush1.msra.mxu0 0.0
  %2757 = vmatprep.subr.mxu0 0.0
  %2758 = vmatpush1.msra.mxu0 0.0
  %2759 = vmatprep.subr.mxu0 0.0
  %2760 = vmatpush1.msra.mxu0 0.0
  %2761 = vmatprep.subr.mxu0 0.0
  %2762 = vmatpush1.msra.mxu0 0.0
  %2763 = vmatprep.subr.mxu0 0.0
  %2764 = vmatpush1.msra.mxu0 0.0
  %2765 = vmatprep.subr.mxu0 0.0
  %2766 = vmatpush1.msra.mxu0 0.0
  %2767 = vmatprep.subr.mxu0 0.0
  %2768 = vmatpush1.msra.mxu0 0.0
  %2769 = vmatprep.subr.mxu0 0.0
  %2770 = vmatpush1.msra.mxu0 0.0
  %2771 = vmatprep.subr.mxu0 0.0
  %2772 = vmatpush1.msra.mxu0 %v2745
  %2773 = vmatprep.subr.mxu0 0.0
  %2774 = vmatpush1.msra.mxu0 %v2744
  %2775 = vmatprep.subr.mxu0 0.0
  %2776 = vmatpush1.msra.mxu0 %v2743
  %2777 = vmatprep.subr.mxu0 0.0
  %2778 = vmatpush1.msra.mxu0 %v2742
  %2779 = vmatprep.subr.mxu0 0.0
  %2780 = vmatpush1.msra.mxu0 %v2741
  %2781 = vmatprep.subr.mxu0 0.0
  %2782 = vmatpush1.msra.mxu0 %v2740
  %2783 = vmatprep.subr.mxu0 0.0
  %2784 = vmatpush1.msra.mxu0 %v2739
  %2785 = vmatprep.subr.mxu0 0.0
  %2786 = vmatpush1.msra.mxu0 %v2738
  %2787 = vmatprep.subr.mxu0 0.0
  %2788 = vmatpush2.msra.mxu0 0.0
  %2789 = vmatprep.subr.mxu0 0.0
  %2790 = vmatpush2.msra.mxu0 0.0
  %2791 = vmatprep.subr.mxu0 0.0
  %2792 = vmatpush2.msra.mxu0 0.0
  %2793 = vmatprep.subr.mxu0 0.0
  %2794 = vmatpush2.msra.mxu0 0.0
  %2795 = vmatprep.subr.mxu0 0.0
  %2796 = vmatpush2.msra.mxu0 0.0
  %2797 = vmatprep.subr.mxu0 0.0
  %2798 = vmatpush2.msra.mxu0 0.0
  %2799 = vmatprep.subr.mxu0 0.0
  %2800 = vmatpush2.msra.mxu0 0.0
  %2801 = vmatprep.subr.mxu0 0.0
  %2802 = vmatpush2.msra.mxu0 0.0
  %2803 = vmatprep.subr.mxu0 0.0
  %2804 = vmatpush2.msra.mxu0 0.0
  %2805 = vmatprep.subr.mxu0 0.0
  %2806 = vmatpush2.msra.mxu0 0.0
  %2807 = vmatprep.subr.mxu0 0.0
  %2808 = vmatpush2.msra.mxu0 0.0
  %2809 = vmatprep.subr.mxu0 0.0
  %2810 = vmatpush2.msra.mxu0 0.0
  %2811 = vmatprep.subr.mxu0 0.0
  %2812 = vmatpush2.msra.mxu0 0.0
  %2813 = vmatprep.subr.mxu0 0.0
  %2814 = vmatpush2.msra.mxu0 0.0
  %2815 = vmatprep.subr.mxu0 0.0
  %2816 = vmatpush2.msra.mxu0 0.0
  %2817 = vmatprep.subr.mxu0 0.0
  %2818 = vmatpush2.msra.mxu0 0.0
  %2819 = vmatprep.mubr.f32.mxu0 0.0
  %2820 = vmatmul.mubr.f32.gmra.mxu0 %v2753
  %v2821 = vpop.f32.mrf.mxu0
  %v2822 = vadd.f32 %v2750, %v2821
  %v2823 = vpop.f32.mrf.mxu0
  %2824 = vdwg.mxu0
  %vm2825 = vcmp.gt.f32.partialorder %v2822, 0.0
  %v2826 = vmul.f32 %v2822, 0.01
  %v2827 = vsel %vm2825, %v2822, %v2826
  %2829 = vrot.lane.b32.xlu0 %v32, 24
  %v2830 = vpop.permute.xlu0 %2829
  %vm2832 = vcmask 195584
  %v2833 = vsel %vm2832, %v2827, %v2830
  %v2834 = vld [vmem:[%s2 + $0x30] sm:$0xff]
  %v2835 = vld [vmem:[%s2 + $0x38] sm:$0xff]
  %v2836 = vld [vmem:[%s2 + $0x40] sm:$0xff]
  %v2837 = vld [vmem:[%s2 + $0x48] sm:$0xff]
  %v2838 = vld [vmem:[%s2 + $0x50] sm:$0xff]
  %v2839 = vld [vmem:[%s2 + $0x58] sm:$0xff]
  %v2840 = vld [vmem:[%s2 + $0x60] sm:$0xff]
  %v2841 = vld [vmem:[%s2 + $0x68] sm:$0xff]
  %v2842 = vld [vmem:[%s2 + $0x71] sm:$0x1]
  %v2843 = vld [vmem:[%s2 + $0x72] sm:$0x1]
  %v2844 = vld [vmem:[%s2 + $0x73] sm:$0x3]
  %v2845 = vlaneseq
  %v2846 = vshrl.u32 %v2845, 7
  %v2847 = vsub.s32 0, %v2846
  %v2848 = vrot.slane %v2844, %v2847
  %v2849 = vmul.f32 %v98, %v2848
  %v2850 = vlaneseq
  %v2851 = vshrl.u32 %v2850, 7
  %v2852 = vsub.s32 1, %v2851
  %v2853 = vrot.slane %v2844, %v2852
  %v2854 = vmul.f32 %v142, %v2853
  %v2855 = vadd.f32 %v2849, %v2854
  %v2856 = vlaneseq
  %v2857 = vshrl.u32 %v2856, 7
  %v2858 = vsub.s32 0, %v2857
  %v2859 = vrot.slane %v2842, %v2858
  %v2860 = vadd.f32 %v2855, %v2859
  %v2862 = vsel %vm345, %v2833, 0
  %2864 = vmatprep.subr.mxu0 0.0
  %2865 = vmatpush1.msra.mxu0 0.0
  %2866 = vmatprep.subr.mxu0 0.0
  %2867 = vmatpush1.msra.mxu0 0.0
  %2868 = vmatprep.subr.mxu0 0.0
  %2869 = vmatpush1.msra.mxu0 0.0
  %2870 = vmatprep.subr.mxu0 0.0
  %2871 = vmatpush1.msra.mxu0 0.0
  %2872 = vmatprep.subr.mxu0 0.0
  %2873 = vmatpush1.msra.mxu0 0.0
  %2874 = vmatprep.subr.mxu0 0.0
  %2875 = vmatpush1.msra.mxu0 0.0
  %2876 = vmatprep.subr.mxu0 0.0
  %2877 = vmatpush1.msra.mxu0 0.0
  %2878 = vmatprep.subr.mxu0 0.0
  %2879 = vmatpush1.msra.mxu0 0.0
  %2880 = vmatprep.subr.mxu0 0.0
  %2881 = vmatpush1.msra.mxu0 0.0
  %2882 = vmatprep.subr.mxu0 0.0
  %2883 = vmatpush1.msra.mxu0 0.0
  %2884 = vmatprep.subr.mxu0 0.0
  %2885 = vmatpush1.msra.mxu0 0.0
  %2886 = vmatprep.subr.mxu0 0.0
  %2887 = vmatpush1.msra.mxu0 0.0
  %2888 = vmatprep.subr.mxu0 0.0
  %2889 = vmatpush1.msra.mxu0 %v2837
  %2890 = vmatprep.subr.mxu0 0.0
  %2891 = vmatpush1.msra.mxu0 %v2836
  %2892 = vmatprep.subr.mxu0 0.0
  %2893 = vmatpush1.msra.mxu0 %v2835
  %2894 = vmatprep.subr.mxu0 0.0
  %2895 = vmatpush1.msra.mxu0 %v2834
  %2896 = vmatprep.subr.mxu0 0.0
  %2897 = vmatpush2.msra.mxu0 0.0
  %2898 = vmatprep.subr.mxu0 0.0
  %2899 = vmatpush2.msra.mxu0 0.0
  %2900 = vmatprep.subr.mxu0 0.0
  %2901 = vmatpush2.msra.mxu0 0.0
  %2902 = vmatprep.subr.mxu0 0.0
  %2903 = vmatpush2.msra.mxu0 0.0
  %2904 = vmatprep.subr.mxu0 0.0
  %2905 = vmatpush2.msra.mxu0 0.0
  %2906 = vmatprep.subr.mxu0 0.0
  %2907 = vmatpush2.msra.mxu0 0.0
  %2908 = vmatprep.subr.mxu0 0.0
  %2909 = vmatpush2.msra.mxu0 0.0
  %2910 = vmatprep.subr.mxu0 0.0
  %2911 = vmatpush2.msra.mxu0 0.0
  %2912 = vmatprep.subr.mxu0 0.0
  %2913 = vmatpush2.msra.mxu0 0.0
  %2914 = vmatprep.subr.mxu0 0.0
  %2915 = vmatpush2.msra.mxu0 0.0
  %2916 = vmatprep.subr.mxu0 0.0
  %2917 = vmatpush2.msra.mxu0 0.0
  %2918 = vmatprep.subr.mxu0 0.0
  %2919 = vmatpush2.msra.mxu0 0.0
  %2920 = vmatprep.subr.mxu0 0.0
  %2921 = vmatpush2.msra.mxu0 0.0
  %2922 = vmatprep.subr.mxu0 0.0
  %2923 = vmatpush2.msra.mxu0 0.0
  %2924 = vmatprep.subr.mxu0 0.0
  %2925 = vmatpush2.msra.mxu0 0.0
  %2926 = vmatprep.subr.mxu0 0.0
  %2927 = vmatpush2.msra.mxu0 0.0
  %2928 = vmatprep.mubr.f32.mxu0 0.0
  %2929 = vmatmul.mubr.f32.gmra.mxu0 %v2862
  %v2930 = vpop.f32.mrf.mxu0
  %v2931 = vadd.f32 0.0, %v2930
  %v2932 = vpop.f32.mrf.mxu0
  %2933 = vdwg.mxu0
  %v2934 = vadd.f32 %v2860, %v2931
  %v2935 = vxor.u32 %v2934, 2147483648
  %v2936 = vmul.f32 %v2935, 1.442695
  %v2937 = vpow.pop %v2936
  %v2938 = vadd.f32 %v2937, 1.0
  %v2939 = vrcp.pop %v2938
  %v2940 = vmul.f32 1.0, %v2939
  %v2941 = vmul.f32 %v2940, 2.0
  %v2942 = vsub.f32 %v2941, 1.0
  %v2943 = vmul.f32 %v2940, 0.0
  %2945 = vrot.lane.b32.xlu0 %v2942, 64
  %v2946 = vpop.permute.xlu0 %2945
  %v2948 = vmul.f32 %v2940, %v2946
  %2950 = vrot.lane.b32.xlu0 %v2948, 32
  %v2951 = vpop.permute.xlu0 %2950
  %v2953 = vadd.f32 %v2943, %v2951
  %v2954 = vtanh.pop %v2953
  %2956 = vrot.lane.b32.xlu0 %v2954, 64
  %v2957 = vpop.permute.xlu0 %2956
  %v2959 = vmul.f32 %v2940, %v2957
  %v2960 = vlaneseq
  %v2961 = vshrl.u32 %v2960, 7
  %v2962 = vsub.s32 0, %v2961
  %v2963 = vrot.slane %v2843, %v2962
  %2965 = vrot.lane.b32.xlu0 %v2959, 32
  %v2966 = vpop.permute.xlu0 %2965
  %v2967 = vsel %vm345, %v2966, 0
  %2969 = vmatprep.subr.mxu0 0.0
  %2970 = vmatpush1.msra.mxu0 0.0
  %2971 = vmatprep.subr.mxu0 0.0
  %2972 = vmatpush1.msra.mxu0 0.0
  %2973 = vmatprep.subr.mxu0 0.0
  %2974 = vmatpush1.msra.mxu0 0.0
  %2975 = vmatprep.subr.mxu0 0.0
  %2976 = vmatpush1.msra.mxu0 0.0
  %2977 = vmatprep.subr.mxu0 0.0
  %2978 = vmatpush1.msra.mxu0 0.0
  %2979 = vmatprep.subr.mxu0 0.0
  %2980 = vmatpush1.msra.mxu0 0.0
  %2981 = vmatprep.subr.mxu0 0.0
  %2982 = vmatpush1.msra.mxu0 0.0
  %2983 = vmatprep.subr.mxu0 0.0
  %2984 = vmatpush1.msra.mxu0 0.0
  %2985 = vmatprep.subr.mxu0 0.0
  %2986 = vmatpush1.msra.mxu0 0.0
  %2987 = vmatprep.subr.mxu0 0.0
  %2988 = vmatpush1.msra.mxu0 0.0
  %2989 = vmatprep.subr.mxu0 0.0
  %2990 = vmatpush1.msra.mxu0 0.0
  %2991 = vmatprep.subr.mxu0 0.0
  %2992 = vmatpush1.msra.mxu0 0.0
  %2993 = vmatprep.subr.mxu0 0.0
  %2994 = vmatpush1.msra.mxu0 %v2841
  %2995 = vmatprep.subr.mxu0 0.0
  %2996 = vmatpush1.msra.mxu0 %v2840
  %2997 = vmatprep.subr.mxu0 0.0
  %2998 = vmatpush1.msra.mxu0 %v2839
  %2999 = vmatprep.subr.mxu0 0.0
  %3000 = vmatpush1.msra.mxu0 %v2838
  %3001 = vmatprep.subr.mxu0 0.0
  %3002 = vmatpush2.msra.mxu0 0.0
  %3003 = vmatprep.subr.mxu0 0.0
  %3004 = vmatpush2.msra.mxu0 0.0
  %3005 = vmatprep.subr.mxu0 0.0
  %3006 = vmatpush2.msra.mxu0 0.0
  %3007 = vmatprep.subr.mxu0 0.0
  %3008 = vmatpush2.msra.mxu0 0.0
  %3009 = vmatprep.subr.mxu0 0.0
  %3010 = vmatpush2.msra.mxu0 0.0
  %3011 = vmatprep.subr.mxu0 0.0
  %3012 = vmatpush2.msra.mxu0 0.0
  %3013 = vmatprep.subr.mxu0 0.0
  %3014 = vmatpush2.msra.mxu0 0.0
  %3015 = vmatprep.subr.mxu0 0.0
  %3016 = vmatpush2.msra.mxu0 0.0
  %3017 = vmatprep.subr.mxu0 0.0
  %3018 = vmatpush2.msra.mxu0 0.0
  %3019 = vmatprep.subr.mxu0 0.0
  %3020 = vmatpush2.msra.mxu0 0.0
  %3021 = vmatprep.subr.mxu0 0.0
  %3022 = vmatpush2.msra.mxu0 0.0
  %3023 = vmatprep.subr.mxu0 0.0
  %3024 = vmatpush2.msra.mxu0 0.0
  %3025 = vmatprep.subr.mxu0 0.0
  %3026 = vmatpush2.msra.mxu0 0.0
  %3027 = vmatprep.subr.mxu0 0.0
  %3028 = vmatpush2.msra.mxu0 0.0
  %3029 = vmatprep.subr.mxu0 0.0
  %3030 = vmatpush2.msra.mxu0 0.0
  %3031 = vmatprep.subr.mxu0 0.0
  %3032 = vmatpush2.msra.mxu0 0.0
  %3033 = vmatprep.mubr.f32.mxu0 0.0
  %3034 = vmatmul.mubr.f32.gmra.mxu0 %v2967
  %v3035 = vpop.f32.mrf.mxu0
  %v3036 = vadd.f32 %v2963, %v3035
  %v3037 = vpop.f32.mrf.mxu0
  %3038 = vdwg.mxu0
  %v3039 = vxor.u32 %v3036, 2147483648
  %v3040 = vmul.f32 %v3039, 1.442695
  %v3041 = vpow.pop %v3040
  %v3042 = vadd.f32 %v3041, 1.0
  %v3043 = vrcp.pop %v3042
  %v3044 = vmul.f32 1.0, %v3043
  %v3045 = vmul.f32 %v3044, 2.0
  %v3046 = vsub.f32 %v3045, 1.0
  %v3047 = vmul.f32 %v3044, %v2953
  %3049 = vrot.lane.b32.xlu0 %v3046, 64
  %v3050 = vpop.permute.xlu0 %3049
  %v3052 = vmul.f32 %v3044, %v3050
  %3054 = vrot.lane.b32.xlu0 %v3052, 32
  %v3055 = vpop.permute.xlu0 %3054
  %v3057 = vadd.f32 %v3047, %v3055
  %v3058 = vtanh.pop %v3057
  %3060 = vrot.lane.b32.xlu0 %v3058, 64
  %v3061 = vpop.permute.xlu0 %3060
  %v3063 = vmul.f32 %v3044, %v3061
  %3065 = vrot.lane.b32.xlu0 %v3063, 32
  %v3066 = vpop.permute.xlu0 %3065
  %v3067 = vsel %vm345, %v3066, 0
  %3069 = vmatprep.subr.mxu0 0.0
  %3070 = vmatpush1.msra.mxu0 0.0
  %3071 = vmatprep.subr.mxu0 0.0
  %3072 = vmatpush1.msra.mxu0 0.0
  %3073 = vmatprep.subr.mxu0 0.0
  %3074 = vmatpush1.msra.mxu0 0.0
  %3075 = vmatprep.subr.mxu0 0.0
  %3076 = vmatpush1.msra.mxu0 0.0
  %3077 = vmatprep.subr.mxu0 0.0
  %3078 = vmatpush1.msra.mxu0 0.0
  %3079 = vmatprep.subr.mxu0 0.0
  %3080 = vmatpush1.msra.mxu0 0.0
  %3081 = vmatprep.subr.mxu0 0.0
  %3082 = vmatpush1.msra.mxu0 0.0
  %3083 = vmatprep.subr.mxu0 0.0
  %3084 = vmatpush1.msra.mxu0 0.0
  %3085 = vmatprep.subr.mxu0 0.0
  %3086 = vmatpush1.msra.mxu0 0.0
  %3087 = vmatprep.subr.mxu0 0.0
  %3088 = vmatpush1.msra.mxu0 0.0
  %3089 = vmatprep.subr.mxu0 0.0
  %3090 = vmatpush1.msra.mxu0 0.0
  %3091 = vmatprep.subr.mxu0 0.0
  %3092 = vmatpush1.msra.mxu0 0.0
  %3093 = vmatprep.subr.mxu0 0.0
  %3094 = vmatpush1.msra.mxu0 %v2841
  %3095 = vmatprep.subr.mxu0 0.0
  %3096 = vmatpush1.msra.mxu0 %v2840
  %3097 = vmatprep.subr.mxu0 0.0
  %3098 = vmatpush1.msra.mxu0 %v2839
  %3099 = vmatprep.subr.mxu0 0.0
  %3100 = vmatpush1.msra.mxu0 %v2838
  %3101 = vmatprep.subr.mxu0 0.0
  %3102 = vmatpush2.msra.mxu0 0.0
  %3103 = vmatprep.subr.mxu0 0.0
  %3104 = vmatpush2.msra.mxu0 0.0
  %3105 = vmatprep.subr.mxu0 0.0
  %3106 = vmatpush2.msra.mxu0 0.0
  %3107 = vmatprep.subr.mxu0 0.0
  %3108 = vmatpush2.msra.mxu0 0.0
  %3109 = vmatprep.subr.mxu0 0.0
  %3110 = vmatpush2.msra.mxu0 0.0
  %3111 = vmatprep.subr.mxu0 0.0
  %3112 = vmatpush2.msra.mxu0 0.0
  %3113 = vmatprep.subr.mxu0 0.0
  %3114 = vmatpush2.msra.mxu0 0.0
  %3115 = vmatprep.subr.mxu0 0.0
  %3116 = vmatpush2.msra.mxu0 0.0
  %3117 = vmatprep.subr.mxu0 0.0
  %3118 = vmatpush2.msra.mxu0 0.0
  %3119 = vmatprep.subr.mxu0 0.0
  %3120 = vmatpush2.msra.mxu0 0.0
  %3121 = vmatprep.subr.mxu0 0.0
  %3122 = vmatpush2.msra.mxu0 0.0
  %3123 = vmatprep.subr.mxu0 0.0
  %3124 = vmatpush2.msra.mxu0 0.0
  %3125 = vmatprep.subr.mxu0 0.0
  %3126 = vmatpush2.msra.mxu0 0.0
  %3127 = vmatprep.subr.mxu0 0.0
  %3128 = vmatpush2.msra.mxu0 0.0
  %3129 = vmatprep.subr.mxu0 0.0
  %3130 = vmatpush2.msra.mxu0 0.0
  %3131 = vmatprep.subr.mxu0 0.0
  %3132 = vmatpush2.msra.mxu0 0.0
  %3133 = vmatprep.mubr.f32.mxu0 0.0
  %3134 = vmatmul.mubr.f32.gmra.mxu0 %v3067
  %v3135 = vpop.f32.mrf.mxu0
  %v3136 = vadd.f32 %v2963, %v3135
  %v3137 = vpop.f32.mrf.mxu0
  %3138 = vdwg.mxu0
  %v3139 = vxor.u32 %v3136, 2147483648
  %v3140 = vmul.f32 %v3139, 1.442695
  %v3141 = vpow.pop %v3140
  %v3142 = vadd.f32 %v3141, 1.0
  %v3143 = vrcp.pop %v3142
  %v3144 = vmul.f32 1.0, %v3143
  %v3145 = vmul.f32 %v3144, 2.0
  %v3146 = vsub.f32 %v3145, 1.0
  %v3147 = vmul.f32 %v3144, %v3057
  %3149 = vrot.lane.b32.xlu0 %v3146, 64
  %v3150 = vpop.permute.xlu0 %3149
  %v3152 = vmul.f32 %v3144, %v3150
  %3154 = vrot.lane.b32.xlu0 %v3152, 32
  %v3155 = vpop.permute.xlu0 %3154
  %v3157 = vadd.f32 %v3147, %v3155
  %v3158 = vtanh.pop %v3157
  %3160 = vrot.lane.b32.xlu0 %v3158, 64
  %v3161 = vpop.permute.xlu0 %3160
  %v3163 = vmul.f32 %v3144, %v3161
  %3165 = vrot.lane.b32.xlu0 %v3163, 32
  %v3166 = vpop.permute.xlu0 %3165
  %v3167 = vsel %vm345, %v3166, 0
  %3169 = vmatprep.subr.mxu0 0.0
  %3170 = vmatpush1.msra.mxu0 0.0
  %3171 = vmatprep.subr.mxu0 0.0
  %3172 = vmatpush1.msra.mxu0 0.0
  %3173 = vmatprep.subr.mxu0 0.0
  %3174 = vmatpush1.msra.mxu0 0.0
  %3175 = vmatprep.subr.mxu0 0.0
  %3176 = vmatpush1.msra.mxu0 0.0
  %3177 = vmatprep.subr.mxu0 0.0
  %3178 = vmatpush1.msra.mxu0 0.0
  %3179 = vmatprep.subr.mxu0 0.0
  %3180 = vmatpush1.msra.mxu0 0.0
  %3181 = vmatprep.subr.mxu0 0.0
  %3182 = vmatpush1.msra.mxu0 0.0
  %3183 = vmatprep.subr.mxu0 0.0
  %3184 = vmatpush1.msra.mxu0 0.0
  %3185 = vmatprep.subr.mxu0 0.0
  %3186 = vmatpush1.msra.mxu0 0.0
  %3187 = vmatprep.subr.mxu0 0.0
  %3188 = vmatpush1.msra.mxu0 0.0
  %3189 = vmatprep.subr.mxu0 0.0
  %3190 = vmatpush1.msra.mxu0 0.0
  %3191 = vmatprep.subr.mxu0 0.0
  %3192 = vmatpush1.msra.mxu0 0.0
  %3193 = vmatprep.subr.mxu0 0.0
  %3194 = vmatpush1.msra.mxu0 %v2841
  %3195 = vmatprep.subr.mxu0 0.0
  %3196 = vmatpush1.msra.mxu0 %v2840
  %3197 = vmatprep.subr.mxu0 0.0
  %3198 = vmatpush1.msra.mxu0 %v2839
  %3199 = vmatprep.subr.mxu0 0.0
  %3200 = vmatpush1.msra.mxu0 %v2838
  %3201 = vmatprep.subr.mxu0 0.0
  %3202 = vmatpush2.msra.mxu0 0.0
  %3203 = vmatprep.subr.mxu0 0.0
  %3204 = vmatpush2.msra.mxu0 0.0
  %3205 = vmatprep.subr.mxu0 0.0
  %3206 = vmatpush2.msra.mxu0 0.0
  %3207 = vmatprep.subr.mxu0 0.0
  %3208 = vmatpush2.msra.mxu0 0.0
  %3209 = vmatprep.subr.mxu0 0.0
  %3210 = vmatpush2.msra.mxu0 0.0
  %3211 = vmatprep.subr.mxu0 0.0
  %3212 = vmatpush2.msra.mxu0 0.0
  %3213 = vmatprep.subr.mxu0 0.0
  %3214 = vmatpush2.msra.mxu0 0.0
  %3215 = vmatprep.subr.mxu0 0.0
  %3216 = vmatpush2.msra.mxu0 0.0
  %3217 = vmatprep.subr.mxu0 0.0
  %3218 = vmatpush2.msra.mxu0 0.0
  %3219 = vmatprep.subr.mxu0 0.0
  %3220 = vmatpush2.msra.mxu0 0.0
  %3221 = vmatprep.subr.mxu0 0.0
  %3222 = vmatpush2.msra.mxu0 0.0
  %3223 = vmatprep.subr.mxu0 0.0
  %3224 = vmatpush2.msra.mxu0 0.0
  %3225 = vmatprep.subr.mxu0 0.0
  %3226 = vmatpush2.msra.mxu0 0.0
  %3227 = vmatprep.subr.mxu0 0.0
  %3228 = vmatpush2.msra.mxu0 0.0
  %3229 = vmatprep.subr.mxu0 0.0
  %3230 = vmatpush2.msra.mxu0 0.0
  %3231 = vmatprep.subr.mxu0 0.0
  %3232 = vmatpush2.msra.mxu0 0.0
  %3233 = vmatprep.mubr.f32.mxu0 0.0
  %3234 = vmatmul.mubr.f32.gmra.mxu0 %v3167
  %v3235 = vpop.f32.mrf.mxu0
  %v3236 = vadd.f32 %v2963, %v3235
  %v3237 = vpop.f32.mrf.mxu0
  %3238 = vdwg.mxu0
  %v3239 = vxor.u32 %v3236, 2147483648
  %v3240 = vmul.f32 %v3239, 1.442695
  %v3241 = vpow.pop %v3240
  %v3242 = vadd.f32 %v3241, 1.0
  %v3243 = vrcp.pop %v3242
  %v3244 = vmul.f32 1.0, %v3243
  %v3245 = vmul.f32 %v3244, 2.0
  %v3246 = vsub.f32 %v3245, 1.0
  %v3247 = vmul.f32 %v3244, %v3157
  %3249 = vrot.lane.b32.xlu0 %v3246, 64
  %v3250 = vpop.permute.xlu0 %3249
  %v3252 = vmul.f32 %v3244, %v3250
  %3254 = vrot.lane.b32.xlu0 %v3252, 32
  %v3255 = vpop.permute.xlu0 %3254
  %v3257 = vadd.f32 %v3247, %v3255
  %v3258 = vtanh.pop %v3257
  %3260 = vrot.lane.b32.xlu0 %v3258, 64
  %v3261 = vpop.permute.xlu0 %3260
  %v3263 = vmul.f32 %v3244, %v3261
  %3265 = vrot.lane.b32.xlu0 %v3263, 32
  %v3266 = vpop.permute.xlu0 %3265
  %v3267 = vsel %vm345, %v3266, 0
  %3269 = vmatprep.subr.mxu0 0.0
  %3270 = vmatpush1.msra.mxu0 0.0
  %3271 = vmatprep.subr.mxu0 0.0
  %3272 = vmatpush1.msra.mxu0 0.0
  %3273 = vmatprep.subr.mxu0 0.0
  %3274 = vmatpush1.msra.mxu0 0.0
  %3275 = vmatprep.subr.mxu0 0.0
  %3276 = vmatpush1.msra.mxu0 0.0
  %3277 = vmatprep.subr.mxu0 0.0
  %3278 = vmatpush1.msra.mxu0 0.0
  %3279 = vmatprep.subr.mxu0 0.0
  %3280 = vmatpush1.msra.mxu0 0.0
  %3281 = vmatprep.subr.mxu0 0.0
  %3282 = vmatpush1.msra.mxu0 0.0
  %3283 = vmatprep.subr.mxu0 0.0
  %3284 = vmatpush1.msra.mxu0 0.0
  %3285 = vmatprep.subr.mxu0 0.0
  %3286 = vmatpush1.msra.mxu0 0.0
  %3287 = vmatprep.subr.mxu0 0.0
  %3288 = vmatpush1.msra.mxu0 0.0
  %3289 = vmatprep.subr.mxu0 0.0
  %3290 = vmatpush1.msra.mxu0 0.0
  %3291 = vmatprep.subr.mxu0 0.0
  %3292 = vmatpush1.msra.mxu0 0.0
  %3293 = vmatprep.subr.mxu0 0.0
  %3294 = vmatpush1.msra.mxu0 %v2841
  %3295 = vmatprep.subr.mxu0 0.0
  %3296 = vmatpush1.msra.mxu0 %v2840
  %3297 = vmatprep.subr.mxu0 0.0
  %3298 = vmatpush1.msra.mxu0 %v2839
  %3299 = vmatprep.subr.mxu0 0.0
  %3300 = vmatpush1.msra.mxu0 %v2838
  %3301 = vmatprep.subr.mxu0 0.0
  %3302 = vmatpush2.msra.mxu0 0.0
  %3303 = vmatprep.subr.mxu0 0.0
  %3304 = vmatpush2.msra.mxu0 0.0
  %3305 = vmatprep.subr.mxu0 0.0
  %3306 = vmatpush2.msra.mxu0 0.0
  %3307 = vmatprep.subr.mxu0 0.0
  %3308 = vmatpush2.msra.mxu0 0.0
  %3309 = vmatprep.subr.mxu0 0.0
  %3310 = vmatpush2.msra.mxu0 0.0
  %3311 = vmatprep.subr.mxu0 0.0
  %3312 = vmatpush2.msra.mxu0 0.0
  %3313 = vmatprep.subr.mxu0 0.0
  %3314 = vmatpush2.msra.mxu0 0.0
  %3315 = vmatprep.subr.mxu0 0.0
  %3316 = vmatpush2.msra.mxu0 0.0
  %3317 = vmatprep.subr.mxu0 0.0
  %3318 = vmatpush2.msra.mxu0 0.0
  %3319 = vmatprep.subr.mxu0 0.0
  %3320 = vmatpush2.msra.mxu0 0.0
  %3321 = vmatprep.subr.mxu0 0.0
  %3322 = vmatpush2.msra.mxu0 0.0
  %3323 = vmatprep.subr.mxu0 0.0
  %3324 = vmatpush2.msra.mxu0 0.0
  %3325 = vmatprep.subr.mxu0 0.0
  %3326 = vmatpush2.msra.mxu0 0.0
  %3327 = vmatprep.subr.mxu0 0.0
  %3328 = vmatpush2.msra.mxu0 0.0
  %3329 = vmatprep.subr.mxu0 0.0
  %3330 = vmatpush2.msra.mxu0 0.0
  %3331 = vmatprep.subr.mxu0 0.0
  %3332 = vmatpush2.msra.mxu0 0.0
  %3333 = vmatprep.mubr.f32.mxu0 0.0
  %3334 = vmatmul.mubr.f32.gmra.mxu0 %v3267
  %v3335 = vpop.f32.mrf.mxu0
  %v3336 = vadd.f32 %v2963, %v3335
  %v3337 = vpop.f32.mrf.mxu0
  %3338 = vdwg.mxu0
  %v3339 = vxor.u32 %v3336, 2147483648
  %v3340 = vmul.f32 %v3339, 1.442695
  %v3341 = vpow.pop %v3340
  %v3342 = vadd.f32 %v3341, 1.0
  %v3343 = vrcp.pop %v3342
  %v3344 = vmul.f32 1.0, %v3343
  %v3345 = vmul.f32 %v3344, 2.0
  %v3346 = vsub.f32 %v3345, 1.0
  %v3347 = vmul.f32 %v3344, %v3257
  %3349 = vrot.lane.b32.xlu0 %v3346, 64
  %v3350 = vpop.permute.xlu0 %3349
  %v3352 = vmul.f32 %v3344, %v3350
  %3354 = vrot.lane.b32.xlu0 %v3352, 32
  %v3355 = vpop.permute.xlu0 %3354
  %v3357 = vadd.f32 %v3347, %v3355
  %v3358 = vtanh.pop %v3357
  %3360 = vrot.lane.b32.xlu0 %v3358, 64
  %v3361 = vpop.permute.xlu0 %3360
  %v3363 = vmul.f32 %v3344, %v3361
  %3365 = vrot.lane.b32.xlu0 %v3363, 32
  %v3366 = vpop.permute.xlu0 %3365
  %v3367 = vsel %vm345, %v3366, 0
  %3369 = vmatprep.subr.mxu0 0.0
  %3370 = vmatpush1.msra.mxu0 0.0
  %3371 = vmatprep.subr.mxu0 0.0
  %3372 = vmatpush1.msra.mxu0 0.0
  %3373 = vmatprep.subr.mxu0 0.0
  %3374 = vmatpush1.msra.mxu0 0.0
  %3375 = vmatprep.subr.mxu0 0.0
  %3376 = vmatpush1.msra.mxu0 0.0
  %3377 = vmatprep.subr.mxu0 0.0
  %3378 = vmatpush1.msra.mxu0 0.0
  %3379 = vmatprep.subr.mxu0 0.0
  %3380 = vmatpush1.msra.mxu0 0.0
  %3381 = vmatprep.subr.mxu0 0.0
  %3382 = vmatpush1.msra.mxu0 0.0
  %3383 = vmatprep.subr.mxu0 0.0
  %3384 = vmatpush1.msra.mxu0 0.0
  %3385 = vmatprep.subr.mxu0 0.0
  %3386 = vmatpush1.msra.mxu0 0.0
  %3387 = vmatprep.subr.mxu0 0.0
  %3388 = vmatpush1.msra.mxu0 0.0
  %3389 = vmatprep.subr.mxu0 0.0
  %3390 = vmatpush1.msra.mxu0 0.0
  %3391 = vmatprep.subr.mxu0 0.0
  %3392 = vmatpush1.msra.mxu0 0.0
  %3393 = vmatprep.subr.mxu0 0.0
  %3394 = vmatpush1.msra.mxu0 %v2841
  %3395 = vmatprep.subr.mxu0 0.0
  %3396 = vmatpush1.msra.mxu0 %v2840
  %3397 = vmatprep.subr.mxu0 0.0
  %3398 = vmatpush1.msra.mxu0 %v2839
  %3399 = vmatprep.subr.mxu0 0.0
  %3400 = vmatpush1.msra.mxu0 %v2838
  %3401 = vmatprep.subr.mxu0 0.0
  %3402 = vmatpush2.msra.mxu0 0.0
  %3403 = vmatprep.subr.mxu0 0.0
  %3404 = vmatpush2.msra.mxu0 0.0
  %3405 = vmatprep.subr.mxu0 0.0
  %3406 = vmatpush2.msra.mxu0 0.0
  %3407 = vmatprep.subr.mxu0 0.0
  %3408 = vmatpush2.msra.mxu0 0.0
  %3409 = vmatprep.subr.mxu0 0.0
  %3410 = vmatpush2.msra.mxu0 0.0
  %3411 = vmatprep.subr.mxu0 0.0
  %3412 = vmatpush2.msra.mxu0 0.0
  %3413 = vmatprep.subr.mxu0 0.0
  %3414 = vmatpush2.msra.mxu0 0.0
  %3415 = vmatprep.subr.mxu0 0.0
  %3416 = vmatpush2.msra.mxu0 0.0
  %3417 = vmatprep.subr.mxu0 0.0
  %3418 = vmatpush2.msra.mxu0 0.0
  %3419 = vmatprep.subr.mxu0 0.0
  %3420 = vmatpush2.msra.mxu0 0.0
  %3421 = vmatprep.subr.mxu0 0.0
  %3422 = vmatpush2.msra.mxu0 0.0
  %3423 = vmatprep.subr.mxu0 0.0
  %3424 = vmatpush2.msra.mxu0 0.0
  %3425 = vmatprep.subr.mxu0 0.0
  %3426 = vmatpush2.msra.mxu0 0.0
  %3427 = vmatprep.subr.mxu0 0.0
  %3428 = vmatpush2.msra.mxu0 0.0
  %3429 = vmatprep.subr.mxu0 0.0
  %3430 = vmatpush2.msra.mxu0 0.0
  %3431 = vmatprep.subr.mxu0 0.0
  %3432 = vmatpush2.msra.mxu0 0.0
  %3433 = vmatprep.mubr.f32.mxu0 0.0
  %3434 = vmatmul.mubr.f32.gmra.mxu0 %v3367
  %v3435 = vpop.f32.mrf.mxu0
  %v3436 = vadd.f32 %v2963, %v3435
  %v3437 = vpop.f32.mrf.mxu0
  %3438 = vdwg.mxu0
  %v3439 = vxor.u32 %v3436, 2147483648
  %v3440 = vmul.f32 %v3439, 1.442695
  %v3441 = vpow.pop %v3440
  %v3442 = vadd.f32 %v3441, 1.0
  %v3443 = vrcp.pop %v3442
  %v3444 = vmul.f32 1.0, %v3443
  %v3445 = vmul.f32 %v3444, 2.0
  %v3446 = vsub.f32 %v3445, 1.0
  %v3447 = vmul.f32 %v3444, %v3357
  %3449 = vrot.lane.b32.xlu0 %v3446, 64
  %v3450 = vpop.permute.xlu0 %3449
  %v3452 = vmul.f32 %v3444, %v3450
  %3454 = vrot.lane.b32.xlu0 %v3452, 32
  %v3455 = vpop.permute.xlu0 %3454
  %v3457 = vadd.f32 %v3447, %v3455
  %v3458 = vtanh.pop %v3457
  %3460 = vrot.lane.b32.xlu0 %v3458, 64
  %v3461 = vpop.permute.xlu0 %3460
  %v3463 = vmul.f32 %v3444, %v3461
  %3465 = vrot.lane.b32.xlu0 %v3463, 32
  %v3466 = vpop.permute.xlu0 %3465
  %v3467 = vsel %vm345, %v3466, 0
  %3469 = vmatprep.subr.mxu0 0.0
  %3470 = vmatpush1.msra.mxu0 0.0
  %3471 = vmatprep.subr.mxu0 0.0
  %3472 = vmatpush1.msra.mxu0 0.0
  %3473 = vmatprep.subr.mxu0 0.0
  %3474 = vmatpush1.msra.mxu0 0.0
  %3475 = vmatprep.subr.mxu0 0.0
  %3476 = vmatpush1.msra.mxu0 0.0
  %3477 = vmatprep.subr.mxu0 0.0
  %3478 = vmatpush1.msra.mxu0 0.0
  %3479 = vmatprep.subr.mxu0 0.0
  %3480 = vmatpush1.msra.mxu0 0.0
  %3481 = vmatprep.subr.mxu0 0.0
  %3482 = vmatpush1.msra.mxu0 0.0
  %3483 = vmatprep.subr.mxu0 0.0
  %3484 = vmatpush1.msra.mxu0 0.0
  %3485 = vmatprep.subr.mxu0 0.0
  %3486 = vmatpush1.msra.mxu0 0.0
  %3487 = vmatprep.subr.mxu0 0.0
  %3488 = vmatpush1.msra.mxu0 0.0
  %3489 = vmatprep.subr.mxu0 0.0
  %3490 = vmatpush1.msra.mxu0 0.0
  %3491 = vmatprep.subr.mxu0 0.0
  %3492 = vmatpush1.msra.mxu0 0.0
  %3493 = vmatprep.subr.mxu0 0.0
  %3494 = vmatpush1.msra.mxu0 %v2841
  %3495 = vmatprep.subr.mxu0 0.0
  %3496 = vmatpush1.msra.mxu0 %v2840
  %3497 = vmatprep.subr.mxu0 0.0
  %3498 = vmatpush1.msra.mxu0 %v2839
  %3499 = vmatprep.subr.mxu0 0.0
  %3500 = vmatpush1.msra.mxu0 %v2838
  %3501 = vmatprep.subr.mxu0 0.0
  %3502 = vmatpush2.msra.mxu0 0.0
  %3503 = vmatprep.subr.mxu0 0.0
  %3504 = vmatpush2.msra.mxu0 0.0
  %3505 = vmatprep.subr.mxu0 0.0
  %3506 = vmatpush2.msra.mxu0 0.0
  %3507 = vmatprep.subr.mxu0 0.0
  %3508 = vmatpush2.msra.mxu0 0.0
  %3509 = vmatprep.subr.mxu0 0.0
  %3510 = vmatpush2.msra.mxu0 0.0
  %3511 = vmatprep.subr.mxu0 0.0
  %3512 = vmatpush2.msra.mxu0 0.0
  %3513 = vmatprep.subr.mxu0 0.0
  %3514 = vmatpush2.msra.mxu0 0.0
  %3515 = vmatprep.subr.mxu0 0.0
  %3516 = vmatpush2.msra.mxu0 0.0
  %3517 = vmatprep.subr.mxu0 0.0
  %3518 = vmatpush2.msra.mxu0 0.0
  %3519 = vmatprep.subr.mxu0 0.0
  %3520 = vmatpush2.msra.mxu0 0.0
  %3521 = vmatprep.subr.mxu0 0.0
  %3522 = vmatpush2.msra.mxu0 0.0
  %3523 = vmatprep.subr.mxu0 0.0
  %3524 = vmatpush2.msra.mxu0 0.0
  %3525 = vmatprep.subr.mxu0 0.0
  %3526 = vmatpush2.msra.mxu0 0.0
  %3527 = vmatprep.subr.mxu0 0.0
  %3528 = vmatpush2.msra.mxu0 0.0
  %3529 = vmatprep.subr.mxu0 0.0
  %3530 = vmatpush2.msra.mxu0 0.0
  %3531 = vmatprep.subr.mxu0 0.0
  %3532 = vmatpush2.msra.mxu0 0.0
  %3533 = vmatprep.mubr.f32.mxu0 0.0
  %3534 = vmatmul.mubr.f32.gmra.mxu0 %v3467
  %v3535 = vpop.f32.mrf.mxu0
  %v3536 = vadd.f32 %v2963, %v3535
  %v3537 = vpop.f32.mrf.mxu0
  %3538 = vdwg.mxu0
  %v3539 = vxor.u32 %v3536, 2147483648
  %v3540 = vmul.f32 %v3539, 1.442695
  %v3541 = vpow.pop %v3540
  %v3542 = vadd.f32 %v3541, 1.0
  %v3543 = vrcp.pop %v3542
  %v3544 = vmul.f32 1.0, %v3543
  %v3545 = vmul.f32 %v3544, 2.0
  %v3546 = vsub.f32 %v3545, 1.0
  %v3547 = vmul.f32 %v3544, %v3457
  %3549 = vrot.lane.b32.xlu0 %v3546, 64
  %v3550 = vpop.permute.xlu0 %3549
  %v3552 = vmul.f32 %v3544, %v3550
  %3554 = vrot.lane.b32.xlu0 %v3552, 32
  %v3555 = vpop.permute.xlu0 %3554
  %v3557 = vadd.f32 %v3547, %v3555
  %v3558 = vtanh.pop %v3557
  %3560 = vrot.lane.b32.xlu0 %v3558, 64
  %v3561 = vpop.permute.xlu0 %3560
  %v3563 = vmul.f32 %v3544, %v3561
  %3565 = vrot.lane.b32.xlu0 %v3563, 32
  %v3566 = vpop.permute.xlu0 %3565
  %v3567 = vsel %vm345, %v3566, 0
  %3569 = vmatprep.subr.mxu0 0.0
  %3570 = vmatpush1.msra.mxu0 0.0
  %3571 = vmatprep.subr.mxu0 0.0
  %3572 = vmatpush1.msra.mxu0 0.0
  %3573 = vmatprep.subr.mxu0 0.0
  %3574 = vmatpush1.msra.mxu0 0.0
  %3575 = vmatprep.subr.mxu0 0.0
  %3576 = vmatpush1.msra.mxu0 0.0
  %3577 = vmatprep.subr.mxu0 0.0
  %3578 = vmatpush1.msra.mxu0 0.0
  %3579 = vmatprep.subr.mxu0 0.0
  %3580 = vmatpush1.msra.mxu0 0.0
  %3581 = vmatprep.subr.mxu0 0.0
  %3582 = vmatpush1.msra.mxu0 0.0
  %3583 = vmatprep.subr.mxu0 0.0
  %3584 = vmatpush1.msra.mxu0 0.0
  %3585 = vmatprep.subr.mxu0 0.0
  %3586 = vmatpush1.msra.mxu0 0.0
  %3587 = vmatprep.subr.mxu0 0.0
  %3588 = vmatpush1.msra.mxu0 0.0
  %3589 = vmatprep.subr.mxu0 0.0
  %3590 = vmatpush1.msra.mxu0 0.0
  %3591 = vmatprep.subr.mxu0 0.0
  %3592 = vmatpush1.msra.mxu0 0.0
  %3593 = vmatprep.subr.mxu0 0.0
  %3594 = vmatpush1.msra.mxu0 %v2841
  %3595 = vmatprep.subr.mxu0 0.0
  %3596 = vmatpush1.msra.mxu0 %v2840
  %3597 = vmatprep.subr.mxu0 0.0
  %3598 = vmatpush1.msra.mxu0 %v2839
  %3599 = vmatprep.subr.mxu0 0.0
  %3600 = vmatpush1.msra.mxu0 %v2838
  %3601 = vmatprep.subr.mxu0 0.0
  %3602 = vmatpush2.msra.mxu0 0.0
  %3603 = vmatprep.subr.mxu0 0.0
  %3604 = vmatpush2.msra.mxu0 0.0
  %3605 = vmatprep.subr.mxu0 0.0
  %3606 = vmatpush2.msra.mxu0 0.0
  %3607 = vmatprep.subr.mxu0 0.0
  %3608 = vmatpush2.msra.mxu0 0.0
  %3609 = vmatprep.subr.mxu0 0.0
  %3610 = vmatpush2.msra.mxu0 0.0
  %3611 = vmatprep.subr.mxu0 0.0
  %3612 = vmatpush2.msra.mxu0 0.0
  %3613 = vmatprep.subr.mxu0 0.0
  %3614 = vmatpush2.msra.mxu0 0.0
  %3615 = vmatprep.subr.mxu0 0.0
  %3616 = vmatpush2.msra.mxu0 0.0
  %3617 = vmatprep.subr.mxu0 0.0
  %3618 = vmatpush2.msra.mxu0 0.0
  %3619 = vmatprep.subr.mxu0 0.0
  %3620 = vmatpush2.msra.mxu0 0.0
  %3621 = vmatprep.subr.mxu0 0.0
  %3622 = vmatpush2.msra.mxu0 0.0
  %3623 = vmatprep.subr.mxu0 0.0
  %3624 = vmatpush2.msra.mxu0 0.0
  %3625 = vmatprep.subr.mxu0 0.0
  %3626 = vmatpush2.msra.mxu0 0.0
  %3627 = vmatprep.subr.mxu0 0.0
  %3628 = vmatpush2.msra.mxu0 0.0
  %3629 = vmatprep.subr.mxu0 0.0
  %3630 = vmatpush2.msra.mxu0 0.0
  %3631 = vmatprep.subr.mxu0 0.0
  %3632 = vmatpush2.msra.mxu0 0.0
  %3633 = vmatprep.mubr.f32.mxu0 0.0
  %3634 = vmatmul.mubr.f32.gmra.mxu0 %v3567
  %v3635 = vpop.f32.mrf.mxu0
  %v3636 = vadd.f32 %v2963, %v3635
  %v3637 = vpop.f32.mrf.mxu0
  %3638 = vdwg.mxu0
  %v3639 = vxor.u32 %v3636, 2147483648
  %v3640 = vmul.f32 %v3639, 1.442695
  %v3641 = vpow.pop %v3640
  %v3642 = vadd.f32 %v3641, 1.0
  %v3643 = vrcp.pop %v3642
  %v3644 = vmul.f32 1.0, %v3643
  %v3645 = vmul.f32 %v3644, 2.0
  %v3646 = vsub.f32 %v3645, 1.0
  %v3647 = vmul.f32 %v3644, %v3557
  %3649 = vrot.lane.b32.xlu0 %v3646, 64
  %v3650 = vpop.permute.xlu0 %3649
  %v3652 = vmul.f32 %v3644, %v3650
  %3654 = vrot.lane.b32.xlu0 %v3652, 32
  %v3655 = vpop.permute.xlu0 %3654
  %v3657 = vadd.f32 %v3647, %v3655
  %v3658 = vtanh.pop %v3657
  %3660 = vrot.lane.b32.xlu0 %v3658, 64
  %v3661 = vpop.permute.xlu0 %3660
  %v3663 = vmul.f32 %v3644, %v3661
  %v3664 = vld [vmem:[%s5 + $0xa0] sm:$0xff]
  %v3665 = vld [vmem:[%s5 + $0xa8] sm:$0xff]
  %v3666 = vld [vmem:[%s5 + $0xb0] sm:$0xff]
  %v3667 = vld [vmem:[%s5 + $0xb8] sm:$0xff]
  %v3668 = vld [vmem:[%s5 + $0xc0] sm:$0x1]
  %v3669 = vlaneseq
  %v3670 = vshrl.u32 %v3669, 7
  %v3671 = vsub.s32 0, %v3670
  %v3672 = vrot.slane %v3668, %v3671
  %3674 = vrot.lane.b32.xlu0 %v3663, 32
  %v3675 = vpop.permute.xlu0 %3674
  %v3676 = vsel %vm345, %v3675, 0
  %3678 = vmatprep.subr.mxu0 0.0
  %3679 = vmatpush1.msra.mxu0 0.0
  %3680 = vmatprep.subr.mxu0 0.0
  %3681 = vmatpush1.msra.mxu0 0.0
  %3682 = vmatprep.subr.mxu0 0.0
  %3683 = vmatpush1.msra.mxu0 0.0
  %3684 = vmatprep.subr.mxu0 0.0
  %3685 = vmatpush1.msra.mxu0 0.0
  %3686 = vmatprep.subr.mxu0 0.0
  %3687 = vmatpush1.msra.mxu0 0.0
  %3688 = vmatprep.subr.mxu0 0.0
  %3689 = vmatpush1.msra.mxu0 0.0
  %3690 = vmatprep.subr.mxu0 0.0
  %3691 = vmatpush1.msra.mxu0 0.0
  %3692 = vmatprep.subr.mxu0 0.0
  %3693 = vmatpush1.msra.mxu0 0.0
  %3694 = vmatprep.subr.mxu0 0.0
  %3695 = vmatpush1.msra.mxu0 0.0
  %3696 = vmatprep.subr.mxu0 0.0
  %3697 = vmatpush1.msra.mxu0 0.0
  %3698 = vmatprep.subr.mxu0 0.0
  %3699 = vmatpush1.msra.mxu0 0.0
  %3700 = vmatprep.subr.mxu0 0.0
  %3701 = vmatpush1.msra.mxu0 0.0
  %3702 = vmatprep.subr.mxu0 0.0
  %3703 = vmatpush1.msra.mxu0 %v3667
  %3704 = vmatprep.subr.mxu0 0.0
  %3705 = vmatpush1.msra.mxu0 %v3666
  %3706 = vmatprep.subr.mxu0 0.0
  %3707 = vmatpush1.msra.mxu0 %v3665
  %3708 = vmatprep.subr.mxu0 0.0
  %3709 = vmatpush1.msra.mxu0 %v3664
  %3710 = vmatprep.subr.mxu0 0.0
  %3711 = vmatpush2.msra.mxu0 0.0
  %3712 = vmatprep.subr.mxu0 0.0
  %3713 = vmatpush2.msra.mxu0 0.0
  %3714 = vmatprep.subr.mxu0 0.0
  %3715 = vmatpush2.msra.mxu0 0.0
  %3716 = vmatprep.subr.mxu0 0.0
  %3717 = vmatpush2.msra.mxu0 0.0
  %3718 = vmatprep.subr.mxu0 0.0
  %3719 = vmatpush2.msra.mxu0 0.0
  %3720 = vmatprep.subr.mxu0 0.0
  %3721 = vmatpush2.msra.mxu0 0.0
  %3722 = vmatprep.subr.mxu0 0.0
  %3723 = vmatpush2.msra.mxu0 0.0
  %3724 = vmatprep.subr.mxu0 0.0
  %3725 = vmatpush2.msra.mxu0 0.0
  %3726 = vmatprep.subr.mxu0 0.0
  %3727 = vmatpush2.msra.mxu0 0.0
  %3728 = vmatprep.subr.mxu0 0.0
  %3729 = vmatpush2.msra.mxu0 0.0
  %3730 = vmatprep.subr.mxu0 0.0
  %3731 = vmatpush2.msra.mxu0 0.0
  %3732 = vmatprep.subr.mxu0 0.0
  %3733 = vmatpush2.msra.mxu0 0.0
  %3734 = vmatprep.subr.mxu0 0.0
  %3735 = vmatpush2.msra.mxu0 0.0
  %3736 = vmatprep.subr.mxu0 0.0
  %3737 = vmatpush2.msra.mxu0 0.0
  %3738 = vmatprep.subr.mxu0 0.0
  %3739 = vmatpush2.msra.mxu0 0.0
  %3740 = vmatprep.subr.mxu0 0.0
  %3741 = vmatpush2.msra.mxu0 0.0
  %3742 = vmatprep.mubr.f32.mxu0 0.0
  %3743 = vmatmul.mubr.f32.gmra.mxu0 %v2967
  %v3744 = vpop.f32.mrf.mxu0
  %v3745 = vadd.f32 %v3672, %v3744
  %v3746 = vpop.f32.mrf.mxu0
  %3747 = vmatprep.mubr.f32.mxu0 0.0
  %3748 = vmatmul.mubr.f32.gmra.mxu0 %v3067
  %v3749 = vpop.f32.mrf.mxu0
  %v3750 = vadd.f32 %v3672, %v3749
  %v3751 = vpop.f32.mrf.mxu0
  %3752 = vmatprep.mubr.f32.mxu0 0.0
  %3753 = vmatmul.mubr.f32.gmra.mxu0 %v3167
  %v3754 = vpop.f32.mrf.mxu0
  %v3755 = vadd.f32 %v3672, %v3754
  %v3756 = vpop.f32.mrf.mxu0
  %3757 = vmatprep.mubr.f32.mxu0 0.0
  %3758 = vmatmul.mubr.f32.gmra.mxu0 %v3267
  %v3759 = vpop.f32.mrf.mxu0
  %v3760 = vadd.f32 %v3672, %v3759
  %v3761 = vpop.f32.mrf.mxu0
  %3762 = vmatprep.mubr.f32.mxu0 0.0
  %3763 = vmatmul.mubr.f32.gmra.mxu0 %v3367
  %v3764 = vpop.f32.mrf.mxu0
  %v3765 = vadd.f32 %v3672, %v3764
  %v3766 = vpop.f32.mrf.mxu0
  %3767 = vmatprep.mubr.f32.mxu0 0.0
  %3768 = vmatmul.mubr.f32.gmra.mxu0 %v3467
  %v3769 = vpop.f32.mrf.mxu0
  %v3770 = vadd.f32 %v3672, %v3769
  %v3771 = vpop.f32.mrf.mxu0
  %3772 = vmatprep.mubr.f32.mxu0 0.0
  %3773 = vmatmul.mubr.f32.gmra.mxu0 %v3567
  %v3774 = vpop.f32.mrf.mxu0
  %v3775 = vadd.f32 %v3672, %v3774
  %v3776 = vpop.f32.mrf.mxu0
  %3777 = vmatprep.mubr.f32.mxu0 0.0
  %3778 = vmatmul.mubr.f32.gmra.mxu0 %v3676
  %v3779 = vpop.f32.mrf.mxu0
  %v3780 = vadd.f32 %v3672, %v3779
  %v3781 = vpop.f32.mrf.mxu0
  %3782 = vdwg.mxu0
  %3784 = vrot.lane.b32.xlu0 %v3750, 2
  %v3785 = vpop.permute.xlu0 %3784
  %3788 = vrot.lane.b32.xlu0 %v3755, 4
  %v3789 = vpop.permute.xlu0 %3788
  %3792 = vrot.lane.b32.xlu0 %v3760, 6
  %v3793 = vpop.permute.xlu0 %3792
  %3796 = vrot.lane.b32.xlu0 %v3765, 8
  %v3797 = vpop.permute.xlu0 %3796
  %3800 = vrot.lane.b32.xlu0 %v3770, 10
  %v3801 = vpop.permute.xlu0 %3800
  %3804 = vrot.lane.b32.xlu0 %v3775, 12
  %v3805 = vpop.permute.xlu0 %3804
  %3808 = vrot.lane.b32.xlu0 %v3780, 14
  %v3809 = vpop.permute.xlu0 %3808
  %vm3811 = vcmask 15360
  %v3812 = vsel %vm3811, %v3745, %v3785
  %vm3813 = vcmask 31744
  %v3814 = vsel %vm3813, %v3812, %v3789
  %vm3815 = vcmask 48128
  %v3816 = vsel %vm3815, %v3814, %v3793
  %v3817 = vsel %vm1050, %v3816, %v3797
  %vm3818 = vcmask 80896
  %v3819 = vsel %vm3818, %v3817, %v3801
  %vm3820 = vcmask 97280
  %v3821 = vsel %vm3820, %v3819, %v3805
  %vm3822 = vcmask 113664
  %v3823 = vsel %vm3822, %v3821, %v3809
  %3824 = vst.msk [vmem:[%s6] sm:$0xff] %vm187, %v3823
  // Predicated region
  $region26: #{trajectory_generator_forward.1} parent=0 // pred_check
    _
  $region27: #{trajectory_generator_forward.1} parent=0 // pred_check_branch
    %3826 = sbr.rel (0) target = $region29
  $region28: #{trajectory_generator_forward.1} parent=0 // pred_region
    _
  $region29: #{trajectory_generator_forward.1} parent=0 // pred_fallthru
    _
  // Predicated region
  $region30: #{trajectory_generator_forward.1} parent=0 // pred_check
    _
  $region31: #{trajectory_generator_forward.1} parent=0 // pred_check_branch
    %3828 = sbr.rel (0) target = $region33
  $region32: #{trajectory_generator_forward.1} parent=0 // pred_region
    _
  $region33: #{trajectory_generator_forward.1} parent=0 // pred_fallthru
    _

</llo_original>
